<compile_context>
chip_gen: v5e
topology: v5e:2x2
jax: 0.10.0
libtpu: 0.0.40
codegen_flags: <defaults>
</compile_context>

<pallas_src>
import functools

import jax
import jax.numpy as jnp
import numpy as np
from jax import lax
from jax.experimental import pallas as pl
from jax.experimental.pallas import tpu as pltpu


def _round_up(x, m):
    return (x + m - 1) // m * m


def _pick_tile(total, candidates):
    for c in candidates:
        if total % c == 0:
            return c
    return total


def _vmem_limit(nbytes):
    # Computed need + slack, clamped to [16 MiB, 64 MiB] (v7x physical VMEM).
    return int(min(max(nbytes + (4 << 20), 16 << 20), 64 << 20))


# ----------------------------------------------------------------------------
# Kernel 1: LSTM recurrence, tiled over time chunks (grid axis "arbitrary").
# ----------------------------------------------------------------------------
def _lstm_kernel(emb_ref,   # [TC*Bp, Hp] bf16  time-major embedded-input chunk
                 h0_ref,    # [Bp, Hp]    f32   initial hidden
                 c0_ref,    # [Bp, Hp]    f32   initial cell
                 wih_ref,   # [Hp, 4Hp]   bf16  W_ih^T (gate order i, f, g, o)
                 whh_ref,   # [Hp, 4Hp]   bf16  W_hh^T
                 b_ref,     # [1, 4Hp]    f32   b_ih + b_hh
                 hall_ref,  # [TC*Bp, Hp] bf16  hidden-state chunk (output)
                 hT_ref,    # [Bp, Hp]    f32   final hidden
                 cT_ref,    # [Bp, Hp]    f32   final cell
                 gx_scr,    # VMEM [TC*Bp, 4Hp] bf16  precomputed input gates
                 h_scr,     # VMEM [Bp, Hp] f32  (persists across grid steps)
                 c_scr,     # VMEM [Bp, Hp] f32
                 *, t_chunk, t_total, guard_tail):
    Bp, Hp = h0_ref.shape
    chunk = pl.program_id(0)

    @pl.when(chunk == 0)
    def _():
        h_scr[...] = h0_ref[...]
        c_scr[...] = c0_ref[...]

    # Input-side gates for this whole chunk: one MXU matmul off the serial
    # recurrence path + a single bias broadcast; stored bf16 (halves VMEM and
    # matches the already-bf16 matmul operand numerics).
    gx_scr[...] = (
        jnp.dot(emb_ref[...], wih_ref[...], preferred_element_type=jnp.float32)
        + b_ref[...]).astype(jnp.bfloat16)

    def step(t, carry):
        row = pl.multiple_of(t * Bp, Bp)
        # TODO(synk): weight-stationary MXU driving (pltpu.matmul_push_rhs /
        # matmul_acc_lhs / matmul_pop) would avoid re-loading W_hh into the
        # MXU every timestep; kept as jnp.dot here for portability.
        gates = (gx_scr[pl.ds(row, Bp), :].astype(jnp.float32)
                 + jnp.dot(h_scr[...].astype(jnp.bfloat16), whh_ref[...],
                           preferred_element_type=jnp.float32))
        i_g = jax.nn.sigmoid(gates[:, 0 * Hp:1 * Hp])
        f_g = jax.nn.sigmoid(gates[:, 1 * Hp:2 * Hp])
        g_g = jnp.tanh(gates[:, 2 * Hp:3 * Hp])
        o_g = jax.nn.sigmoid(gates[:, 3 * Hp:4 * Hp])
        c_new = f_g * c_scr[...] + i_g * g_g
        h_new = o_g * jnp.tanh(c_new)

        def commit():
            c_scr[...] = c_new
            h_scr[...] = h_new
            hall_ref[pl.ds(row, Bp), :] = h_new.astype(jnp.bfloat16)

        if guard_tail:  # only emitted when T was padded up to a chunk multiple
            @pl.when(chunk * t_chunk + t < t_total)
            def _():
                commit()
        else:
            commit()
        return carry

    # Unroll only within a chunk (t_chunk <= 8): bounded instruction count and
    # vreg pressure, still lets the scheduler overlap step t's MXU push with
    # step t-1's VPU/EUP gate math.
    lax.fori_loop(0, t_chunk, step, 0, unroll=True)

    @pl.when(chunk == pl.num_programs(0) - 1)
    def _():
        hT_ref[...] = h_scr[...]
        cT_ref[...] = c_scr[...]


# ----------------------------------------------------------------------------
# Kernel 2: vocab projection, tiled over V (outer, parallel) and M (inner).
# ----------------------------------------------------------------------------
def _proj_kernel(h_ref,     # [TM, Hp]  bf16  hidden states, batch-first rows
                 wfc_ref,   # [Hp, TV]  bf16  W_fc^T vocab tile
                 bfc_ref,   # [1, TV]   f32   b_fc vocab tile
                 out_ref):  # [TM, TV]  f32   logits tile
    out_ref[...] = (
        jnp.dot(h_ref[...], wfc_ref[...], preferred_element_type=jnp.float32)
        + bfc_ref[...])


# ----------------------------------------------------------------------------
# Wrapper: embedding gather + padding / layout glue + the two pallas_calls.
# ----------------------------------------------------------------------------
@jax.jit
def decoder_forward(x_ids, prev_state, params):
    """x_ids: int32 [B, T] tokens. prev_state: (h0, c0), each [1, B, H]."""
    emb_table = params["embedding"]              # [V, H]
    w_ih, w_hh = params["w_ih"], params["w_hh"]  # [4H, H]
    b_ih, b_hh = params["b_ih"], params["b_hh"]  # [4H]
    w_fc, b_fc = params["w_fc"], params["b_fc"]  # [V, H], [V]

    h0, c0 = prev_state
    B, T = x_ids.shape
    V, H = emb_table.shape

    Bp = _round_up(max(B, 16), 16)   # 16 rows = one packed bf16 sublane tile
    Hp = _round_up(H, 128)           # lane-aligned gate slices
    Vp = _round_up(V, 128)           # lane-dense logits stores

    TC = T if T < 8 else 8           # time-chunk (per-grid-step unroll)
    Tp = _round_up(T, TC)
    guard_tail = (Tp != T)
    n_chunks = Tp // TC

    # --- glue: time-major embedding gather (no [B,T,H] transpose) + padding ---
    # TODO(synk): fold this gather into kernel 1 via scalar-prefetched token
    # ids + pl.Element row indexing to avoid one HBM round trip of emb.
    emb_tbh = jnp.take(emb_table, x_ids.T, axis=0)               # [T, B, H]
    emb_p = jnp.pad(emb_tbh, ((0, Tp - T), (0, Bp - B), (0, Hp - H)))
    emb_2d = emb_p.reshape(Tp * Bp, Hp).astype(jnp.bfloat16)     # [Tp*Bp, Hp]

    def pad_gate_mat(w):  # [4H, H] -> [Hp, 4Hp], per-gate zero-padded, bf16
        w4 = jnp.pad(w.reshape(4, H, H), ((0, 0), (0, Hp - H), (0, Hp - H)))
        return w4.reshape(4 * Hp, Hp).T.astype(jnp.bfloat16)

    def pad_gate_vec(b):  # [4H] -> [1, 4Hp], per-gate zero-padded
        b4 = jnp.pad(b.reshape(4, H), ((0, 0), (0, Hp - H)))
        return b4.reshape(1, 4 * Hp).astype(jnp.float32)

    wih_t = pad_gate_mat(w_ih)                    # [Hp, 4Hp] bf16
    whh_t = pad_gate_mat(w_hh)                    # [Hp, 4Hp] bf16
    bias = pad_gate_vec(b_ih + b_hh)              # [1, 4Hp]  f32

    h0_p = jnp.pad(h0[0], ((0, Bp - B), (0, Hp - H)))
    c0_p = jnp.pad(c0[0], ((0, Bp - B), (0, Hp - H)))

    lstm_vmem = _vmem_limit(
        2 * (TC * Bp * Hp * 2)        # emb chunk (double-buffered)
        + 2 * (TC * Bp * Hp * 2)      # hall chunk (double-buffered)
        + 2 * 2 * (Bp * Hp * 4)       # h0, c0
        + 2 * 2 * (Hp * 4 * Hp * 2)   # W_ih^T, W_hh^T
        + 2 * (4 * Hp * 4)            # bias
        + 2 * 2 * (Bp * Hp * 4)       # hT, cT
        + TC * Bp * 4 * Hp * 2        # gx scratch (bf16)
        + 2 * (Bp * Hp * 4))          # h/c scratch

    lstm_kernel = functools.partial(
        _lstm_kernel, t_chunk=TC, t_total=T, guard_tail=guard_tail)

    # --- kernel 1: recurrence, streamed over time chunks ---
    # TODO(synk): for B >= 16 on v7x, add a leading "parallel" grid axis over
    # batch halves (independent h/c scratch per core) to use both TensorCores.
    h_all_2d, hT_p, cT_p = pl.pallas_call(
        lstm_kernel,
        out_shape=(
            jax.ShapeDtypeStruct((Tp * Bp, Hp), jnp.bfloat16),
            jax.ShapeDtypeStruct((Bp, Hp), jnp.float32),
            jax.ShapeDtypeStruct((Bp, Hp), jnp.float32),
        ),
        grid_spec=pltpu.PrefetchScalarGridSpec(
            num_scalar_prefetch=0,
            grid=(n_chunks,),
            in_specs=[
                pl.BlockSpec((TC * Bp, Hp), lambda t: (t, 0)),   # emb chunk
                pl.BlockSpec((Bp, Hp), lambda t: (0, 0)),        # h0
                pl.BlockSpec((Bp, Hp), lambda t: (0, 0)),        # c0
                pl.BlockSpec((Hp, 4 * Hp), lambda t: (0, 0)),    # W_ih^T
                pl.BlockSpec((Hp, 4 * Hp), lambda t: (0, 0)),    # W_hh^T
                pl.BlockSpec((1, 4 * Hp), lambda t: (0, 0)),     # bias
            ],
            out_specs=(
                pl.BlockSpec((TC * Bp, Hp), lambda t: (t, 0)),   # hidden chunk
                pl.BlockSpec((Bp, Hp), lambda t: (0, 0)),        # hT
                pl.BlockSpec((Bp, Hp), lambda t: (0, 0)),        # cT
            ),
            scratch_shapes=[
                pltpu.VMEM((TC * Bp, 4 * Hp), jnp.bfloat16),     # gx
                pltpu.VMEM((Bp, Hp), jnp.float32),               # h
                pltpu.VMEM((Bp, Hp), jnp.float32),               # c
            ]),
        compiler_params=pltpu.CompilerParams(
            dimension_semantics=("arbitrary",),
            vmem_limit_bytes=lstm_vmem),
    )(emb_2d, h0_p, c0_p, wih_t, whh_t, bias)

    # Transpose the SMALL hidden tensor (already bf16) to batch-first rows.
    h_bt = (jnp.transpose(h_all_2d.reshape(Tp, Bp, Hp)[:T], (1, 0, 2))
            .reshape(Bp * T, Hp))                                # [Bp*T, Hp]

    M = Bp * T
    TM = _pick_tile(M, (512, 256, 128))   # M tile (falls back to full M)
    TV = _pick_tile(Vp, (512, 256, 128))  # vocab tile, >=256 feeds wide MXUs

    wfc_t = jnp.pad(w_fc, ((0, Vp - V), (0, Hp - H))).T.astype(jnp.bfloat16)
    bfc = jnp.pad(b_fc, (0, Vp - V)).reshape(1, Vp).astype(jnp.float32)

    proj_vmem = _vmem_limit(
        2 * (TM * Hp * 2)        # h tile
        + 2 * (Hp * TV * 2)      # W_fc tile
        + 2 * (TV * 4)           # bias tile
        + 2 * (TM * TV * 4))     # logits tile

    # --- kernel 2: vocab projection; V outer ("parallel"), M inner so each
    # W_fc vocab tile is DMA'd exactly once while the small h tiles stream ---
    logits_p = pl.pallas_call(
        _proj_kernel,
        out_shape=jax.ShapeDtypeStruct((M, Vp), jnp.float32),
        grid=(Vp // TV, M // TM),
        in_specs=[
            pl.BlockSpec((TM, Hp), lambda j, i: (i, 0)),
            pl.BlockSpec((Hp, TV), lambda j, i: (0, j)),
            pl.BlockSpec((1, TV), lambda j, i: (0, j)),
        ],
        out_specs=pl.BlockSpec((TM, TV), lambda j, i: (i, j)),
        compiler_params=pltpu.CompilerParams(
            dimension_semantics=("parallel", "arbitrary"),
            vmem_limit_bytes=proj_vmem),
    )(h_bt, wfc_t, bfc)

    logits = logits_p.reshape(Bp, T, Vp)[:B, :, :V]              # [B, T, V]
    hT = hT_p[:B, :H][None]                                      # [1, B, H]
    cT = cT_p[:B, :H][None]
    return logits, (hT, cT)


# ----------------------------------------------------------------------------
# Pure-JAX reference (torch.nn.LSTM semantics).  mixed=True mirrors the
# kernel's bf16-operand / f32-accumulation numerics for a tight check.
# ----------------------------------------------------------------------------
def decoder_reference(x_ids, prev_state, params, mixed=True):
    emb_table = params["embedding"]
    w_ih, w_hh = params["w_ih"], params["w_hh"]
    b_ih, b_hh = params["b_ih"], params["b_hh"]
    w_fc, b_fc = params["w_fc"], params["b_fc"]
    h0, c0 = prev_state
    H = emb_table.shape[1]
    cast = (lambda a: a.astype(jnp.bfloat16)) if mixed else (lambda a: a)

    emb_tbh = jnp.take(emb_table, x_ids.T, axis=0)               # [T, B, H]
    gx = (jnp.dot(cast(emb_tbh), cast(w_ih.T),
                  preferred_element_type=jnp.float32) + (b_ih + b_hh))
    if mixed:  # kernel stores gx in bf16 scratch
        gx = gx.astype(jnp.bfloat16).astype(jnp.float32)

    def step(carry, gx_t):
        h, c = carry
        gates = gx_t + jnp.dot(cast(h), cast(w_hh.T),
                               preferred_element_type=jnp.float32)
        i = jax.nn.sigmoid(gates[:, 0 * H:1 * H])
        f = jax.nn.sigmoid(gates[:, 1 * H:2 * H])
        g = jnp.tanh(gates[:, 2 * H:3 * H])
        o = jax.nn.sigmoid(gates[:, 3 * H:4 * H])
        c_new = f * c + i * g
        h_new = o * jnp.tanh(c_new)
        return (h_new, c_new), h_new

    (hT, cT), outs = lax.scan(step, (h0[0], c0[0]), gx)          # outs [T,B,H]
    outs_bt = jnp.transpose(outs, (1, 0, 2))                     # [B, T, H]
    logits = (jnp.dot(cast(outs_bt), cast(w_fc.T),
                      preferred_element_type=jnp.float32) + b_fc)
    return logits, (hT[None], cT[None])


# ----------------------------------------------------------------------------
# Deterministic parameter construction + driver.
# ----------------------------------------------------------------------------
def make_params(key, vocab_size, hidden_size):
    ks = jax.random.split(key, 7)
    V, H = vocab_size, hidden_size
    scale = 1.0 / np.sqrt(H)
    return {
        "embedding": jax.random.normal(ks[0], (V, H), jnp.float32) * scale,
        "w_ih": jax.random.normal(ks[1], (4 * H, H), jnp.float32) * scale,
        "w_hh": jax.random.normal(ks[2], (4 * H, H), jnp.float32) * scale,
        "b_ih": jax.random.normal(ks[3], (4 * H,), jnp.float32) * scale,
        "b_hh": jax.random.normal(ks[4], (4 * H,), jnp.float32) * scale,
        "w_fc": jax.random.normal(ks[5], (V, H), jnp.float32) * scale,
        "b_fc": jax.random.normal(ks[6], (V,), jnp.float32) * scale,
    }


if __name__ == "__main__":
    B, T, H, V = 2, 8, 32, 64   # batch, seq, hidden_size, lang.vocab_size

    key = jax.random.PRNGKey(0)
    k_par, k_tok, k_h, k_c = jax.random.split(key, 4)

    params = make_params(k_par, V, H)
    x_ids = jax.random.randint(k_tok, (B, T), 0, V, dtype=jnp.int32)
    h0 = jax.random.normal(k_h, (1, B, H), jnp.float32)
    c0 = jax.random.normal(k_c, (1, B, H), jnp.float32)

    logits, (hT, cT) = decoder_forward(x_ids, (h0, c0), params)
    jax.block_until_ready((logits, hT, cT))

    # Tight check vs a reference mirroring the kernel's mixed-precision math.
    ref_logits, (ref_hT, ref_cT) = decoder_reference(
        x_ids, (h0, c0), params, mixed=True)
    np.testing.assert_allclose(np.asarray(logits), np.asarray(ref_logits),
                               rtol=2e-3, atol=2e-3)
    np.testing.assert_allclose(np.asarray(hT), np.asarray(ref_hT),
                               rtol=2e-3, atol=2e-3)
    np.testing.assert_allclose(np.asarray(cT), np.asarray(ref_cT),
                               rtol=2e-3, atol=2e-3)

    # Looser sanity check vs the pure-f32 (PyTorch) semantics.
    f32_logits, (f32_hT, f32_cT) = decoder_reference(
        x_ids, (h0, c0), params, mixed=False)
    np.testing.assert_allclose(np.asarray(logits), np.asarray(f32_logits),
                               rtol=5e-2, atol=5e-2)
    np.testing.assert_allclose(np.asarray(hT), np.asarray(f32_hT),
                               rtol=5e-2, atol=5e-2)
    np.testing.assert_allclose(np.asarray(cT), np.asarray(f32_cT),
                               rtol=5e-2, atol=5e-2)

    assert logits.shape == (B, T, V)
    assert hT.shape == (1, B, H) and cT.shape == (1, B, H)
    print("KERNEL_OK")
</pallas_src>

<mosaic_0001>
module attributes {stable_mosaic.version = 11 : i64} {
  func.func @_lstm_kernel(%arg0: i32, %arg1: memref<128x128xbf16, #tpu.memory_space<vmem>>, %arg2: memref<16x128xf32, #tpu.memory_space<vmem>>, %arg3: memref<16x128xf32, #tpu.memory_space<vmem>>, %arg4: memref<128x512xbf16, #tpu.memory_space<vmem>>, %arg5: memref<128x512xbf16, #tpu.memory_space<vmem>>, %arg6: memref<1x512xf32, #tpu.memory_space<vmem>>, %arg7: memref<128x128xbf16, #tpu.memory_space<vmem>>, %arg8: memref<16x128xf32, #tpu.memory_space<vmem>>, %arg9: memref<16x128xf32, #tpu.memory_space<vmem>>, %arg10: memref<128x512xbf16, #tpu.memory_space<vmem>>, %arg11: memref<16x128xf32, #tpu.memory_space<vmem>>, %arg12: memref<16x128xf32, #tpu.memory_space<vmem>>) attributes {dimension_semantics = [#tpu.dimension_semantics<arbitrary>], iteration_bounds = array<i64: 1>, scalar_prefetch = 0 : i64, scratch_operands = 3 : i64, tpu.core_type = #tpu.core_type<tc>, window_params = [{transform_indices = @transform_0, window_bounds = array<i64: 128, 128>}, {pipeline_mode = #tpu.pipeline_mode<synchronous>, transform_indices = @transform_1, window_bounds = array<i64: 16, 128>}, {pipeline_mode = #tpu.pipeline_mode<synchronous>, transform_indices = @transform_2, window_bounds = array<i64: 16, 128>}, {pipeline_mode = #tpu.pipeline_mode<synchronous>, transform_indices = @transform_3, window_bounds = array<i64: 128, 512>}, {pipeline_mode = #tpu.pipeline_mode<synchronous>, transform_indices = @transform_4, window_bounds = array<i64: 128, 512>}, {pipeline_mode = #tpu.pipeline_mode<synchronous>, transform_indices = @transform_5, window_bounds = array<i64: 1, 512>}, {transform_indices = @transform_6, window_bounds = array<i64: 128, 128>}, {pipeline_mode = #tpu.pipeline_mode<synchronous>, transform_indices = @transform_7, window_bounds = array<i64: 16, 128>}, {pipeline_mode = #tpu.pipeline_mode<synchronous>, transform_indices = @transform_8, window_bounds = array<i64: 16, 128>}]} {
    %c0_i32 = arith.constant 0 : i32
    %0 = arith.cmpi eq, %arg0, %c0_i32 : i32
    %1 = arith.extui %0 : i1 to i32
    %c0_i32_0 = arith.constant 0 : i32
    %2 = arith.cmpi ne, %1, %c0_i32_0 : i32
    scf.if %2 {
      %c0_146 = arith.constant 0 : index
      %c0_147 = arith.constant 0 : index
      %342 = vector.load %arg2[%c0_146, %c0_147] : memref<16x128xf32, #tpu.memory_space<vmem>>, vector<16x128xf32>
      %c0_148 = arith.constant 0 : index
      %c0_149 = arith.constant 0 : index
      %343 = vector.load %arg11[%c0_148, %c0_149] : memref<16x128xf32, #tpu.memory_space<vmem>>, vector<16x128xf32>
      tpu.vector_store %arg11[%c0_148, %c0_149], %342 {strides = array<i32>} : memref<16x128xf32, #tpu.memory_space<vmem>>, vector<16x128xf32>,
      %c0_150 = arith.constant 0 : index
      %c0_151 = arith.constant 0 : index
      %344 = vector.load %arg3[%c0_150, %c0_151] : memref<16x128xf32, #tpu.memory_space<vmem>>, vector<16x128xf32>
      %c0_152 = arith.constant 0 : index
      %c0_153 = arith.constant 0 : index
      %345 = vector.load %arg12[%c0_152, %c0_153] : memref<16x128xf32, #tpu.memory_space<vmem>>, vector<16x128xf32>
      tpu.vector_store %arg12[%c0_152, %c0_153], %344 {strides = array<i32>} : memref<16x128xf32, #tpu.memory_space<vmem>>, vector<16x128xf32>,
    } else {
    }
    %c0 = arith.constant 0 : index
    %c0_1 = arith.constant 0 : index
    %3 = vector.load %arg1[%c0, %c0_1] : memref<128x128xbf16, #tpu.memory_space<vmem>>, vector<128x128xbf16>
    %c0_2 = arith.constant 0 : index
    %c0_3 = arith.constant 0 : index
    %4 = vector.load %arg4[%c0_2, %c0_3] : memref<128x512xbf16, #tpu.memory_space<vmem>>, vector<128x512xbf16>
    %cst = arith.constant dense<0.000000e+00> : vector<128x512xf32>
    %5 = tpu.matmul %3, %4, %cst {dimension_numbers = #tpu.dot_dimension_numbers<[1], [0], [0], [1], [0, 0, 1, 1], [], []>} : vector<128x128xbf16>, vector<128x512xbf16>, vector<128x512xf32> -> vector<128x512xf32>
    %c0_4 = arith.constant 0 : index
    %c0_5 = arith.constant 0 : index
    %6 = vector.load %arg6[%c0_4, %c0_5] : memref<1x512xf32, #tpu.memory_space<vmem>>, vector<1x512xf32>
    %7 = vector.broadcast %6 : vector<1x512xf32> to vector<128x512xf32>
    %8 = arith.addf %5, %7 : vector<128x512xf32>
    %9 = arith.truncf %8 : vector<128x512xf32> to vector<128x512xbf16>
    %c0_6 = arith.constant 0 : index
    %c0_7 = arith.constant 0 : index
    %10 = vector.load %arg10[%c0_6, %c0_7] : memref<128x512xbf16, #tpu.memory_space<vmem>>, vector<128x512xbf16>
    tpu.vector_store %arg10[%c0_6, %c0_7], %9 {strides = array<i32>} : memref<128x512xbf16, #tpu.memory_space<vmem>>, vector<128x512xbf16>,
    %c0_i32_8 = arith.constant 0 : i32
    %c16_i32 = arith.constant 16 : i32
    %11 = arith.muli %c0_i32_8, %c16_i32 : i32
    %12 = tpu.assume_multiple %11, 16 : i32
    %13 = arith.index_cast %12 : i32 to index
    %c0_9 = arith.constant 0 : index
    %14 = vector.load %arg10[%13, %c0_9] : memref<128x512xbf16, #tpu.memory_space<vmem>>, vector<16x512xbf16>
    %15 = arith.extf %14 : vector<16x512xbf16> to vector<16x512xf32>
    %c0_10 = arith.constant 0 : index
    %c0_11 = arith.constant 0 : index
    %16 = vector.load %arg11[%c0_10, %c0_11] : memref<16x128xf32, #tpu.memory_space<vmem>>, vector<16x128xf32>
    %17 = arith.truncf %16 : vector<16x128xf32> to vector<16x128xbf16>
    %c0_12 = arith.constant 0 : index
    %c0_13 = arith.constant 0 : index
    %18 = vector.load %arg5[%c0_12, %c0_13] : memref<128x512xbf16, #tpu.memory_space<vmem>>, vector<128x512xbf16>
    %cst_14 = arith.constant dense<0.000000e+00> : vector<16x512xf32>
    %19 = tpu.matmul %17, %18, %cst_14 {dimension_numbers = #tpu.dot_dimension_numbers<[1], [0], [0], [1], [0, 0, 1, 1], [], []>} : vector<16x128xbf16>, vector<128x512xbf16>, vector<16x512xf32> -> vector<16x512xf32>
    %20 = arith.addf %15, %19 : vector<16x512xf32>
    %21 = vector.extract_strided_slice %20 {offsets = [0, 0], sizes = [16, 128], strides = [1, 1]} : vector<16x512xf32> to vector<16x128xf32>
    %22 = arith.negf %21 : vector<16x128xf32>
    %23 = math.exp %22 : vector<16x128xf32>
    %cst_15 = arith.constant 1.000000e+00 : f32
    %24 = vector.broadcast %cst_15 : f32 to vector<16x128xf32>
    %25 = arith.addf %24, %23 : vector<16x128xf32>
    %26 = arith.divf %24, %25 : vector<16x128xf32>
    %27 = vector.extract_strided_slice %20 {offsets = [0, 128], sizes = [16, 128], strides = [1, 1]} : vector<16x512xf32> to vector<16x128xf32>
    %28 = arith.negf %27 : vector<16x128xf32>
    %29 = math.exp %28 : vector<16x128xf32>
    %cst_16 = arith.constant 1.000000e+00 : f32
    %30 = vector.broadcast %cst_16 : f32 to vector<16x128xf32>
    %31 = arith.addf %30, %29 : vector<16x128xf32>
    %32 = arith.divf %30, %31 : vector<16x128xf32>
    %33 = vector.extract_strided_slice %20 {offsets = [0, 256], sizes = [16, 128], strides = [1, 1]} : vector<16x512xf32> to vector<16x128xf32>
    %34 = math.tanh %33 : vector<16x128xf32>
    %35 = vector.extract_strided_slice %20 {offsets = [0, 384], sizes = [16, 128], strides = [1, 1]} : vector<16x512xf32> to vector<16x128xf32>
    %36 = arith.negf %35 : vector<16x128xf32>
    %37 = math.exp %36 : vector<16x128xf32>
    %cst_17 = arith.constant 1.000000e+00 : f32
    %38 = vector.broadcast %cst_17 : f32 to vector<16x128xf32>
    %39 = arith.addf %38, %37 : vector<16x128xf32>
    %40 = arith.divf %38, %39 : vector<16x128xf32>
    %c0_18 = arith.constant 0 : index
    %c0_19 = arith.constant 0 : index
    %41 = vector.load %arg12[%c0_18, %c0_19] : memref<16x128xf32, #tpu.memory_space<vmem>>, vector<16x128xf32>
    %42 = arith.mulf %32, %41 : vector<16x128xf32>
    %43 = arith.mulf %26, %34 : vector<16x128xf32>
    %44 = arith.addf %42, %43 : vector<16x128xf32>
    %45 = math.tanh %44 : vector<16x128xf32>
    %46 = arith.mulf %40, %45 : vector<16x128xf32>
    %c0_20 = arith.constant 0 : index
    %c0_21 = arith.constant 0 : index
    %47 = vector.load %arg12[%c0_20, %c0_21] : memref<16x128xf32, #tpu.memory_space<vmem>>, vector<16x128xf32>
    tpu.vector_store %arg12[%c0_20, %c0_21], %44 {strides = array<i32>} : memref<16x128xf32, #tpu.memory_space<vmem>>, vector<16x128xf32>,
    %c0_22 = arith.constant 0 : index
    %c0_23 = arith.constant 0 : index
    %48 = vector.load %arg11[%c0_22, %c0_23] : memref<16x128xf32, #tpu.memory_space<vmem>>, vector<16x128xf32>
    tpu.vector_store %arg11[%c0_22, %c0_23], %46 {strides = array<i32>} : memref<16x128xf32, #tpu.memory_space<vmem>>, vector<16x128xf32>,
    %49 = arith.truncf %46 : vector<16x128xf32> to vector<16x128xbf16>
    %50 = arith.index_cast %12 : i32 to index
    %c0_24 = arith.constant 0 : index
    %51 = vector.load %arg7[%50, %c0_24] : memref<128x128xbf16, #tpu.memory_space<vmem>>, vector<16x128xbf16>
    tpu.vector_store %arg7[%50, %c0_24], %49 {strides = array<i32>} : memref<128x128xbf16, #tpu.memory_space<vmem>>, vector<16x128xbf16>,
    %c1_i32 = arith.constant 1 : i32
    %c16_i32_25 = arith.constant 16 : i32
    %52 = arith.muli %c1_i32, %c16_i32_25 : i32
    %53 = tpu.assume_multiple %52, 16 : i32
    %54 = arith.index_cast %53 : i32 to index
    %c0_26 = arith.constant 0 : index
    %55 = vector.load %arg10[%54, %c0_26] : memref<128x512xbf16, #tpu.memory_space<vmem>>, vector<16x512xbf16>
    %56 = arith.extf %55 : vector<16x512xbf16> to vector<16x512xf32>
    %c0_27 = arith.constant 0 : index
    %c0_28 = arith.constant 0 : index
    %57 = vector.load %arg11[%c0_27, %c0_28] : memref<16x128xf32, #tpu.memory_space<vmem>>, vector<16x128xf32>
    %58 = arith.truncf %57 : vector<16x128xf32> to vector<16x128xbf16>
    %c0_29 = arith.constant 0 : index
    %c0_30 = arith.constant 0 : index
    %59 = vector.load %arg5[%c0_29, %c0_30] : memref<128x512xbf16, #tpu.memory_space<vmem>>, vector<128x512xbf16>
    %cst_31 = arith.constant dense<0.000000e+00> : vector<16x512xf32>
    %60 = tpu.matmul %58, %59, %cst_31 {dimension_numbers = #tpu.dot_dimension_numbers<[1], [0], [0], [1], [0, 0, 1, 1], [], []>} : vector<16x128xbf16>, vector<128x512xbf16>, vector<16x512xf32> -> vector<16x512xf32>
    %61 = arith.addf %56, %60 : vector<16x512xf32>
    %62 = vector.extract_strided_slice %61 {offsets = [0, 0], sizes = [16, 128], strides = [1, 1]} : vector<16x512xf32> to vector<16x128xf32>
    %63 = arith.negf %62 : vector<16x128xf32>
    %64 = math.exp %63 : vector<16x128xf32>
    %cst_32 = arith.constant 1.000000e+00 : f32
    %65 = vector.broadcast %cst_32 : f32 to vector<16x128xf32>
    %66 = arith.addf %65, %64 : vector<16x128xf32>
    %67 = arith.divf %65, %66 : vector<16x128xf32>
    %68 = vector.extract_strided_slice %61 {offsets = [0, 128], sizes = [16, 128], strides = [1, 1]} : vector<16x512xf32> to vector<16x128xf32>
    %69 = arith.negf %68 : vector<16x128xf32>
    %70 = math.exp %69 : vector<16x128xf32>
    %cst_33 = arith.constant 1.000000e+00 : f32
    %71 = vector.broadcast %cst_33 : f32 to vector<16x128xf32>
    %72 = arith.addf %71, %70 : vector<16x128xf32>
    %73 = arith.divf %71, %72 : vector<16x128xf32>
    %74 = vector.extract_strided_slice %61 {offsets = [0, 256], sizes = [16, 128], strides = [1, 1]} : vector<16x512xf32> to vector<16x128xf32>
    %75 = math.tanh %74 : vector<16x128xf32>
    %76 = vector.extract_strided_slice %61 {offsets = [0, 384], sizes = [16, 128], strides = [1, 1]} : vector<16x512xf32> to vector<16x128xf32>
    %77 = arith.negf %76 : vector<16x128xf32>
    %78 = math.exp %77 : vector<16x128xf32>
    %cst_34 = arith.constant 1.000000e+00 : f32
    %79 = vector.broadcast %cst_34 : f32 to vector<16x128xf32>
    %80 = arith.addf %79, %78 : vector<16x128xf32>
    %81 = arith.divf %79, %80 : vector<16x128xf32>
    %c0_35 = arith.constant 0 : index
    %c0_36 = arith.constant 0 : index
    %82 = vector.load %arg12[%c0_35, %c0_36] : memref<16x128xf32, #tpu.memory_space<vmem>>, vector<16x128xf32>
    %83 = arith.mulf %73, %82 : vector<16x128xf32>
    %84 = arith.mulf %67, %75 : vector<16x128xf32>
    %85 = arith.addf %83, %84 : vector<16x128xf32>
    %86 = math.tanh %85 : vector<16x128xf32>
    %87 = arith.mulf %81, %86 : vector<16x128xf32>
    %c0_37 = arith.constant 0 : index
    %c0_38 = arith.constant 0 : index
    %88 = vector.load %arg12[%c0_37, %c0_38] : memref<16x128xf32, #tpu.memory_space<vmem>>, vector<16x128xf32>
    tpu.vector_store %arg12[%c0_37, %c0_38], %85 {strides = array<i32>} : memref<16x128xf32, #tpu.memory_space<vmem>>, vector<16x128xf32>,
    %c0_39 = arith.constant 0 : index
    %c0_40 = arith.constant 0 : index
    %89 = vector.load %arg11[%c0_39, %c0_40] : memref<16x128xf32, #tpu.memory_space<vmem>>, vector<16x128xf32>
    tpu.vector_store %arg11[%c0_39, %c0_40], %87 {strides = array<i32>} : memref<16x128xf32, #tpu.memory_space<vmem>>, vector<16x128xf32>,
    %90 = arith.truncf %87 : vector<16x128xf32> to vector<16x128xbf16>
    %91 = arith.index_cast %53 : i32 to index
    %c0_41 = arith.constant 0 : index
    %92 = vector.load %arg7[%91, %c0_41] : memref<128x128xbf16, #tpu.memory_space<vmem>>, vector<16x128xbf16>
    tpu.vector_store %arg7[%91, %c0_41], %90 {strides = array<i32>} : memref<128x128xbf16, #tpu.memory_space<vmem>>, vector<16x128xbf16>,
    %c2_i32 = arith.constant 2 : i32
    %c16_i32_42 = arith.constant 16 : i32
    %93 = arith.muli %c2_i32, %c16_i32_42 : i32
    %94 = tpu.assume_multiple %93, 16 : i32
    %95 = arith.index_cast %94 : i32 to index
    %c0_43 = arith.constant 0 : index
    %96 = vector.load %arg10[%95, %c0_43] : memref<128x512xbf16, #tpu.memory_space<vmem>>, vector<16x512xbf16>
    %97 = arith.extf %96 : vector<16x512xbf16> to vector<16x512xf32>
    %c0_44 = arith.constant 0 : index
    %c0_45 = arith.constant 0 : index
    %98 = vector.load %arg11[%c0_44, %c0_45] : memref<16x128xf32, #tpu.memory_space<vmem>>, vector<16x128xf32>
    %99 = arith.truncf %98 : vector<16x128xf32> to vector<16x128xbf16>
    %c0_46 = arith.constant 0 : index
    %c0_47 = arith.constant 0 : index
    %100 = vector.load %arg5[%c0_46, %c0_47] : memref<128x512xbf16, #tpu.memory_space<vmem>>, vector<128x512xbf16>
    %cst_48 = arith.constant dense<0.000000e+00> : vector<16x512xf32>
    %101 = tpu.matmul %99, %100, %cst_48 {dimension_numbers = #tpu.dot_dimension_numbers<[1], [0], [0], [1], [0, 0, 1, 1], [], []>} : vector<16x128xbf16>, vector<128x512xbf16>, vector<16x512xf32> -> vector<16x512xf32>
    %102 = arith.addf %97, %101 : vector<16x512xf32>
    %103 = vector.extract_strided_slice %102 {offsets = [0, 0], sizes = [16, 128], strides = [1, 1]} : vector<16x512xf32> to vector<16x128xf32>
    %104 = arith.negf %103 : vector<16x128xf32>
    %105 = math.exp %104 : vector<16x128xf32>
    %cst_49 = arith.constant 1.000000e+00 : f32
    %106 = vector.broadcast %cst_49 : f32 to vector<16x128xf32>
    %107 = arith.addf %106, %105 : vector<16x128xf32>
    %108 = arith.divf %106, %107 : vector<16x128xf32>
    %109 = vector.extract_strided_slice %102 {offsets = [0, 128], sizes = [16, 128], strides = [1, 1]} : vector<16x512xf32> to vector<16x128xf32>
    %110 = arith.negf %109 : vector<16x128xf32>
    %111 = math.exp %110 : vector<16x128xf32>
    %cst_50 = arith.constant 1.000000e+00 : f32
    %112 = vector.broadcast %cst_50 : f32 to vector<16x128xf32>
    %113 = arith.addf %112, %111 : vector<16x128xf32>
    %114 = arith.divf %112, %113 : vector<16x128xf32>
    %115 = vector.extract_strided_slice %102 {offsets = [0, 256], sizes = [16, 128], strides = [1, 1]} : vector<16x512xf32> to vector<16x128xf32>
    %116 = math.tanh %115 : vector<16x128xf32>
    %117 = vector.extract_strided_slice %102 {offsets = [0, 384], sizes = [16, 128], strides = [1, 1]} : vector<16x512xf32> to vector<16x128xf32>
    %118 = arith.negf %117 : vector<16x128xf32>
    %119 = math.exp %118 : vector<16x128xf32>
    %cst_51 = arith.constant 1.000000e+00 : f32
    %120 = vector.broadcast %cst_51 : f32 to vector<16x128xf32>
    %121 = arith.addf %120, %119 : vector<16x128xf32>
    %122 = arith.divf %120, %121 : vector<16x128xf32>
    %c0_52 = arith.constant 0 : index
    %c0_53 = arith.constant 0 : index
    %123 = vector.load %arg12[%c0_52, %c0_53] : memref<16x128xf32, #tpu.memory_space<vmem>>, vector<16x128xf32>
    %124 = arith.mulf %114, %123 : vector<16x128xf32>
    %125 = arith.mulf %108, %116 : vector<16x128xf32>
    %126 = arith.addf %124, %125 : vector<16x128xf32>
    %127 = math.tanh %126 : vector<16x128xf32>
    %128 = arith.mulf %122, %127 : vector<16x128xf32>
    %c0_54 = arith.constant 0 : index
    %c0_55 = arith.constant 0 : index
    %129 = vector.load %arg12[%c0_54, %c0_55] : memref<16x128xf32, #tpu.memory_space<vmem>>, vector<16x128xf32>
    tpu.vector_store %arg12[%c0_54, %c0_55], %126 {strides = array<i32>} : memref<16x128xf32, #tpu.memory_space<vmem>>, vector<16x128xf32>,
    %c0_56 = arith.constant 0 : index
    %c0_57 = arith.constant 0 : index
    %130 = vector.load %arg11[%c0_56, %c0_57] : memref<16x128xf32, #tpu.memory_space<vmem>>, vector<16x128xf32>
    tpu.vector_store %arg11[%c0_56, %c0_57], %128 {strides = array<i32>} : memref<16x128xf32, #tpu.memory_space<vmem>>, vector<16x128xf32>,
    %131 = arith.truncf %128 : vector<16x128xf32> to vector<16x128xbf16>
    %132 = arith.index_cast %94 : i32 to index
    %c0_58 = arith.constant 0 : index
    %133 = vector.load %arg7[%132, %c0_58] : memref<128x128xbf16, #tpu.memory_space<vmem>>, vector<16x128xbf16>
    tpu.vector_store %arg7[%132, %c0_58], %131 {strides = array<i32>} : memref<128x128xbf16, #tpu.memory_space<vmem>>, vector<16x128xbf16>,
    %c3_i32 = arith.constant 3 : i32
    %c16_i32_59 = arith.constant 16 : i32
    %134 = arith.muli %c3_i32, %c16_i32_59 : i32
    %135 = tpu.assume_multiple %134, 16 : i32
    %136 = arith.index_cast %135 : i32 to index
    %c0_60 = arith.constant 0 : index
    %137 = vector.load %arg10[%136, %c0_60] : memref<128x512xbf16, #tpu.memory_space<vmem>>, vector<16x512xbf16>
    %138 = arith.extf %137 : vector<16x512xbf16> to vector<16x512xf32>
    %c0_61 = arith.constant 0 : index
    %c0_62 = arith.constant 0 : index
    %139 = vector.load %arg11[%c0_61, %c0_62] : memref<16x128xf32, #tpu.memory_space<vmem>>, vector<16x128xf32>
    %140 = arith.truncf %139 : vector<16x128xf32> to vector<16x128xbf16>
    %c0_63 = arith.constant 0 : index
    %c0_64 = arith.constant 0 : index
    %141 = vector.load %arg5[%c0_63, %c0_64] : memref<128x512xbf16, #tpu.memory_space<vmem>>, vector<128x512xbf16>
    %cst_65 = arith.constant dense<0.000000e+00> : vector<16x512xf32>
    %142 = tpu.matmul %140, %141, %cst_65 {dimension_numbers = #tpu.dot_dimension_numbers<[1], [0], [0], [1], [0, 0, 1, 1], [], []>} : vector<16x128xbf16>, vector<128x512xbf16>, vector<16x512xf32> -> vector<16x512xf32>
    %143 = arith.addf %138, %142 : vector<16x512xf32>
    %144 = vector.extract_strided_slice %143 {offsets = [0, 0], sizes = [16, 128], strides = [1, 1]} : vector<16x512xf32> to vector<16x128xf32>
    %145 = arith.negf %144 : vector<16x128xf32>
    %146 = math.exp %145 : vector<16x128xf32>
    %cst_66 = arith.constant 1.000000e+00 : f32
    %147 = vector.broadcast %cst_66 : f32 to vector<16x128xf32>
    %148 = arith.addf %147, %146 : vector<16x128xf32>
    %149 = arith.divf %147, %148 : vector<16x128xf32>
    %150 = vector.extract_strided_slice %143 {offsets = [0, 128], sizes = [16, 128], strides = [1, 1]} : vector<16x512xf32> to vector<16x128xf32>
    %151 = arith.negf %150 : vector<16x128xf32>
    %152 = math.exp %151 : vector<16x128xf32>
    %cst_67 = arith.constant 1.000000e+00 : f32
    %153 = vector.broadcast %cst_67 : f32 to vector<16x128xf32>
    %154 = arith.addf %153, %152 : vector<16x128xf32>
    %155 = arith.divf %153, %154 : vector<16x128xf32>
    %156 = vector.extract_strided_slice %143 {offsets = [0, 256], sizes = [16, 128], strides = [1, 1]} : vector<16x512xf32> to vector<16x128xf32>
    %157 = math.tanh %156 : vector<16x128xf32>
    %158 = vector.extract_strided_slice %143 {offsets = [0, 384], sizes = [16, 128], strides = [1, 1]} : vector<16x512xf32> to vector<16x128xf32>
    %159 = arith.negf %158 : vector<16x128xf32>
    %160 = math.exp %159 : vector<16x128xf32>
    %cst_68 = arith.constant 1.000000e+00 : f32
    %161 = vector.broadcast %cst_68 : f32 to vector<16x128xf32>
    %162 = arith.addf %161, %160 : vector<16x128xf32>
    %163 = arith.divf %161, %162 : vector<16x128xf32>
    %c0_69 = arith.constant 0 : index
    %c0_70 = arith.constant 0 : index
    %164 = vector.load %arg12[%c0_69, %c0_70] : memref<16x128xf32, #tpu.memory_space<vmem>>, vector<16x128xf32>
    %165 = arith.mulf %155, %164 : vector<16x128xf32>
    %166 = arith.mulf %149, %157 : vector<16x128xf32>
    %167 = arith.addf %165, %166 : vector<16x128xf32>
    %168 = math.tanh %167 : vector<16x128xf32>
    %169 = arith.mulf %163, %168 : vector<16x128xf32>
    %c0_71 = arith.constant 0 : index
    %c0_72 = arith.constant 0 : index
    %170 = vector.load %arg12[%c0_71, %c0_72] : memref<16x128xf32, #tpu.memory_space<vmem>>, vector<16x128xf32>
    tpu.vector_store %arg12[%c0_71, %c0_72], %167 {strides = array<i32>} : memref<16x128xf32, #tpu.memory_space<vmem>>, vector<16x128xf32>,
    %c0_73 = arith.constant 0 : index
    %c0_74 = arith.constant 0 : index
    %171 = vector.load %arg11[%c0_73, %c0_74] : memref<16x128xf32, #tpu.memory_space<vmem>>, vector<16x128xf32>
    tpu.vector_store %arg11[%c0_73, %c0_74], %169 {strides = array<i32>} : memref<16x128xf32, #tpu.memory_space<vmem>>, vector<16x128xf32>,
    %172 = arith.truncf %169 : vector<16x128xf32> to vector<16x128xbf16>
    %173 = arith.index_cast %135 : i32 to index
    %c0_75 = arith.constant 0 : index
    %174 = vector.load %arg7[%173, %c0_75] : memref<128x128xbf16, #tpu.memory_space<vmem>>, vector<16x128xbf16>
    tpu.vector_store %arg7[%173, %c0_75], %172 {strides = array<i32>} : memref<128x128xbf16, #tpu.memory_space<vmem>>, vector<16x128xbf16>,
    %c4_i32 = arith.constant 4 : i32
    %c16_i32_76 = arith.constant 16 : i32
    %175 = arith.muli %c4_i32, %c16_i32_76 : i32
    %176 = tpu.assume_multiple %175, 16 : i32
    %177 = arith.index_cast %176 : i32 to index
    %c0_77 = arith.constant 0 : index
    %178 = vector.load %arg10[%177, %c0_77] : memref<128x512xbf16, #tpu.memory_space<vmem>>, vector<16x512xbf16>
    %179 = arith.extf %178 : vector<16x512xbf16> to vector<16x512xf32>
    %c0_78 = arith.constant 0 : index
    %c0_79 = arith.constant 0 : index
    %180 = vector.load %arg11[%c0_78, %c0_79] : memref<16x128xf32, #tpu.memory_space<vmem>>, vector<16x128xf32>
    %181 = arith.truncf %180 : vector<16x128xf32> to vector<16x128xbf16>
    %c0_80 = arith.constant 0 : index
    %c0_81 = arith.constant 0 : index
    %182 = vector.load %arg5[%c0_80, %c0_81] : memref<128x512xbf16, #tpu.memory_space<vmem>>, vector<128x512xbf16>
    %cst_82 = arith.constant dense<0.000000e+00> : vector<16x512xf32>
    %183 = tpu.matmul %181, %182, %cst_82 {dimension_numbers = #tpu.dot_dimension_numbers<[1], [0], [0], [1], [0, 0, 1, 1], [], []>} : vector<16x128xbf16>, vector<128x512xbf16>, vector<16x512xf32> -> vector<16x512xf32>
    %184 = arith.addf %179, %183 : vector<16x512xf32>
    %185 = vector.extract_strided_slice %184 {offsets = [0, 0], sizes = [16, 128], strides = [1, 1]} : vector<16x512xf32> to vector<16x128xf32>
    %186 = arith.negf %185 : vector<16x128xf32>
    %187 = math.exp %186 : vector<16x128xf32>
    %cst_83 = arith.constant 1.000000e+00 : f32
    %188 = vector.broadcast %cst_83 : f32 to vector<16x128xf32>
    %189 = arith.addf %188, %187 : vector<16x128xf32>
    %190 = arith.divf %188, %189 : vector<16x128xf32>
    %191 = vector.extract_strided_slice %184 {offsets = [0, 128], sizes = [16, 128], strides = [1, 1]} : vector<16x512xf32> to vector<16x128xf32>
    %192 = arith.negf %191 : vector<16x128xf32>
    %193 = math.exp %192 : vector<16x128xf32>
    %cst_84 = arith.constant 1.000000e+00 : f32
    %194 = vector.broadcast %cst_84 : f32 to vector<16x128xf32>
    %195 = arith.addf %194, %193 : vector<16x128xf32>
    %196 = arith.divf %194, %195 : vector<16x128xf32>
    %197 = vector.extract_strided_slice %184 {offsets = [0, 256], sizes = [16, 128], strides = [1, 1]} : vector<16x512xf32> to vector<16x128xf32>
    %198 = math.tanh %197 : vector<16x128xf32>
    %199 = vector.extract_strided_slice %184 {offsets = [0, 384], sizes = [16, 128], strides = [1, 1]} : vector<16x512xf32> to vector<16x128xf32>
    %200 = arith.negf %199 : vector<16x128xf32>
    %201 = math.exp %200 : vector<16x128xf32>
    %cst_85 = arith.constant 1.000000e+00 : f32
    %202 = vector.broadcast %cst_85 : f32 to vector<16x128xf32>
    %203 = arith.addf %202, %201 : vector<16x128xf32>
    %204 = arith.divf %202, %203 : vector<16x128xf32>
    %c0_86 = arith.constant 0 : index
    %c0_87 = arith.constant 0 : index
    %205 = vector.load %arg12[%c0_86, %c0_87] : memref<16x128xf32, #tpu.memory_space<vmem>>, vector<16x128xf32>
    %206 = arith.mulf %196, %205 : vector<16x128xf32>
    %207 = arith.mulf %190, %198 : vector<16x128xf32>
    %208 = arith.addf %206, %207 : vector<16x128xf32>
    %209 = math.tanh %208 : vector<16x128xf32>
    %210 = arith.mulf %204, %209 : vector<16x128xf32>
    %c0_88 = arith.constant 0 : index
    %c0_89 = arith.constant 0 : index
    %211 = vector.load %arg12[%c0_88, %c0_89] : memref<16x128xf32, #tpu.memory_space<vmem>>, vector<16x128xf32>
    tpu.vector_store %arg12[%c0_88, %c0_89], %208 {strides = array<i32>} : memref<16x128xf32, #tpu.memory_space<vmem>>, vector<16x128xf32>,
    %c0_90 = arith.constant 0 : index
    %c0_91 = arith.constant 0 : index
    %212 = vector.load %arg11[%c0_90, %c0_91] : memref<16x128xf32, #tpu.memory_space<vmem>>, vector<16x128xf32>
    tpu.vector_store %arg11[%c0_90, %c0_91], %210 {strides = array<i32>} : memref<16x128xf32, #tpu.memory_space<vmem>>, vector<16x128xf32>,
    %213 = arith.truncf %210 : vector<16x128xf32> to vector<16x128xbf16>
    %214 = arith.index_cast %176 : i32 to index
    %c0_92 = arith.constant 0 : index
    %215 = vector.load %arg7[%214, %c0_92] : memref<128x128xbf16, #tpu.memory_space<vmem>>, vector<16x128xbf16>
    tpu.vector_store %arg7[%214, %c0_92], %213 {strides = array<i32>} : memref<128x128xbf16, #tpu.memory_space<vmem>>, vector<16x128xbf16>,
    %c5_i32 = arith.constant 5 : i32
    %c16_i32_93 = arith.constant 16 : i32
    %216 = arith.muli %c5_i32, %c16_i32_93 : i32
    %217 = tpu.assume_multiple %216, 16 : i32
    %218 = arith.index_cast %217 : i32 to index
    %c0_94 = arith.constant 0 : index
    %219 = vector.load %arg10[%218, %c0_94] : memref<128x512xbf16, #tpu.memory_space<vmem>>, vector<16x512xbf16>
    %220 = arith.extf %219 : vector<16x512xbf16> to vector<16x512xf32>
    %c0_95 = arith.constant 0 : index
    %c0_96 = arith.constant 0 : index
    %221 = vector.load %arg11[%c0_95, %c0_96] : memref<16x128xf32, #tpu.memory_space<vmem>>, vector<16x128xf32>
    %222 = arith.truncf %221 : vector<16x128xf32> to vector<16x128xbf16>
    %c0_97 = arith.constant 0 : index
    %c0_98 = arith.constant 0 : index
    %223 = vector.load %arg5[%c0_97, %c0_98] : memref<128x512xbf16, #tpu.memory_space<vmem>>, vector<128x512xbf16>
    %cst_99 = arith.constant dense<0.000000e+00> : vector<16x512xf32>
    %224 = tpu.matmul %222, %223, %cst_99 {dimension_numbers = #tpu.dot_dimension_numbers<[1], [0], [0], [1], [0, 0, 1, 1], [], []>} : vector<16x128xbf16>, vector<128x512xbf16>, vector<16x512xf32> -> vector<16x512xf32>
    %225 = arith.addf %220, %224 : vector<16x512xf32>
    %226 = vector.extract_strided_slice %225 {offsets = [0, 0], sizes = [16, 128], strides = [1, 1]} : vector<16x512xf32> to vector<16x128xf32>
    %227 = arith.negf %226 : vector<16x128xf32>
    %228 = math.exp %227 : vector<16x128xf32>
    %cst_100 = arith.constant 1.000000e+00 : f32
    %229 = vector.broadcast %cst_100 : f32 to vector<16x128xf32>
    %230 = arith.addf %229, %228 : vector<16x128xf32>
    %231 = arith.divf %229, %230 : vector<16x128xf32>
    %232 = vector.extract_strided_slice %225 {offsets = [0, 128], sizes = [16, 128], strides = [1, 1]} : vector<16x512xf32> to vector<16x128xf32>
    %233 = arith.negf %232 : vector<16x128xf32>
    %234 = math.exp %233 : vector<16x128xf32>
    %cst_101 = arith.constant 1.000000e+00 : f32
    %235 = vector.broadcast %cst_101 : f32 to vector<16x128xf32>
    %236 = arith.addf %235, %234 : vector<16x128xf32>
    %237 = arith.divf %235, %236 : vector<16x128xf32>
    %238 = vector.extract_strided_slice %225 {offsets = [0, 256], sizes = [16, 128], strides = [1, 1]} : vector<16x512xf32> to vector<16x128xf32>
    %239 = math.tanh %238 : vector<16x128xf32>
    %240 = vector.extract_strided_slice %225 {offsets = [0, 384], sizes = [16, 128], strides = [1, 1]} : vector<16x512xf32> to vector<16x128xf32>
    %241 = arith.negf %240 : vector<16x128xf32>
    %242 = math.exp %241 : vector<16x128xf32>
    %cst_102 = arith.constant 1.000000e+00 : f32
    %243 = vector.broadcast %cst_102 : f32 to vector<16x128xf32>
    %244 = arith.addf %243, %242 : vector<16x128xf32>
    %245 = arith.divf %243, %244 : vector<16x128xf32>
    %c0_103 = arith.constant 0 : index
    %c0_104 = arith.constant 0 : index
    %246 = vector.load %arg12[%c0_103, %c0_104] : memref<16x128xf32, #tpu.memory_space<vmem>>, vector<16x128xf32>
    %247 = arith.mulf %237, %246 : vector<16x128xf32>
    %248 = arith.mulf %231, %239 : vector<16x128xf32>
    %249 = arith.addf %247, %248 : vector<16x128xf32>
    %250 = math.tanh %249 : vector<16x128xf32>
    %251 = arith.mulf %245, %250 : vector<16x128xf32>
    %c0_105 = arith.constant 0 : index
    %c0_106 = arith.constant 0 : index
    %252 = vector.load %arg12[%c0_105, %c0_106] : memref<16x128xf32, #tpu.memory_space<vmem>>, vector<16x128xf32>
    tpu.vector_store %arg12[%c0_105, %c0_106], %249 {strides = array<i32>} : memref<16x128xf32, #tpu.memory_space<vmem>>, vector<16x128xf32>,
    %c0_107 = arith.constant 0 : index
    %c0_108 = arith.constant 0 : index
    %253 = vector.load %arg11[%c0_107, %c0_108] : memref<16x128xf32, #tpu.memory_space<vmem>>, vector<16x128xf32>
    tpu.vector_store %arg11[%c0_107, %c0_108], %251 {strides = array<i32>} : memref<16x128xf32, #tpu.memory_space<vmem>>, vector<16x128xf32>,
    %254 = arith.truncf %251 : vector<16x128xf32> to vector<16x128xbf16>
    %255 = arith.index_cast %217 : i32 to index
    %c0_109 = arith.constant 0 : index
    %256 = vector.load %arg7[%255, %c0_109] : memref<128x128xbf16, #tpu.memory_space<vmem>>, vector<16x128xbf16>
    tpu.vector_store %arg7[%255, %c0_109], %254 {strides = array<i32>} : memref<128x128xbf16, #tpu.memory_space<vmem>>, vector<16x128xbf16>,
    %c6_i32 = arith.constant 6 : i32
    %c16_i32_110 = arith.constant 16 : i32
    %257 = arith.muli %c6_i32, %c16_i32_110 : i32
    %258 = tpu.assume_multiple %257, 16 : i32
    %259 = arith.index_cast %258 : i32 to index
    %c0_111 = arith.constant 0 : index
    %260 = vector.load %arg10[%259, %c0_111] : memref<128x512xbf16, #tpu.memory_space<vmem>>, vector<16x512xbf16>
    %261 = arith.extf %260 : vector<16x512xbf16> to vector<16x512xf32>
    %c0_112 = arith.constant 0 : index
    %c0_113 = arith.constant 0 : index
    %262 = vector.load %arg11[%c0_112, %c0_113] : memref<16x128xf32, #tpu.memory_space<vmem>>, vector<16x128xf32>
    %263 = arith.truncf %262 : vector<16x128xf32> to vector<16x128xbf16>
    %c0_114 = arith.constant 0 : index
    %c0_115 = arith.constant 0 : index
    %264 = vector.load %arg5[%c0_114, %c0_115] : memref<128x512xbf16, #tpu.memory_space<vmem>>, vector<128x512xbf16>
    %cst_116 = arith.constant dense<0.000000e+00> : vector<16x512xf32>
    %265 = tpu.matmul %263, %264, %cst_116 {dimension_numbers = #tpu.dot_dimension_numbers<[1], [0], [0], [1], [0, 0, 1, 1], [], []>} : vector<16x128xbf16>, vector<128x512xbf16>, vector<16x512xf32> -> vector<16x512xf32>
    %266 = arith.addf %261, %265 : vector<16x512xf32>
    %267 = vector.extract_strided_slice %266 {offsets = [0, 0], sizes = [16, 128], strides = [1, 1]} : vector<16x512xf32> to vector<16x128xf32>
    %268 = arith.negf %267 : vector<16x128xf32>
    %269 = math.exp %268 : vector<16x128xf32>
    %cst_117 = arith.constant 1.000000e+00 : f32
    %270 = vector.broadcast %cst_117 : f32 to vector<16x128xf32>
    %271 = arith.addf %270, %269 : vector<16x128xf32>
    %272 = arith.divf %270, %271 : vector<16x128xf32>
    %273 = vector.extract_strided_slice %266 {offsets = [0, 128], sizes = [16, 128], strides = [1, 1]} : vector<16x512xf32> to vector<16x128xf32>
    %274 = arith.negf %273 : vector<16x128xf32>
    %275 = math.exp %274 : vector<16x128xf32>
    %cst_118 = arith.constant 1.000000e+00 : f32
    %276 = vector.broadcast %cst_118 : f32 to vector<16x128xf32>
    %277 = arith.addf %276, %275 : vector<16x128xf32>
    %278 = arith.divf %276, %277 : vector<16x128xf32>
    %279 = vector.extract_strided_slice %266 {offsets = [0, 256], sizes = [16, 128], strides = [1, 1]} : vector<16x512xf32> to vector<16x128xf32>
    %280 = math.tanh %279 : vector<16x128xf32>
    %281 = vector.extract_strided_slice %266 {offsets = [0, 384], sizes = [16, 128], strides = [1, 1]} : vector<16x512xf32> to vector<16x128xf32>
    %282 = arith.negf %281 : vector<16x128xf32>
    %283 = math.exp %282 : vector<16x128xf32>
    %cst_119 = arith.constant 1.000000e+00 : f32
    %284 = vector.broadcast %cst_119 : f32 to vector<16x128xf32>
    %285 = arith.addf %284, %283 : vector<16x128xf32>
    %286 = arith.divf %284, %285 : vector<16x128xf32>
    %c0_120 = arith.constant 0 : index
    %c0_121 = arith.constant 0 : index
    %287 = vector.load %arg12[%c0_120, %c0_121] : memref<16x128xf32, #tpu.memory_space<vmem>>, vector<16x128xf32>
    %288 = arith.mulf %278, %287 : vector<16x128xf32>
    %289 = arith.mulf %272, %280 : vector<16x128xf32>
    %290 = arith.addf %288, %289 : vector<16x128xf32>
    %291 = math.tanh %290 : vector<16x128xf32>
    %292 = arith.mulf %286, %291 : vector<16x128xf32>
    %c0_122 = arith.constant 0 : index
    %c0_123 = arith.constant 0 : index
    %293 = vector.load %arg12[%c0_122, %c0_123] : memref<16x128xf32, #tpu.memory_space<vmem>>, vector<16x128xf32>
    tpu.vector_store %arg12[%c0_122, %c0_123], %290 {strides = array<i32>} : memref<16x128xf32, #tpu.memory_space<vmem>>, vector<16x128xf32>,
    %c0_124 = arith.constant 0 : index
    %c0_125 = arith.constant 0 : index
    %294 = vector.load %arg11[%c0_124, %c0_125] : memref<16x128xf32, #tpu.memory_space<vmem>>, vector<16x128xf32>
    tpu.vector_store %arg11[%c0_124, %c0_125], %292 {strides = array<i32>} : memref<16x128xf32, #tpu.memory_space<vmem>>, vector<16x128xf32>,
    %295 = arith.truncf %292 : vector<16x128xf32> to vector<16x128xbf16>
    %296 = arith.index_cast %258 : i32 to index
    %c0_126 = arith.constant 0 : index
    %297 = vector.load %arg7[%296, %c0_126] : memref<128x128xbf16, #tpu.memory_space<vmem>>, vector<16x128xbf16>
    tpu.vector_store %arg7[%296, %c0_126], %295 {strides = array<i32>} : memref<128x128xbf16, #tpu.memory_space<vmem>>, vector<16x128xbf16>,
    %c7_i32 = arith.constant 7 : i32
    %c16_i32_127 = arith.constant 16 : i32
    %298 = arith.muli %c7_i32, %c16_i32_127 : i32
    %299 = tpu.assume_multiple %298, 16 : i32
    %300 = arith.index_cast %299 : i32 to index
    %c0_128 = arith.constant 0 : index
    %301 = vector.load %arg10[%300, %c0_128] : memref<128x512xbf16, #tpu.memory_space<vmem>>, vector<16x512xbf16>
    %302 = arith.extf %301 : vector<16x512xbf16> to vector<16x512xf32>
    %c0_129 = arith.constant 0 : index
    %c0_130 = arith.constant 0 : index
    %303 = vector.load %arg11[%c0_129, %c0_130] : memref<16x128xf32, #tpu.memory_space<vmem>>, vector<16x128xf32>
    %304 = arith.truncf %303 : vector<16x128xf32> to vector<16x128xbf16>
    %c0_131 = arith.constant 0 : index
    %c0_132 = arith.constant 0 : index
    %305 = vector.load %arg5[%c0_131, %c0_132] : memref<128x512xbf16, #tpu.memory_space<vmem>>, vector<128x512xbf16>
    %cst_133 = arith.constant dense<0.000000e+00> : vector<16x512xf32>
    %306 = tpu.matmul %304, %305, %cst_133 {dimension_numbers = #tpu.dot_dimension_numbers<[1], [0], [0], [1], [0, 0, 1, 1], [], []>} : vector<16x128xbf16>, vector<128x512xbf16>, vector<16x512xf32> -> vector<16x512xf32>
    %307 = arith.addf %302, %306 : vector<16x512xf32>
    %308 = vector.extract_strided_slice %307 {offsets = [0, 0], sizes = [16, 128], strides = [1, 1]} : vector<16x512xf32> to vector<16x128xf32>
    %309 = arith.negf %308 : vector<16x128xf32>
    %310 = math.exp %309 : vector<16x128xf32>
    %cst_134 = arith.constant 1.000000e+00 : f32
    %311 = vector.broadcast %cst_134 : f32 to vector<16x128xf32>
    %312 = arith.addf %311, %310 : vector<16x128xf32>
    %313 = arith.divf %311, %312 : vector<16x128xf32>
    %314 = vector.extract_strided_slice %307 {offsets = [0, 128], sizes = [16, 128], strides = [1, 1]} : vector<16x512xf32> to vector<16x128xf32>
    %315 = arith.negf %314 : vector<16x128xf32>
    %316 = math.exp %315 : vector<16x128xf32>
    %cst_135 = arith.constant 1.000000e+00 : f32
    %317 = vector.broadcast %cst_135 : f32 to vector<16x128xf32>
    %318 = arith.addf %317, %316 : vector<16x128xf32>
    %319 = arith.divf %317, %318 : vector<16x128xf32>
    %320 = vector.extract_strided_slice %307 {offsets = [0, 256], sizes = [16, 128], strides = [1, 1]} : vector<16x512xf32> to vector<16x128xf32>
    %321 = math.tanh %320 : vector<16x128xf32>
    %322 = vector.extract_strided_slice %307 {offsets = [0, 384], sizes = [16, 128], strides = [1, 1]} : vector<16x512xf32> to vector<16x128xf32>
    %323 = arith.negf %322 : vector<16x128xf32>
    %324 = math.exp %323 : vector<16x128xf32>
    %cst_136 = arith.constant 1.000000e+00 : f32
    %325 = vector.broadcast %cst_136 : f32 to vector<16x128xf32>
    %326 = arith.addf %325, %324 : vector<16x128xf32>
    %327 = arith.divf %325, %326 : vector<16x128xf32>
    %c0_137 = arith.constant 0 : index
    %c0_138 = arith.constant 0 : index
    %328 = vector.load %arg12[%c0_137, %c0_138] : memref<16x128xf32, #tpu.memory_space<vmem>>, vector<16x128xf32>
    %329 = arith.mulf %319, %328 : vector<16x128xf32>
    %330 = arith.mulf %313, %321 : vector<16x128xf32>
    %331 = arith.addf %329, %330 : vector<16x128xf32>
    %332 = math.tanh %331 : vector<16x128xf32>
    %333 = arith.mulf %327, %332 : vector<16x128xf32>
    %c0_139 = arith.constant 0 : index
    %c0_140 = arith.constant 0 : index
    %334 = vector.load %arg12[%c0_139, %c0_140] : memref<16x128xf32, #tpu.memory_space<vmem>>, vector<16x128xf32>
    tpu.vector_store %arg12[%c0_139, %c0_140], %331 {strides = array<i32>} : memref<16x128xf32, #tpu.memory_space<vmem>>, vector<16x128xf32>,
    %c0_141 = arith.constant 0 : index
    %c0_142 = arith.constant 0 : index
    %335 = vector.load %arg11[%c0_141, %c0_142] : memref<16x128xf32, #tpu.memory_space<vmem>>, vector<16x128xf32>
    tpu.vector_store %arg11[%c0_141, %c0_142], %333 {strides = array<i32>} : memref<16x128xf32, #tpu.memory_space<vmem>>, vector<16x128xf32>,
    %336 = arith.truncf %333 : vector<16x128xf32> to vector<16x128xbf16>
    %337 = arith.index_cast %299 : i32 to index
    %c0_143 = arith.constant 0 : index
    %338 = vector.load %arg7[%337, %c0_143] : memref<128x128xbf16, #tpu.memory_space<vmem>>, vector<16x128xbf16>
    tpu.vector_store %arg7[%337, %c0_143], %336 {strides = array<i32>} : memref<128x128xbf16, #tpu.memory_space<vmem>>, vector<16x128xbf16>,
    %c8_i32 = arith.constant 8 : i32
    %c0_i32_144 = arith.constant 0 : i32
    %339 = arith.cmpi eq, %arg0, %c0_i32_144 : i32
    %340 = arith.extui %339 : i1 to i32
    %c0_i32_145 = arith.constant 0 : i32
    %341 = arith.cmpi ne, %340, %c0_i32_145 : i32
    scf.if %341 {
      %c0_146 = arith.constant 0 : index
      %c0_147 = arith.constant 0 : index
      %342 = vector.load %arg11[%c0_146, %c0_147] : memref<16x128xf32, #tpu.memory_space<vmem>>, vector<16x128xf32>
      %c0_148 = arith.constant 0 : index
      %c0_149 = arith.constant 0 : index
      %343 = vector.load %arg8[%c0_148, %c0_149] : memref<16x128xf32, #tpu.memory_space<vmem>>, vector<16x128xf32>
      tpu.vector_store %arg8[%c0_148, %c0_149], %342 {strides = array<i32>} : memref<16x128xf32, #tpu.memory_space<vmem>>, vector<16x128xf32>,
      %c0_150 = arith.constant 0 : index
      %c0_151 = arith.constant 0 : index
      %344 = vector.load %arg12[%c0_150, %c0_151] : memref<16x128xf32, #tpu.memory_space<vmem>>, vector<16x128xf32>
      %c0_152 = arith.constant 0 : index
      %c0_153 = arith.constant 0 : index
      %345 = vector.load %arg9[%c0_152, %c0_153] : memref<16x128xf32, #tpu.memory_space<vmem>>, vector<16x128xf32>
      tpu.vector_store %arg9[%c0_152, %c0_153], %344 {strides = array<i32>} : memref<16x128xf32, #tpu.memory_space<vmem>>, vector<16x128xf32>,
    } else {
    }
    return
  }
  func.func @transform_0(%arg0: i32) -> (i32, i32) {
    %c0_i32 = arith.constant 0 : i32
    %c0_i32_0 = arith.constant 0 : i32
    return %arg0, %c0_i32 : i32, i32
  }
  func.func @transform_1(%arg0: i32) -> (i32, i32) {
    %c0_i32 = arith.constant 0 : i32
    %c0_i32_0 = arith.constant 0 : i32
    %c0_i32_1 = arith.constant 0 : i32
    return %c0_i32, %c0_i32_0 : i32, i32
  }
  func.func @transform_2(%arg0: i32) -> (i32, i32) {
    %c0_i32 = arith.constant 0 : i32
    %c0_i32_0 = arith.constant 0 : i32
    %c0_i32_1 = arith.constant 0 : i32
    return %c0_i32, %c0_i32_0 : i32, i32
  }
  func.func @transform_3(%arg0: i32) -> (i32, i32) {
    %c0_i32 = arith.constant 0 : i32
    %c0_i32_0 = arith.constant 0 : i32
    %c0_i32_1 = arith.constant 0 : i32
    return %c0_i32, %c0_i32_0 : i32, i32
  }
  func.func @transform_4(%arg0: i32) -> (i32, i32) {
    %c0_i32 = arith.constant 0 : i32
    %c0_i32_0 = arith.constant 0 : i32
    %c0_i32_1 = arith.constant 0 : i32
    return %c0_i32, %c0_i32_0 : i32, i32
  }
  func.func @transform_5(%arg0: i32) -> (i32, i32) {
    %c0_i32 = arith.constant 0 : i32
    %c0_i32_0 = arith.constant 0 : i32
    %c0_i32_1 = arith.constant 0 : i32
    return %c0_i32, %c0_i32_0 : i32, i32
  }
  func.func @transform_6(%arg0: i32) -> (i32, i32) {
    %c0_i32 = arith.constant 0 : i32
    %c0_i32_0 = arith.constant 0 : i32
    return %arg0, %c0_i32 : i32, i32
  }
  func.func @transform_7(%arg0: i32) -> (i32, i32) {
    %c0_i32 = arith.constant 0 : i32
    %c0_i32_0 = arith.constant 0 : i32
    %c0_i32_1 = arith.constant 0 : i32
    return %c0_i32, %c0_i32_0 : i32, i32
  }
  func.func @transform_8(%arg0: i32) -> (i32, i32) {
    %c0_i32 = arith.constant 0 : i32
    %c0_i32_0 = arith.constant 0 : i32
    %c0_i32_1 = arith.constant 0 : i32
    return %c0_i32, %c0_i32_0 : i32, i32
  }
}

module attributes {stable_mosaic.version = 11 : i64} {
  func.func @_proj_kernel(%arg0: i32, %arg1: i32, %arg2: memref<128x128xbf16, #tpu.memory_space<vmem>>, %arg3: memref<128x128xbf16, #tpu.memory_space<vmem>>, %arg4: memref<1x128xf32, #tpu.memory_space<vmem>>, %arg5: memref<128x128xf32, #tpu.memory_space<vmem>>) attributes {dimension_semantics = [#tpu.dimension_semantics<parallel>, #tpu.dimension_semantics<arbitrary>], iteration_bounds = array<i64: 1, 1>, scalar_prefetch = 0 : i64, scratch_operands = 0 : i64, tpu.core_type = #tpu.core_type<tc>, window_params = [{transform_indices = @transform_0, window_bounds = array<i64: 128, 128>}, {transform_indices = @transform_1, window_bounds = array<i64: 128, 128>}, {transform_indices = @transform_2, window_bounds = array<i64: 1, 128>}, {transform_indices = @transform_3, window_bounds = array<i64: 128, 128>}]} {
    %c0 = arith.constant 0 : index
    %c0_0 = arith.constant 0 : index
    %0 = vector.load %arg2[%c0, %c0_0] : memref<128x128xbf16, #tpu.memory_space<vmem>>, vector<128x128xbf16>
    %c0_1 = arith.constant 0 : index
    %c0_2 = arith.constant 0 : index
    %1 = vector.load %arg3[%c0_1, %c0_2] : memref<128x128xbf16, #tpu.memory_space<vmem>>, vector<128x128xbf16>
    %cst = arith.constant dense<0.000000e+00> : vector<128x128xf32>
    %2 = tpu.matmul %0, %1, %cst {dimension_numbers = #tpu.dot_dimension_numbers<[1], [0], [0], [1], [0, 0, 1, 1], [], []>} : vector<128x128xbf16>, vector<128x128xbf16>, vector<128x128xf32> -> vector<128x128xf32>
    %c0_3 = arith.constant 0 : index
    %c0_4 = arith.constant 0 : index
    %3 = vector.load %arg4[%c0_3, %c0_4] : memref<1x128xf32, #tpu.memory_space<vmem>>, vector<1x128xf32>
    %4 = vector.broadcast %3 : vector<1x128xf32> to vector<128x128xf32>
    %5 = arith.addf %2, %4 : vector<128x128xf32>
    %c0_5 = arith.constant 0 : index
    %c0_6 = arith.constant 0 : index
    %6 = vector.load %arg5[%c0_5, %c0_6] : memref<128x128xf32, #tpu.memory_space<vmem>>, vector<128x128xf32>
    tpu.vector_store %arg5[%c0_5, %c0_6], %5 {strides = array<i32>} : memref<128x128xf32, #tpu.memory_space<vmem>>, vector<128x128xf32>,
    return
  }
  func.func @transform_0(%arg0: i32, %arg1: i32) -> (i32, i32) {
    %c0_i32 = arith.constant 0 : i32
    %c0_i32_0 = arith.constant 0 : i32
    return %arg1, %c0_i32 : i32, i32
  }
  func.func @transform_1(%arg0: i32, %arg1: i32) -> (i32, i32) {
    %c0_i32 = arith.constant 0 : i32
    %c0_i32_0 = arith.constant 0 : i32
    return %c0_i32, %arg0 : i32, i32
  }
  func.func @transform_2(%arg0: i32, %arg1: i32) -> (i32, i32) {
    %c0_i32 = arith.constant 0 : i32
    %c0_i32_0 = arith.constant 0 : i32
    return %c0_i32, %arg0 : i32, i32
  }
  func.func @transform_3(%arg0: i32, %arg1: i32) -> (i32, i32) {
    %c0_i32 = arith.constant 0 : i32
    return %arg1, %arg0 : i32, i32
  }
}

</mosaic_0001>

<llo_original>
// kernel: decoder_forward.3
$region0: #{decoder_forward.3}
  #allocation0 [shape = 'u32[]', space=smem, size = 0x4, offset = 0x4, fixed_abs, tag = 'smem constant byte address 0x4 - core index']
  #allocation1 [shape = 'u32[72,128]{1,0:T(1,128)}', space=vmem, size = 0x9000, scoped, tag = 'internal scratch']
  %s0 = inlined_call_operand.vmem [shape: bf16[128,128], index: 0, kind: input, shape index: {}]
  %s1 = inlined_call_operand.vmem [shape: bf16[128,128], index: 1, kind: input, shape index: {}]
  %s2 = inlined_call_operand.vmem [shape: f32[1,128], index: 2, kind: input, shape index: {}]
  %s3 = inlined_call_operand.vmem [shape: f32[128,128], index: 3, kind: output, shape index: {}]
  %s4 = sld [smem:[#allocation0]]
  $region22: #{decoder_forward.3} parent=0
    _
  %s6 = ssub.s32 1, %s4
  %s7 = scalar_select 0, %s6, %s4
  // Predicated region
  $region2: #{decoder_forward.3} parent=0 // pred_check
    _
  $region3: #{decoder_forward.3} parent=0 // pred_check_branch
    %9 = sbr.rel (0) target = $region5
  $region4: #{decoder_forward.3} parent=0 // pred_region
    _
  $region5: #{decoder_forward.3} parent=0 // pred_fallthru
    _
  // Predicated region
  $region6: #{decoder_forward.3} parent=0 // pred_check
    _
  $region7: #{decoder_forward.3} parent=0 // pred_check_branch
    %11 = sbr.rel (0) target = $region9
  $region8: #{decoder_forward.3} parent=0 // pred_region
    _
  $region9: #{decoder_forward.3} parent=0 // pred_fallthru
    _
  // Predicated region
  $region10: #{decoder_forward.3} parent=0 // pred_check
    _
  $region11: #{decoder_forward.3} parent=0 // pred_check_branch
    %13 = sbr.rel (0) target = $region13
  $region12: #{decoder_forward.3} parent=0 // pred_region
    _
  $region13: #{decoder_forward.3} parent=0 // pred_fallthru
    _
  %v14 = vld [vmem:[%s0] sm:$0xf]
  %v15 = vld [vmem:[%s0 + $0x4] sm:$0xf]
  %v16 = vld [vmem:[%s0 + $0x8] sm:$0xf]
  %v17 = vld [vmem:[%s0 + $0xc] sm:$0xf]
  %v18 = vld [vmem:[%s0 + $0x10] sm:$0xf]
  %v19 = vld [vmem:[%s0 + $0x14] sm:$0xf]
  %v20 = vld [vmem:[%s0 + $0x18] sm:$0xf]
  %v21 = vld [vmem:[%s0 + $0x1c] sm:$0xf]
  %v22 = vld [vmem:[%s0 + $0x20] sm:$0xf]
  %v23 = vld [vmem:[%s0 + $0x24] sm:$0xf]
  %v24 = vld [vmem:[%s0 + $0x28] sm:$0xf]
  %v25 = vld [vmem:[%s0 + $0x2c] sm:$0xf]
  %v26 = vld [vmem:[%s0 + $0x30] sm:$0xf]
  %v27 = vld [vmem:[%s0 + $0x34] sm:$0xf]
  %v28 = vld [vmem:[%s0 + $0x38] sm:$0xf]
  %v29 = vld [vmem:[%s0 + $0x3c] sm:$0xf]
  %v30 = vld [vmem:[%s1] sm:$0xf]
  %v31 = vld [vmem:[%s1 + $0x4] sm:$0xf]
  %v32 = vld [vmem:[%s1 + $0x8] sm:$0xf]
  %v33 = vld [vmem:[%s1 + $0xc] sm:$0xf]
  %v34 = vld [vmem:[%s1 + $0x10] sm:$0xf]
  %v35 = vld [vmem:[%s1 + $0x14] sm:$0xf]
  %v36 = vld [vmem:[%s1 + $0x18] sm:$0xf]
  %v37 = vld [vmem:[%s1 + $0x1c] sm:$0xf]
  %v38 = vld [vmem:[%s1 + $0x20] sm:$0xf]
  %v39 = vld [vmem:[%s1 + $0x24] sm:$0xf]
  %v40 = vld [vmem:[%s1 + $0x28] sm:$0xf]
  %v41 = vld [vmem:[%s1 + $0x2c] sm:$0xf]
  %v42 = vld [vmem:[%s1 + $0x30] sm:$0xf]
  %v43 = vld [vmem:[%s1 + $0x34] sm:$0xf]
  %v44 = vld [vmem:[%s1 + $0x38] sm:$0xf]
  %v45 = vld [vmem:[%s1 + $0x3c] sm:$0xf]
  %v46 = vld [vmem:[%s2] sm:$0x1]
  %v48 = vperm.slane %v46, 0
  %v66 = vunpack.c.l.b16 %v14
  %v67 = vunpack.c.l.b16 %v15
  %v68 = vunpack.c.l.b16 %v16
  %v69 = vunpack.c.l.b16 %v17
  %v70 = vunpack.c.l.b16 %v18
  %v71 = vunpack.c.l.b16 %v19
  %v72 = vunpack.c.l.b16 %v20
  %v73 = vunpack.c.l.b16 %v21
  %v74 = vunpack.c.l.b16 %v22
  %v75 = vunpack.c.l.b16 %v23
  %v76 = vunpack.c.l.b16 %v24
  %v77 = vunpack.c.l.b16 %v25
  %v78 = vunpack.c.l.b16 %v26
  %v79 = vunpack.c.l.b16 %v27
  %v80 = vunpack.c.l.b16 %v28
  %v81 = vunpack.c.l.b16 %v29
  %v82 = vpack.c.b16 %v67, %v66
  %v83 = vpack.c.b16 %v69, %v68
  %v84 = vpack.c.b16 %v71, %v70
  %v85 = vpack.c.b16 %v73, %v72
  %v86 = vpack.c.b16 %v75, %v74
  %v87 = vpack.c.b16 %v77, %v76
  %v88 = vpack.c.b16 %v79, %v78
  %v89 = vpack.c.b16 %v81, %v80
  %v114 = vunpack.c.l.b16 %v30
  %v115 = vunpack.c.l.b16 %v31
  %v116 = vunpack.c.l.b16 %v32
  %v117 = vunpack.c.l.b16 %v33
  %v118 = vunpack.c.l.b16 %v34
  %v119 = vunpack.c.l.b16 %v35
  %v120 = vunpack.c.l.b16 %v36
  %v121 = vunpack.c.l.b16 %v37
  %v122 = vunpack.c.l.b16 %v38
  %v123 = vunpack.c.l.b16 %v39
  %v124 = vunpack.c.l.b16 %v40
  %v125 = vunpack.c.l.b16 %v41
  %v126 = vunpack.c.l.b16 %v42
  %v127 = vunpack.c.l.b16 %v43
  %v128 = vunpack.c.l.b16 %v44
  %v129 = vunpack.c.l.b16 %v45
  %v130 = vpack.c.b16 %v115, %v114
  %v131 = vpack.c.b16 %v117, %v116
  %v132 = vpack.c.b16 %v119, %v118
  %v133 = vpack.c.b16 %v121, %v120
  %v134 = vpack.c.b16 %v123, %v122
  %v135 = vpack.c.b16 %v125, %v124
  %v136 = vpack.c.b16 %v127, %v126
  %v137 = vpack.c.b16 %v129, %v128
  %146 = vmatpush.bf16.msra.mxu0 %v137
  %147 = vmatpush.bf16.msra.mxu0 %v136
  %148 = vmatpush.bf16.msra.mxu0 %v135
  %149 = vmatpush.bf16.msra.mxu0 %v134
  %150 = vmatpush.bf16.msra.mxu0 %v133
  %151 = vmatpush.bf16.msra.mxu0 %v132
  %152 = vmatpush.bf16.msra.mxu0 %v131
  %153 = vmatpush.bf16.msra.mxu0 %v130
  %154 = vmatmul.bf16.gmra.mxu0 %v82
  %v155 = vpop.f32.mrf.mxu0
  %v156 = vadd.f32 %v48, %v155
  %v157 = vpop.f32.mrf.mxu0
  %v158 = vadd.f32 %v48, %v157
  %159 = vmatmul.bf16.gmra.mxu0 %v83
  %v160 = vpop.f32.mrf.mxu0
  %v161 = vadd.f32 %v48, %v160
  %v162 = vpop.f32.mrf.mxu0
  %v163 = vadd.f32 %v48, %v162
  %164 = vmatmul.bf16.gmra.mxu0 %v84
  %v165 = vpop.f32.mrf.mxu0
  %v166 = vadd.f32 %v48, %v165
  %v167 = vpop.f32.mrf.mxu0
  %v168 = vadd.f32 %v48, %v167
  %169 = vmatmul.bf16.gmra.mxu0 %v85
  %v170 = vpop.f32.mrf.mxu0
  %v171 = vadd.f32 %v48, %v170
  %v172 = vpop.f32.mrf.mxu0
  %v173 = vadd.f32 %v48, %v172
  %174 = vmatmul.bf16.gmra.mxu0 %v86
  %v175 = vpop.f32.mrf.mxu0
  %v176 = vadd.f32 %v48, %v175
  %v177 = vpop.f32.mrf.mxu0
  %v178 = vadd.f32 %v48, %v177
  %179 = vmatmul.bf16.gmra.mxu0 %v87
  %v180 = vpop.f32.mrf.mxu0
  %v181 = vadd.f32 %v48, %v180
  %v182 = vpop.f32.mrf.mxu0
  %v183 = vadd.f32 %v48, %v182
  %184 = vmatmul.bf16.gmra.mxu0 %v88
  %v185 = vpop.f32.mrf.mxu0
  %v186 = vadd.f32 %v48, %v185
  %v187 = vpop.f32.mrf.mxu0
  %v188 = vadd.f32 %v48, %v187
  %189 = vmatmul.bf16.gmra.mxu0 %v89
  %v190 = vpop.f32.mrf.mxu0
  %v191 = vadd.f32 %v48, %v190
  %v192 = vpop.f32.mrf.mxu0
  %v193 = vadd.f32 %v48, %v192
  %194 = vdwg.mxu0
  %195 = vst [vmem:[%s3] sm:$0xff] %v156
  %196 = vst [vmem:[%s3 + $0x8] sm:$0xff] %v158
  %197 = vst [vmem:[%s3 + $0x10] sm:$0xff] %v161
  %198 = vst [vmem:[%s3 + $0x18] sm:$0xff] %v163
  %199 = vst [vmem:[%s3 + $0x20] sm:$0xff] %v166
  %200 = vst [vmem:[%s3 + $0x28] sm:$0xff] %v168
  %201 = vst [vmem:[%s3 + $0x30] sm:$0xff] %v171
  %202 = vst [vmem:[%s3 + $0x38] sm:$0xff] %v173
  %203 = vst [vmem:[%s3 + $0x40] sm:$0xff] %v176
  %204 = vst [vmem:[%s3 + $0x48] sm:$0xff] %v178
  %205 = vst [vmem:[%s3 + $0x50] sm:$0xff] %v181
  %206 = vst [vmem:[%s3 + $0x58] sm:$0xff] %v183
  %207 = vst [vmem:[%s3 + $0x60] sm:$0xff] %v186
  %208 = vst [vmem:[%s3 + $0x68] sm:$0xff] %v188
  %209 = vst [vmem:[%s3 + $0x70] sm:$0xff] %v191
  %210 = vst [vmem:[%s3 + $0x78] sm:$0xff] %v193
  // Predicated region
  $region14: #{decoder_forward.3} parent=0 // pred_check
    _
  $region15: #{decoder_forward.3} parent=0 // pred_check_branch
    %212 = sbr.rel (0) target = $region17
  $region16: #{decoder_forward.3} parent=0 // pred_region
    _
  $region17: #{decoder_forward.3} parent=0 // pred_fallthru
    _
  // Predicated region
  $region18: #{decoder_forward.3} parent=0 // pred_check
    _
  $region19: #{decoder_forward.3} parent=0 // pred_check_branch
    %214 = sbr.rel (0) target = $region21
  $region20: #{decoder_forward.3} parent=0 // pred_region
    _
  $region21: #{decoder_forward.3} parent=0 // pred_fallthru
    _

// kernel: decoder_forward.2
$region0: #{decoder_forward.2}
  #allocation0 [shape = 'u32[]', space=smem, size = 0x4, offset = 0x4, fixed_abs, tag = 'smem constant byte address 0x4 - core index']
  #allocation1 [shape = 'u32[72,128]{1,0:T(1,128)}', space=vmem, size = 0x9000, scoped, tag = 'internal scratch']
  #allocation2 [shape = 'bf16[128,512]{1,0:T(8,128)(2,1)}', space=vmem, size = 0x20000, scoped, tag = 'scratch operand']
  #allocation3 [shape = 'f32[16,128]{1,0:T(8,128)}', space=vmem, size = 0x2000, scoped, tag = 'scratch operand']
  #allocation4 [shape = 'f32[16,128]{1,0:T(8,128)}', space=vmem, size = 0x2000, scoped, tag = 'scratch operand']
  %s0 = inlined_call_operand.vmem [shape: bf16[128,128], index: 0, kind: input, shape index: {}]
  %s1 = inlined_call_operand.vmem [shape: f32[16,128], index: 1, kind: input, shape index: {}]
  %s2 = inlined_call_operand.vmem [shape: f32[16,128], index: 2, kind: input, shape index: {}]
  %s3 = inlined_call_operand.vmem [shape: bf16[128,512], index: 3, kind: input, shape index: {}]
  %s4 = inlined_call_operand.vmem [shape: bf16[128,512], index: 4, kind: input, shape index: {}]
  %s5 = inlined_call_operand.vmem [shape: f32[1,512], index: 5, kind: input, shape index: {}]
  %s6 = inlined_call_operand.vmem [shape: bf16[128,128], index: 6, kind: output, shape index: {0}]
  %s7 = inlined_call_operand.vmem [shape: f32[16,128], index: 7, kind: output, shape index: {1}]
  %s8 = inlined_call_operand.vmem [shape: f32[16,128], index: 8, kind: output, shape index: {2}]
  %9 = xla_tuple %s6, %s7, %s8
  %s10 = sld [smem:[#allocation0]]
  $region58: #{decoder_forward.2} parent=0
    _
  %s12 = ssub.s32 1, %s10
  %s13 = scalar_select 0, %s12, %s10
  // Predicated region
  $region2: #{decoder_forward.2} parent=0 // pred_check
    _
  $region3: #{decoder_forward.2} parent=0 // pred_check_branch
    %15 = sbr.rel (0) target = $region5
  $region4: #{decoder_forward.2} parent=0 // pred_region
    _
  $region5: #{decoder_forward.2} parent=0 // pred_fallthru
    _
  // Predicated region
  $region6: #{decoder_forward.2} parent=0 // pred_check
    _
  $region7: #{decoder_forward.2} parent=0 // pred_check_branch
    %17 = sbr.rel (0) target = $region9
  $region8: #{decoder_forward.2} parent=0 // pred_region
    _
  $region9: #{decoder_forward.2} parent=0 // pred_fallthru
    _
  // Predicated region
  $region10: #{decoder_forward.2} parent=0 // pred_check
    _
  $region11: #{decoder_forward.2} parent=0 // pred_check_branch
    %19 = sbr.rel (0) target = $region13
  $region12: #{decoder_forward.2} parent=0 // pred_region
    _
  $region13: #{decoder_forward.2} parent=0 // pred_fallthru
    _
  // Predicated region
  $region14: #{decoder_forward.2} parent=0 // pred_check
    _
  $region15: #{decoder_forward.2} parent=0 // pred_check_branch
    %21 = sbr.rel (0) target = $region17
  $region16: #{decoder_forward.2} parent=0 // pred_region
    _
  $region17: #{decoder_forward.2} parent=0 // pred_fallthru
    _
  // Predicated region
  $region18: #{decoder_forward.2} parent=0 // pred_check
    _
  $region19: #{decoder_forward.2} parent=0 // pred_check_branch
    %23 = sbr.rel (0) target = $region21
  $region20: #{decoder_forward.2} parent=0 // pred_region
    _
  $region21: #{decoder_forward.2} parent=0 // pred_fallthru
    _
  // Predicated region
  $region22: #{decoder_forward.2} parent=0 // pred_check
    _
  $region23: #{decoder_forward.2} parent=0 // pred_check_branch
    %25 = sbr.rel (0) target = $region25
  $region24: #{decoder_forward.2} parent=0 // pred_region
    _
  $region25: #{decoder_forward.2} parent=0 // pred_fallthru
    _
  %p26 = scmp.eq.s32.totalorder 0, 0
  // Predicated region
  $region26: #{decoder_forward.2} parent=0 // pred_check
    %p27 = pneg %p26
  $region27: #{decoder_forward.2} parent=0 // pred_check_branch
    %29 = sbr.rel (%p27) target = $region29
  $region28: #{decoder_forward.2} parent=0 // pred_region
    %v30 = vld [vmem:[%s1] sm:$0xff]
    %v31 = vld [vmem:[%s1 + $0x8] sm:$0xff]
    %32 = vst [vmem:[#allocation3] sm:$0xff] %v30
    %33 = vst [vmem:[#allocation3 + $0x8] sm:$0xff] %v31
    %v34 = vld [vmem:[%s2] sm:$0xff]
    %v35 = vld [vmem:[%s2 + $0x8] sm:$0xff]
    %36 = vst [vmem:[#allocation4] sm:$0xff] %v34
    %37 = vst [vmem:[#allocation4 + $0x8] sm:$0xff] %v35
  $region29: #{decoder_forward.2} parent=0 // pred_fallthru
    _
  %v38 = vld [vmem:[%s0] sm:$0xf]
  %v39 = vld [vmem:[%s0 + $0x4] sm:$0xf]
  %v40 = vld [vmem:[%s0 + $0x8] sm:$0xf]
  %v41 = vld [vmem:[%s0 + $0xc] sm:$0xf]
  %v42 = vld [vmem:[%s0 + $0x10] sm:$0xf]
  %v43 = vld [vmem:[%s0 + $0x14] sm:$0xf]
  %v44 = vld [vmem:[%s0 + $0x18] sm:$0xf]
  %v45 = vld [vmem:[%s0 + $0x1c] sm:$0xf]
  %v46 = vld [vmem:[%s0 + $0x20] sm:$0xf]
  %v47 = vld [vmem:[%s0 + $0x24] sm:$0xf]
  %v48 = vld [vmem:[%s0 + $0x28] sm:$0xf]
  %v49 = vld [vmem:[%s0 + $0x2c] sm:$0xf]
  %v50 = vld [vmem:[%s0 + $0x30] sm:$0xf]
  %v51 = vld [vmem:[%s0 + $0x34] sm:$0xf]
  %v52 = vld [vmem:[%s0 + $0x38] sm:$0xf]
  %v53 = vld [vmem:[%s0 + $0x3c] sm:$0xf]
  %v54 = vld [vmem:[%s3] sm:$0xff]
  %v55 = vld [vmem:[%s3 + $0x8] sm:$0xff]
  %v56 = vld [vmem:[%s3 + $0x10] sm:$0xff]
  %v57 = vld [vmem:[%s3 + $0x18] sm:$0xff]
  %v58 = vld [vmem:[%s3 + $0x20] sm:$0xff]
  %v59 = vld [vmem:[%s3 + $0x28] sm:$0xff]
  %v60 = vld [vmem:[%s3 + $0x30] sm:$0xff]
  %v61 = vld [vmem:[%s3 + $0x38] sm:$0xff]
  %v62 = vld [vmem:[%s3 + $0x40] sm:$0xff]
  %v63 = vld [vmem:[%s3 + $0x48] sm:$0xff]
  %v64 = vld [vmem:[%s3 + $0x50] sm:$0xff]
  %v65 = vld [vmem:[%s3 + $0x58] sm:$0xff]
  %v66 = vld [vmem:[%s3 + $0x60] sm:$0xff]
  %v67 = vld [vmem:[%s3 + $0x68] sm:$0xff]
  %v68 = vld [vmem:[%s3 + $0x70] sm:$0xff]
  %v69 = vld [vmem:[%s3 + $0x78] sm:$0xff]
  %v70 = vld [vmem:[%s3 + $0x80] sm:$0xff]
  %v71 = vld [vmem:[%s3 + $0x88] sm:$0xff]
  %v72 = vld [vmem:[%s3 + $0x90] sm:$0xff]
  %v73 = vld [vmem:[%s3 + $0x98] sm:$0xff]
  %v74 = vld [vmem:[%s3 + $0xa0] sm:$0xff]
  %v75 = vld [vmem:[%s3 + $0xa8] sm:$0xff]
  %v76 = vld [vmem:[%s3 + $0xb0] sm:$0xff]
  %v77 = vld [vmem:[%s3 + $0xb8] sm:$0xff]
  %v78 = vld [vmem:[%s3 + $0xc0] sm:$0xff]
  %v79 = vld [vmem:[%s3 + $0xc8] sm:$0xff]
  %v80 = vld [vmem:[%s3 + $0xd0] sm:$0xff]
  %v81 = vld [vmem:[%s3 + $0xd8] sm:$0xff]
  %v82 = vld [vmem:[%s3 + $0xe0] sm:$0xff]
  %v83 = vld [vmem:[%s3 + $0xe8] sm:$0xff]
  %v84 = vld [vmem:[%s3 + $0xf0] sm:$0xff]
  %v85 = vld [vmem:[%s3 + $0xf8] sm:$0xff]
  %v86 = vld [vmem:[%s5] sm:$0xf]
  %v88 = vperm.slane %v86, 0
  %v89 = vperm.slane %v86, 1
  %v90 = vperm.slane %v86, 2
  %v91 = vperm.slane %v86, 3
  %v112 = vunpack.c.l.b16 %v38
  %v113 = vunpack.c.l.b16 %v39
  %v114 = vunpack.c.l.b16 %v40
  %v115 = vunpack.c.l.b16 %v41
  %v116 = vunpack.c.l.b16 %v42
  %v117 = vunpack.c.l.b16 %v43
  %v118 = vunpack.c.l.b16 %v44
  %v119 = vunpack.c.l.b16 %v45
  %v120 = vunpack.c.l.b16 %v46
  %v121 = vunpack.c.l.b16 %v47
  %v122 = vunpack.c.l.b16 %v48
  %v123 = vunpack.c.l.b16 %v49
  %v124 = vunpack.c.l.b16 %v50
  %v125 = vunpack.c.l.b16 %v51
  %v126 = vunpack.c.l.b16 %v52
  %v127 = vunpack.c.l.b16 %v53
  %v128 = vpack.c.b16 %v113, %v112
  %v129 = vpack.c.b16 %v115, %v114
  %v130 = vpack.c.b16 %v117, %v116
  %v131 = vpack.c.b16 %v119, %v118
  %v132 = vpack.c.b16 %v121, %v120
  %v133 = vpack.c.b16 %v123, %v122
  %v134 = vpack.c.b16 %v125, %v124
  %v135 = vpack.c.b16 %v127, %v126
  %v176 = vunpack.c.l.b16 %v54
  %v177 = vunpack.c.h.b16 %v54
  %v178 = vunpack.c.l.b16 %v55
  %v179 = vunpack.c.h.b16 %v55
  %v180 = vunpack.c.l.b16 %v56
  %v181 = vunpack.c.h.b16 %v56
  %v182 = vunpack.c.l.b16 %v57
  %v183 = vunpack.c.h.b16 %v57
  %v184 = vunpack.c.l.b16 %v58
  %v185 = vunpack.c.h.b16 %v58
  %v186 = vunpack.c.l.b16 %v59
  %v187 = vunpack.c.h.b16 %v59
  %v188 = vunpack.c.l.b16 %v60
  %v189 = vunpack.c.h.b16 %v60
  %v190 = vunpack.c.l.b16 %v61
  %v191 = vunpack.c.h.b16 %v61
  %v192 = vunpack.c.l.b16 %v62
  %v193 = vunpack.c.h.b16 %v62
  %v194 = vunpack.c.l.b16 %v63
  %v195 = vunpack.c.h.b16 %v63
  %v196 = vunpack.c.l.b16 %v64
  %v197 = vunpack.c.h.b16 %v64
  %v198 = vunpack.c.l.b16 %v65
  %v199 = vunpack.c.h.b16 %v65
  %v200 = vunpack.c.l.b16 %v66
  %v201 = vunpack.c.h.b16 %v66
  %v202 = vunpack.c.l.b16 %v67
  %v203 = vunpack.c.h.b16 %v67
  %v204 = vunpack.c.l.b16 %v68
  %v205 = vunpack.c.h.b16 %v68
  %v206 = vunpack.c.l.b16 %v69
  %v207 = vunpack.c.h.b16 %v69
  %v208 = vunpack.c.l.b16 %v70
  %v209 = vunpack.c.h.b16 %v70
  %v210 = vunpack.c.l.b16 %v71
  %v211 = vunpack.c.h.b16 %v71
  %v212 = vunpack.c.l.b16 %v72
  %v213 = vunpack.c.h.b16 %v72
  %v214 = vunpack.c.l.b16 %v73
  %v215 = vunpack.c.h.b16 %v73
  %v216 = vunpack.c.l.b16 %v74
  %v217 = vunpack.c.h.b16 %v74
  %v218 = vunpack.c.l.b16 %v75
  %v219 = vunpack.c.h.b16 %v75
  %v220 = vunpack.c.l.b16 %v76
  %v221 = vunpack.c.h.b16 %v76
  %v222 = vunpack.c.l.b16 %v77
  %v223 = vunpack.c.h.b16 %v77
  %v224 = vunpack.c.l.b16 %v78
  %v225 = vunpack.c.h.b16 %v78
  %v226 = vunpack.c.l.b16 %v79
  %v227 = vunpack.c.h.b16 %v79
  %v228 = vunpack.c.l.b16 %v80
  %v229 = vunpack.c.h.b16 %v80
  %v230 = vunpack.c.l.b16 %v81
  %v231 = vunpack.c.h.b16 %v81
  %v232 = vunpack.c.l.b16 %v82
  %v233 = vunpack.c.h.b16 %v82
  %v234 = vunpack.c.l.b16 %v83
  %v235 = vunpack.c.h.b16 %v83
  %v236 = vunpack.c.l.b16 %v84
  %v237 = vunpack.c.h.b16 %v84
  %v238 = vunpack.c.l.b16 %v85
  %v239 = vunpack.c.h.b16 %v85
  %v240 = vpack.c.b16 %v180, %v176
  %v241 = vpack.c.b16 %v181, %v177
  %v242 = vpack.c.b16 %v182, %v178
  %v243 = vpack.c.b16 %v183, %v179
  %v244 = vpack.c.b16 %v188, %v184
  %v245 = vpack.c.b16 %v189, %v185
  %v246 = vpack.c.b16 %v190, %v186
  %v247 = vpack.c.b16 %v191, %v187
  %v248 = vpack.c.b16 %v196, %v192
  %v249 = vpack.c.b16 %v197, %v193
  %v250 = vpack.c.b16 %v198, %v194
  %v251 = vpack.c.b16 %v199, %v195
  %v252 = vpack.c.b16 %v204, %v200
  %v253 = vpack.c.b16 %v205, %v201
  %v254 = vpack.c.b16 %v206, %v202
  %v255 = vpack.c.b16 %v207, %v203
  %v256 = vpack.c.b16 %v212, %v208
  %v257 = vpack.c.b16 %v213, %v209
  %v258 = vpack.c.b16 %v214, %v210
  %v259 = vpack.c.b16 %v215, %v211
  %v260 = vpack.c.b16 %v220, %v216
  %v261 = vpack.c.b16 %v221, %v217
  %v262 = vpack.c.b16 %v222, %v218
  %v263 = vpack.c.b16 %v223, %v219
  %v264 = vpack.c.b16 %v228, %v224
  %v265 = vpack.c.b16 %v229, %v225
  %v266 = vpack.c.b16 %v230, %v226
  %v267 = vpack.c.b16 %v231, %v227
  %v268 = vpack.c.b16 %v236, %v232
  %v269 = vpack.c.b16 %v237, %v233
  %v270 = vpack.c.b16 %v238, %v234
  %v271 = vpack.c.b16 %v239, %v235
  %304 = vmatpush.bf16.msra.mxu0 %v268
  %305 = vmatpush.bf16.msra.mxu0 %v264
  %306 = vmatpush.bf16.msra.mxu0 %v260
  %307 = vmatpush.bf16.msra.mxu0 %v256
  %308 = vmatpush.bf16.msra.mxu0 %v252
  %309 = vmatpush.bf16.msra.mxu0 %v248
  %310 = vmatpush.bf16.msra.mxu0 %v244
  %311 = vmatpush.bf16.msra.mxu0 %v240
  %312 = vmatmul.bf16.gmra.mxu0 %v128
  %v313 = vpop.f32.mrf.mxu0
  %v314 = vadd.f32 %v88, %v313
  %v315 = vpop.f32.mrf.mxu0
  %v316 = vadd.f32 %v88, %v315
  %317 = vmatmul.bf16.gmra.mxu0 %v129
  %v318 = vpop.f32.mrf.mxu0
  %v319 = vadd.f32 %v88, %v318
  %v320 = vpop.f32.mrf.mxu0
  %v321 = vadd.f32 %v88, %v320
  %322 = vmatmul.bf16.gmra.mxu0 %v130
  %v323 = vpop.f32.mrf.mxu0
  %v324 = vadd.f32 %v88, %v323
  %v325 = vpop.f32.mrf.mxu0
  %v326 = vadd.f32 %v88, %v325
  %327 = vmatmul.bf16.gmra.mxu0 %v131
  %v328 = vpop.f32.mrf.mxu0
  %v329 = vadd.f32 %v88, %v328
  %v330 = vpop.f32.mrf.mxu0
  %v331 = vadd.f32 %v88, %v330
  %332 = vmatmul.bf16.gmra.mxu0 %v132
  %v333 = vpop.f32.mrf.mxu0
  %v334 = vadd.f32 %v88, %v333
  %v335 = vpop.f32.mrf.mxu0
  %v336 = vadd.f32 %v88, %v335
  %337 = vmatmul.bf16.gmra.mxu0 %v133
  %v338 = vpop.f32.mrf.mxu0
  %v339 = vadd.f32 %v88, %v338
  %v340 = vpop.f32.mrf.mxu0
  %v341 = vadd.f32 %v88, %v340
  %342 = vmatmul.bf16.gmra.mxu0 %v134
  %v343 = vpop.f32.mrf.mxu0
  %v344 = vadd.f32 %v88, %v343
  %v345 = vpop.f32.mrf.mxu0
  %v346 = vadd.f32 %v88, %v345
  %347 = vmatmul.bf16.gmra.mxu0 %v135
  %v348 = vpop.f32.mrf.mxu0
  %v349 = vadd.f32 %v88, %v348
  %v350 = vpop.f32.mrf.mxu0
  %v351 = vadd.f32 %v88, %v350
  %352 = vdwg.mxu0
  %353 = vmatpush.bf16.msra.mxu0 %v269
  %354 = vmatpush.bf16.msra.mxu0 %v265
  %355 = vmatpush.bf16.msra.mxu0 %v261
  %356 = vmatpush.bf16.msra.mxu0 %v257
  %357 = vmatpush.bf16.msra.mxu0 %v253
  %358 = vmatpush.bf16.msra.mxu0 %v249
  %359 = vmatpush.bf16.msra.mxu0 %v245
  %360 = vmatpush.bf16.msra.mxu0 %v241
  %361 = vmatmul.bf16.gmra.mxu0 %v128
  %v362 = vpop.f32.mrf.mxu0
  %v363 = vadd.f32 %v89, %v362
  %v364 = vpop.f32.mrf.mxu0
  %v365 = vadd.f32 %v89, %v364
  %366 = vmatmul.bf16.gmra.mxu0 %v129
  %v367 = vpop.f32.mrf.mxu0
  %v368 = vadd.f32 %v89, %v367
  %v369 = vpop.f32.mrf.mxu0
  %v370 = vadd.f32 %v89, %v369
  %371 = vmatmul.bf16.gmra.mxu0 %v130
  %v372 = vpop.f32.mrf.mxu0
  %v373 = vadd.f32 %v89, %v372
  %v374 = vpop.f32.mrf.mxu0
  %v375 = vadd.f32 %v89, %v374
  %376 = vmatmul.bf16.gmra.mxu0 %v131
  %v377 = vpop.f32.mrf.mxu0
  %v378 = vadd.f32 %v89, %v377
  %v379 = vpop.f32.mrf.mxu0
  %v380 = vadd.f32 %v89, %v379
  %381 = vmatmul.bf16.gmra.mxu0 %v132
  %v382 = vpop.f32.mrf.mxu0
  %v383 = vadd.f32 %v89, %v382
  %v384 = vpop.f32.mrf.mxu0
  %v385 = vadd.f32 %v89, %v384
  %386 = vmatmul.bf16.gmra.mxu0 %v133
  %v387 = vpop.f32.mrf.mxu0
  %v388 = vadd.f32 %v89, %v387
  %v389 = vpop.f32.mrf.mxu0
  %v390 = vadd.f32 %v89, %v389
  %391 = vmatmul.bf16.gmra.mxu0 %v134
  %v392 = vpop.f32.mrf.mxu0
  %v393 = vadd.f32 %v89, %v392
  %v394 = vpop.f32.mrf.mxu0
  %v395 = vadd.f32 %v89, %v394
  %396 = vmatmul.bf16.gmra.mxu0 %v135
  %v397 = vpop.f32.mrf.mxu0
  %v398 = vadd.f32 %v89, %v397
  %v399 = vpop.f32.mrf.mxu0
  %v400 = vadd.f32 %v89, %v399
  %401 = vdwg.mxu0
  %402 = vmatpush.bf16.msra.mxu0 %v270
  %403 = vmatpush.bf16.msra.mxu0 %v266
  %404 = vmatpush.bf16.msra.mxu0 %v262
  %405 = vmatpush.bf16.msra.mxu0 %v258
  %406 = vmatpush.bf16.msra.mxu0 %v254
  %407 = vmatpush.bf16.msra.mxu0 %v250
  %408 = vmatpush.bf16.msra.mxu0 %v246
  %409 = vmatpush.bf16.msra.mxu0 %v242
  %410 = vmatmul.bf16.gmra.mxu0 %v128
  %v411 = vpop.f32.mrf.mxu0
  %v412 = vadd.f32 %v90, %v411
  %v413 = vpop.f32.mrf.mxu0
  %v414 = vadd.f32 %v90, %v413
  %415 = vmatmul.bf16.gmra.mxu0 %v129
  %v416 = vpop.f32.mrf.mxu0
  %v417 = vadd.f32 %v90, %v416
  %v418 = vpop.f32.mrf.mxu0
  %v419 = vadd.f32 %v90, %v418
  %420 = vmatmul.bf16.gmra.mxu0 %v130
  %v421 = vpop.f32.mrf.mxu0
  %v422 = vadd.f32 %v90, %v421
  %v423 = vpop.f32.mrf.mxu0
  %v424 = vadd.f32 %v90, %v423
  %425 = vmatmul.bf16.gmra.mxu0 %v131
  %v426 = vpop.f32.mrf.mxu0
  %v427 = vadd.f32 %v90, %v426
  %v428 = vpop.f32.mrf.mxu0
  %v429 = vadd.f32 %v90, %v428
  %430 = vmatmul.bf16.gmra.mxu0 %v132
  %v431 = vpop.f32.mrf.mxu0
  %v432 = vadd.f32 %v90, %v431
  %v433 = vpop.f32.mrf.mxu0
  %v434 = vadd.f32 %v90, %v433
  %435 = vmatmul.bf16.gmra.mxu0 %v133
  %v436 = vpop.f32.mrf.mxu0
  %v437 = vadd.f32 %v90, %v436
  %v438 = vpop.f32.mrf.mxu0
  %v439 = vadd.f32 %v90, %v438
  %440 = vmatmul.bf16.gmra.mxu0 %v134
  %v441 = vpop.f32.mrf.mxu0
  %v442 = vadd.f32 %v90, %v441
  %v443 = vpop.f32.mrf.mxu0
  %v444 = vadd.f32 %v90, %v443
  %445 = vmatmul.bf16.gmra.mxu0 %v135
  %v446 = vpop.f32.mrf.mxu0
  %v447 = vadd.f32 %v90, %v446
  %v448 = vpop.f32.mrf.mxu0
  %v449 = vadd.f32 %v90, %v448
  %450 = vdwg.mxu0
  %451 = vmatpush.bf16.msra.mxu0 %v271
  %452 = vmatpush.bf16.msra.mxu0 %v267
  %453 = vmatpush.bf16.msra.mxu0 %v263
  %454 = vmatpush.bf16.msra.mxu0 %v259
  %455 = vmatpush.bf16.msra.mxu0 %v255
  %456 = vmatpush.bf16.msra.mxu0 %v251
  %457 = vmatpush.bf16.msra.mxu0 %v247
  %458 = vmatpush.bf16.msra.mxu0 %v243
  %459 = vmatmul.bf16.gmra.mxu0 %v128
  %v460 = vpop.f32.mrf.mxu0
  %v461 = vadd.f32 %v91, %v460
  %v462 = vpop.f32.mrf.mxu0
  %v463 = vadd.f32 %v91, %v462
  %464 = vmatmul.bf16.gmra.mxu0 %v129
  %v465 = vpop.f32.mrf.mxu0
  %v466 = vadd.f32 %v91, %v465
  %v467 = vpop.f32.mrf.mxu0
  %v468 = vadd.f32 %v91, %v467
  %469 = vmatmul.bf16.gmra.mxu0 %v130
  %v470 = vpop.f32.mrf.mxu0
  %v471 = vadd.f32 %v91, %v470
  %v472 = vpop.f32.mrf.mxu0
  %v473 = vadd.f32 %v91, %v472
  %474 = vmatmul.bf16.gmra.mxu0 %v131
  %v475 = vpop.f32.mrf.mxu0
  %v476 = vadd.f32 %v91, %v475
  %v477 = vpop.f32.mrf.mxu0
  %v478 = vadd.f32 %v91, %v477
  %479 = vmatmul.bf16.gmra.mxu0 %v132
  %v480 = vpop.f32.mrf.mxu0
  %v481 = vadd.f32 %v91, %v480
  %v482 = vpop.f32.mrf.mxu0
  %v483 = vadd.f32 %v91, %v482
  %484 = vmatmul.bf16.gmra.mxu0 %v133
  %v485 = vpop.f32.mrf.mxu0
  %v486 = vadd.f32 %v91, %v485
  %v487 = vpop.f32.mrf.mxu0
  %v488 = vadd.f32 %v91, %v487
  %489 = vmatmul.bf16.gmra.mxu0 %v134
  %v490 = vpop.f32.mrf.mxu0
  %v491 = vadd.f32 %v91, %v490
  %v492 = vpop.f32.mrf.mxu0
  %v493 = vadd.f32 %v91, %v492
  %494 = vmatmul.bf16.gmra.mxu0 %v135
  %v495 = vpop.f32.mrf.mxu0
  %v496 = vadd.f32 %v91, %v495
  %v497 = vpop.f32.mrf.mxu0
  %v498 = vadd.f32 %v91, %v497
  %499 = vdwg.mxu0
  %v500 = vpack.c.bf16 %v363, %v314
  %v501 = vpack.c.bf16 %v461, %v412
  %v502 = vpack.c.bf16 %v365, %v316
  %v503 = vpack.c.bf16 %v463, %v414
  %v504 = vpack.c.bf16 %v368, %v319
  %v505 = vpack.c.bf16 %v466, %v417
  %v506 = vpack.c.bf16 %v370, %v321
  %v507 = vpack.c.bf16 %v468, %v419
  %v508 = vpack.c.bf16 %v373, %v324
  %v509 = vpack.c.bf16 %v471, %v422
  %v510 = vpack.c.bf16 %v375, %v326
  %v511 = vpack.c.bf16 %v473, %v424
  %v512 = vpack.c.bf16 %v378, %v329
  %v513 = vpack.c.bf16 %v476, %v427
  %v514 = vpack.c.bf16 %v380, %v331
  %v515 = vpack.c.bf16 %v478, %v429
  %v516 = vpack.c.bf16 %v383, %v334
  %v517 = vpack.c.bf16 %v481, %v432
  %v518 = vpack.c.bf16 %v385, %v336
  %v519 = vpack.c.bf16 %v483, %v434
  %v520 = vpack.c.bf16 %v388, %v339
  %v521 = vpack.c.bf16 %v486, %v437
  %v522 = vpack.c.bf16 %v390, %v341
  %v523 = vpack.c.bf16 %v488, %v439
  %v524 = vpack.c.bf16 %v393, %v344
  %v525 = vpack.c.bf16 %v491, %v442
  %v526 = vpack.c.bf16 %v395, %v346
  %v527 = vpack.c.bf16 %v493, %v444
  %v528 = vpack.c.bf16 %v398, %v349
  %v529 = vpack.c.bf16 %v496, %v447
  %v530 = vpack.c.bf16 %v400, %v351
  %v531 = vpack.c.bf16 %v498, %v449
  %532 = vst [vmem:[#allocation2] sm:$0xff] %v500
  %533 = vst [vmem:[#allocation2 + $0x8] sm:$0xff] %v501
  %534 = vst [vmem:[#allocation2 + $0x10] sm:$0xff] %v502
  %535 = vst [vmem:[#allocation2 + $0x18] sm:$0xff] %v503
  %536 = vst [vmem:[#allocation2 + $0x20] sm:$0xff] %v504
  %537 = vst [vmem:[#allocation2 + $0x28] sm:$0xff] %v505
  %538 = vst [vmem:[#allocation2 + $0x30] sm:$0xff] %v506
  %539 = vst [vmem:[#allocation2 + $0x38] sm:$0xff] %v507
  %540 = vst [vmem:[#allocation2 + $0x40] sm:$0xff] %v508
  %541 = vst [vmem:[#allocation2 + $0x48] sm:$0xff] %v509
  %542 = vst [vmem:[#allocation2 + $0x50] sm:$0xff] %v510
  %543 = vst [vmem:[#allocation2 + $0x58] sm:$0xff] %v511
  %544 = vst [vmem:[#allocation2 + $0x60] sm:$0xff] %v512
  %545 = vst [vmem:[#allocation2 + $0x68] sm:$0xff] %v513
  %546 = vst [vmem:[#allocation2 + $0x70] sm:$0xff] %v514
  %547 = vst [vmem:[#allocation2 + $0x78] sm:$0xff] %v515
  %548 = vst [vmem:[#allocation2 + $0x80] sm:$0xff] %v516
  %549 = vst [vmem:[#allocation2 + $0x88] sm:$0xff] %v517
  %550 = vst [vmem:[#allocation2 + $0x90] sm:$0xff] %v518
  %551 = vst [vmem:[#allocation2 + $0x98] sm:$0xff] %v519
  %552 = vst [vmem:[#allocation2 + $0xa0] sm:$0xff] %v520
  %553 = vst [vmem:[#allocation2 + $0xa8] sm:$0xff] %v521
  %554 = vst [vmem:[#allocation2 + $0xb0] sm:$0xff] %v522
  %555 = vst [vmem:[#allocation2 + $0xb8] sm:$0xff] %v523
  %556 = vst [vmem:[#allocation2 + $0xc0] sm:$0xff] %v524
  %557 = vst [vmem:[#allocation2 + $0xc8] sm:$0xff] %v525
  %558 = vst [vmem:[#allocation2 + $0xd0] sm:$0xff] %v526
  %559 = vst [vmem:[#allocation2 + $0xd8] sm:$0xff] %v527
  %560 = vst [vmem:[#allocation2 + $0xe0] sm:$0xff] %v528
  %561 = vst [vmem:[#allocation2 + $0xe8] sm:$0xff] %v529
  %562 = vst [vmem:[#allocation2 + $0xf0] sm:$0xff] %v530
  %563 = vst [vmem:[#allocation2 + $0xf8] sm:$0xff] %v531
  %s564 = smul.u32 0, 4
  %s565 = smul.addr %s564, 4
  %s566 = scalar_lea.vmem [#allocation2], %s565
  %v567 = vld [vmem:[%s566] sm:$0xff]
  %v568 = vld [vmem:[%s566 + $0x8] sm:$0xff]
  %v569 = vld [vmem:[%s566 + $0x10] sm:$0xff]
  %v570 = vld [vmem:[%s566 + $0x18] sm:$0xff]
  %v571 = vunpack.c.l.bf16 %v567
  %v572 = vunpack.c.h.bf16 %v567
  %v573 = vunpack.c.l.bf16 %v568
  %v574 = vunpack.c.h.bf16 %v568
  %v575 = vunpack.c.l.bf16 %v569
  %v576 = vunpack.c.h.bf16 %v569
  %v577 = vunpack.c.l.bf16 %v570
  %v578 = vunpack.c.h.bf16 %v570
  %v579 = vld [vmem:[#allocation3] sm:$0xff]
  %v580 = vld [vmem:[#allocation3 + $0x8] sm:$0xff]
  %v581 = vpack.c.bf16 %v580, %v579
  %v582 = vld [vmem:[%s4] sm:$0xff]
  %v583 = vld [vmem:[%s4 + $0x8] sm:$0xff]
  %v584 = vld [vmem:[%s4 + $0x10] sm:$0xff]
  %v585 = vld [vmem:[%s4 + $0x18] sm:$0xff]
  %v586 = vld [vmem:[%s4 + $0x20] sm:$0xff]
  %v587 = vld [vmem:[%s4 + $0x28] sm:$0xff]
  %v588 = vld [vmem:[%s4 + $0x30] sm:$0xff]
  %v589 = vld [vmem:[%s4 + $0x38] sm:$0xff]
  %v590 = vld [vmem:[%s4 + $0x40] sm:$0xff]
  %v591 = vld [vmem:[%s4 + $0x48] sm:$0xff]
  %v592 = vld [vmem:[%s4 + $0x50] sm:$0xff]
  %v593 = vld [vmem:[%s4 + $0x58] sm:$0xff]
  %v594 = vld [vmem:[%s4 + $0x60] sm:$0xff]
  %v595 = vld [vmem:[%s4 + $0x68] sm:$0xff]
  %v596 = vld [vmem:[%s4 + $0x70] sm:$0xff]
  %v597 = vld [vmem:[%s4 + $0x78] sm:$0xff]
  %v598 = vld [vmem:[%s4 + $0x80] sm:$0xff]
  %v599 = vld [vmem:[%s4 + $0x88] sm:$0xff]
  %v600 = vld [vmem:[%s4 + $0x90] sm:$0xff]
  %v601 = vld [vmem:[%s4 + $0x98] sm:$0xff]
  %v602 = vld [vmem:[%s4 + $0xa0] sm:$0xff]
  %v603 = vld [vmem:[%s4 + $0xa8] sm:$0xff]
  %v604 = vld [vmem:[%s4 + $0xb0] sm:$0xff]
  %v605 = vld [vmem:[%s4 + $0xb8] sm:$0xff]
  %v606 = vld [vmem:[%s4 + $0xc0] sm:$0xff]
  %v607 = vld [vmem:[%s4 + $0xc8] sm:$0xff]
  %v608 = vld [vmem:[%s4 + $0xd0] sm:$0xff]
  %v609 = vld [vmem:[%s4 + $0xd8] sm:$0xff]
  %v610 = vld [vmem:[%s4 + $0xe0] sm:$0xff]
  %v611 = vld [vmem:[%s4 + $0xe8] sm:$0xff]
  %v612 = vld [vmem:[%s4 + $0xf0] sm:$0xff]
  %v613 = vld [vmem:[%s4 + $0xf8] sm:$0xff]
  %v646 = vunpack.c.l.b16 %v582
  %v647 = vunpack.c.h.b16 %v582
  %v648 = vunpack.c.l.b16 %v583
  %v649 = vunpack.c.h.b16 %v583
  %v650 = vunpack.c.l.b16 %v584
  %v651 = vunpack.c.h.b16 %v584
  %v652 = vunpack.c.l.b16 %v585
  %v653 = vunpack.c.h.b16 %v585
  %v654 = vunpack.c.l.b16 %v586
  %v655 = vunpack.c.h.b16 %v586
  %v656 = vunpack.c.l.b16 %v587
  %v657 = vunpack.c.h.b16 %v587
  %v658 = vunpack.c.l.b16 %v588
  %v659 = vunpack.c.h.b16 %v588
  %v660 = vunpack.c.l.b16 %v589
  %v661 = vunpack.c.h.b16 %v589
  %v662 = vunpack.c.l.b16 %v590
  %v663 = vunpack.c.h.b16 %v590
  %v664 = vunpack.c.l.b16 %v591
  %v665 = vunpack.c.h.b16 %v591
  %v666 = vunpack.c.l.b16 %v592
  %v667 = vunpack.c.h.b16 %v592
  %v668 = vunpack.c.l.b16 %v593
  %v669 = vunpack.c.h.b16 %v593
  %v670 = vunpack.c.l.b16 %v594
  %v671 = vunpack.c.h.b16 %v594
  %v672 = vunpack.c.l.b16 %v595
  %v673 = vunpack.c.h.b16 %v595
  %v674 = vunpack.c.l.b16 %v596
  %v675 = vunpack.c.h.b16 %v596
  %v676 = vunpack.c.l.b16 %v597
  %v677 = vunpack.c.h.b16 %v597
  %v678 = vunpack.c.l.b16 %v598
  %v679 = vunpack.c.h.b16 %v598
  %v680 = vunpack.c.l.b16 %v599
  %v681 = vunpack.c.h.b16 %v599
  %v682 = vunpack.c.l.b16 %v600
  %v683 = vunpack.c.h.b16 %v600
  %v684 = vunpack.c.l.b16 %v601
  %v685 = vunpack.c.h.b16 %v601
  %v686 = vunpack.c.l.b16 %v602
  %v687 = vunpack.c.h.b16 %v602
  %v688 = vunpack.c.l.b16 %v603
  %v689 = vunpack.c.h.b16 %v603
  %v690 = vunpack.c.l.b16 %v604
  %v691 = vunpack.c.h.b16 %v604
  %v692 = vunpack.c.l.b16 %v605
  %v693 = vunpack.c.h.b16 %v605
  %v694 = vunpack.c.l.b16 %v606
  %v695 = vunpack.c.h.b16 %v606
  %v696 = vunpack.c.l.b16 %v607
  %v697 = vunpack.c.h.b16 %v607
  %v698 = vunpack.c.l.b16 %v608
  %v699 = vunpack.c.h.b16 %v608
  %v700 = vunpack.c.l.b16 %v609
  %v701 = vunpack.c.h.b16 %v609
  %v702 = vunpack.c.l.b16 %v610
  %v703 = vunpack.c.h.b16 %v610
  %v704 = vunpack.c.l.b16 %v611
  %v705 = vunpack.c.h.b16 %v611
  %v706 = vunpack.c.l.b16 %v612
  %v707 = vunpack.c.h.b16 %v612
  %v708 = vunpack.c.l.b16 %v613
  %v709 = vunpack.c.h.b16 %v613
  %v710 = vpack.c.b16 %v650, %v646
  %v711 = vpack.c.b16 %v651, %v647
  %v712 = vpack.c.b16 %v652, %v648
  %v713 = vpack.c.b16 %v653, %v649
  %v714 = vpack.c.b16 %v658, %v654
  %v715 = vpack.c.b16 %v659, %v655
  %v716 = vpack.c.b16 %v660, %v656
  %v717 = vpack.c.b16 %v661, %v657
  %v718 = vpack.c.b16 %v666, %v662
  %v719 = vpack.c.b16 %v667, %v663
  %v720 = vpack.c.b16 %v668, %v664
  %v721 = vpack.c.b16 %v669, %v665
  %v722 = vpack.c.b16 %v674, %v670
  %v723 = vpack.c.b16 %v675, %v671
  %v724 = vpack.c.b16 %v676, %v672
  %v725 = vpack.c.b16 %v677, %v673
  %v726 = vpack.c.b16 %v682, %v678
  %v727 = vpack.c.b16 %v683, %v679
  %v728 = vpack.c.b16 %v684, %v680
  %v729 = vpack.c.b16 %v685, %v681
  %v730 = vpack.c.b16 %v690, %v686
  %v731 = vpack.c.b16 %v691, %v687
  %v732 = vpack.c.b16 %v692, %v688
  %v733 = vpack.c.b16 %v693, %v689
  %v734 = vpack.c.b16 %v698, %v694
  %v735 = vpack.c.b16 %v699, %v695
  %v736 = vpack.c.b16 %v700, %v696
  %v737 = vpack.c.b16 %v701, %v697
  %v738 = vpack.c.b16 %v706, %v702
  %v739 = vpack.c.b16 %v707, %v703
  %v740 = vpack.c.b16 %v708, %v704
  %v741 = vpack.c.b16 %v709, %v705
  %774 = vmatpush.bf16.msra.mxu0 %v738
  %775 = vmatpush.bf16.msra.mxu0 %v734
  %776 = vmatpush.bf16.msra.mxu0 %v730
  %777 = vmatpush.bf16.msra.mxu0 %v726
  %778 = vmatpush.bf16.msra.mxu0 %v722
  %779 = vmatpush.bf16.msra.mxu0 %v718
  %780 = vmatpush.bf16.msra.mxu0 %v714
  %781 = vmatpush.bf16.msra.mxu0 %v710
  %782 = vmatmul.bf16.gmra.mxu0 %v581
  %v783 = vpop.f32.mrf.mxu0
  %v784 = vadd.f32 0.0, %v783
  %v785 = vpop.f32.mrf.mxu0
  %v786 = vadd.f32 0.0, %v785
  %787 = vdwg.mxu0
  %788 = vmatpush.bf16.msra.mxu0 %v739
  %789 = vmatpush.bf16.msra.mxu0 %v735
  %790 = vmatpush.bf16.msra.mxu0 %v731
  %791 = vmatpush.bf16.msra.mxu0 %v727
  %792 = vmatpush.bf16.msra.mxu0 %v723
  %793 = vmatpush.bf16.msra.mxu0 %v719
  %794 = vmatpush.bf16.msra.mxu0 %v715
  %795 = vmatpush.bf16.msra.mxu0 %v711
  %796 = vmatmul.bf16.gmra.mxu0 %v581
  %v797 = vpop.f32.mrf.mxu0
  %v798 = vadd.f32 0.0, %v797
  %v799 = vpop.f32.mrf.mxu0
  %v800 = vadd.f32 0.0, %v799
  %801 = vdwg.mxu0
  %802 = vmatpush.bf16.msra.mxu0 %v740
  %803 = vmatpush.bf16.msra.mxu0 %v736
  %804 = vmatpush.bf16.msra.mxu0 %v732
  %805 = vmatpush.bf16.msra.mxu0 %v728
  %806 = vmatpush.bf16.msra.mxu0 %v724
  %807 = vmatpush.bf16.msra.mxu0 %v720
  %808 = vmatpush.bf16.msra.mxu0 %v716
  %809 = vmatpush.bf16.msra.mxu0 %v712
  %810 = vmatmul.bf16.gmra.mxu0 %v581
  %v811 = vpop.f32.mrf.mxu0
  %v812 = vadd.f32 0.0, %v811
  %v813 = vpop.f32.mrf.mxu0
  %v814 = vadd.f32 0.0, %v813
  %815 = vdwg.mxu0
  %816 = vmatpush.bf16.msra.mxu0 %v741
  %817 = vmatpush.bf16.msra.mxu0 %v737
  %818 = vmatpush.bf16.msra.mxu0 %v733
  %819 = vmatpush.bf16.msra.mxu0 %v729
  %820 = vmatpush.bf16.msra.mxu0 %v725
  %821 = vmatpush.bf16.msra.mxu0 %v721
  %822 = vmatpush.bf16.msra.mxu0 %v717
  %823 = vmatpush.bf16.msra.mxu0 %v713
  %824 = vmatmul.bf16.gmra.mxu0 %v581
  %v825 = vpop.f32.mrf.mxu0
  %v826 = vadd.f32 0.0, %v825
  %v827 = vpop.f32.mrf.mxu0
  %v828 = vadd.f32 0.0, %v827
  %829 = vdwg.mxu0
  %v830 = vadd.f32 %v571, %v784
  %v831 = vadd.f32 %v572, %v798
  %v832 = vadd.f32 %v573, %v812
  %v833 = vadd.f32 %v574, %v826
  %v834 = vadd.f32 %v575, %v786
  %v835 = vadd.f32 %v576, %v800
  %v836 = vadd.f32 %v577, %v814
  %v837 = vadd.f32 %v578, %v828
  %v838 = vxor.u32 %v830, 2147483648
  %v839 = vxor.u32 %v834, 2147483648
  %v840 = vmul.f32 %v838, 1.442695
  %v841 = vpow.pop %v840
  %v842 = vmul.f32 %v839, 1.442695
  %v843 = vpow.pop %v842
  %v844 = vadd.f32 %v841, 1.0
  %v845 = vadd.f32 %v843, 1.0
  %v846 = vrcp.pop %v844
  %v847 = vmul.f32 %v844, %v846
  %v848 = vsub.f32 1.0, %v847
  %v849 = vmul.f32 %v846, %v848
  %v850 = vadd.f32 %v846, %v849
  %vm851 = vweird.f32 %v844
  %vm852 = vweird.f32 %v846
  %vm853 = vmor %vm851, %vm852
  %v854 = vsel %vm853, %v846, %v850
  %v855 = vand.u32 2147483647, %v844
  %vm856 = vcmp.eq.f32.partialorder %v855, 8.507059e+37
  %v857 = vand.u32 %v844, 2147483648
  %v858 = vor.u32 1.1754944e-38, %v857
  %v859 = vsel %vm856, %v858, %v854
  %v860 = vmul.f32 1.0, %v859
  %v861 = vrcp.pop %v845
  %v862 = vmul.f32 %v845, %v861
  %v863 = vsub.f32 1.0, %v862
  %v864 = vmul.f32 %v861, %v863
  %v865 = vadd.f32 %v861, %v864
  %vm866 = vweird.f32 %v845
  %vm867 = vweird.f32 %v861
  %vm868 = vmor %vm866, %vm867
  %v869 = vsel %vm868, %v861, %v865
  %v870 = vand.u32 2147483647, %v845
  %vm871 = vcmp.eq.f32.partialorder %v870, 8.507059e+37
  %v872 = vand.u32 %v845, 2147483648
  %v873 = vor.u32 1.1754944e-38, %v872
  %v874 = vsel %vm871, %v873, %v869
  %v875 = vmul.f32 1.0, %v874
  %v876 = vxor.u32 %v831, 2147483648
  %v877 = vxor.u32 %v835, 2147483648
  %v878 = vmul.f32 %v876, 1.442695
  %v879 = vpow.pop %v878
  %v880 = vmul.f32 %v877, 1.442695
  %v881 = vpow.pop %v880
  %v882 = vadd.f32 %v879, 1.0
  %v883 = vadd.f32 %v881, 1.0
  %v884 = vrcp.pop %v882
  %v885 = vmul.f32 %v882, %v884
  %v886 = vsub.f32 1.0, %v885
  %v887 = vmul.f32 %v884, %v886
  %v888 = vadd.f32 %v884, %v887
  %vm889 = vweird.f32 %v882
  %vm890 = vweird.f32 %v884
  %vm891 = vmor %vm889, %vm890
  %v892 = vsel %vm891, %v884, %v888
  %v893 = vand.u32 2147483647, %v882
  %vm894 = vcmp.eq.f32.partialorder %v893, 8.507059e+37
  %v895 = vand.u32 %v882, 2147483648
  %v896 = vor.u32 1.1754944e-38, %v895
  %v897 = vsel %vm894, %v896, %v892
  %v898 = vmul.f32 1.0, %v897
  %v899 = vrcp.pop %v883
  %v900 = vmul.f32 %v883, %v899
  %v901 = vsub.f32 1.0, %v900
  %v902 = vmul.f32 %v899, %v901
  %v903 = vadd.f32 %v899, %v902
  %vm904 = vweird.f32 %v883
  %vm905 = vweird.f32 %v899
  %vm906 = vmor %vm904, %vm905
  %v907 = vsel %vm906, %v899, %v903
  %v908 = vand.u32 2147483647, %v883
  %vm909 = vcmp.eq.f32.partialorder %v908, 8.507059e+37
  %v910 = vand.u32 %v883, 2147483648
  %v911 = vor.u32 1.1754944e-38, %v910
  %v912 = vsel %vm909, %v911, %v907
  %v913 = vmul.f32 1.0, %v912
  %v914 = vtanh.pop %v832
  %v915 = vtanh.pop %v836
  %v916 = vxor.u32 %v833, 2147483648
  %v917 = vxor.u32 %v837, 2147483648
  %v918 = vmul.f32 %v916, 1.442695
  %v919 = vpow.pop %v918
  %v920 = vmul.f32 %v917, 1.442695
  %v921 = vpow.pop %v920
  %v922 = vadd.f32 %v919, 1.0
  %v923 = vadd.f32 %v921, 1.0
  %v924 = vrcp.pop %v922
  %v925 = vmul.f32 %v922, %v924
  %v926 = vsub.f32 1.0, %v925
  %v927 = vmul.f32 %v924, %v926
  %v928 = vadd.f32 %v924, %v927
  %vm929 = vweird.f32 %v922
  %vm930 = vweird.f32 %v924
  %vm931 = vmor %vm929, %vm930
  %v932 = vsel %vm931, %v924, %v928
  %v933 = vand.u32 2147483647, %v922
  %vm934 = vcmp.eq.f32.partialorder %v933, 8.507059e+37
  %v935 = vand.u32 %v922, 2147483648
  %v936 = vor.u32 1.1754944e-38, %v935
  %v937 = vsel %vm934, %v936, %v932
  %v938 = vmul.f32 1.0, %v937
  %v939 = vrcp.pop %v923
  %v940 = vmul.f32 %v923, %v939
  %v941 = vsub.f32 1.0, %v940
  %v942 = vmul.f32 %v939, %v941
  %v943 = vadd.f32 %v939, %v942
  %vm944 = vweird.f32 %v923
  %vm945 = vweird.f32 %v939
  %vm946 = vmor %vm944, %vm945
  %v947 = vsel %vm946, %v939, %v943
  %v948 = vand.u32 2147483647, %v923
  %vm949 = vcmp.eq.f32.partialorder %v948, 8.507059e+37
  %v950 = vand.u32 %v923, 2147483648
  %v951 = vor.u32 1.1754944e-38, %v950
  %v952 = vsel %vm949, %v951, %v947
  %v953 = vmul.f32 1.0, %v952
  %v954 = vld [vmem:[#allocation4] sm:$0xff]
  %v955 = vld [vmem:[#allocation4 + $0x8] sm:$0xff]
  %v956 = vmul.f32 %v898, %v954
  %v957 = vmul.f32 %v913, %v955
  %v958 = vmul.f32 %v860, %v914
  %v959 = vmul.f32 %v875, %v915
  %v960 = vadd.f32 %v956, %v958
  %v961 = vadd.f32 %v957, %v959
  %v962 = vtanh.pop %v960
  %v963 = vtanh.pop %v961
  %v964 = vmul.f32 %v938, %v962
  %v965 = vmul.f32 %v953, %v963
  %966 = vst [vmem:[#allocation4] sm:$0xff] %v960
  %967 = vst [vmem:[#allocation4 + $0x8] sm:$0xff] %v961
  %968 = vst [vmem:[#allocation3] sm:$0xff] %v964
  %969 = vst [vmem:[#allocation3 + $0x8] sm:$0xff] %v965
  %v970 = vpack.c.bf16 %v964, %v964
  %v971 = vpack.c.bf16 %v965, %v965
  %972 = vst [vmem:[%s6] sm:$0xf] %v970
  %973 = vst [vmem:[%s6 + $0x4] sm:$0xf] %v971
  %s974 = smul.u32 2, 4
  %s975 = smul.addr %s974, 4
  %s976 = scalar_lea.vmem [#allocation2], %s975
  %v977 = vld [vmem:[%s976] sm:$0xff]
  %v978 = vld [vmem:[%s976 + $0x8] sm:$0xff]
  %v979 = vld [vmem:[%s976 + $0x10] sm:$0xff]
  %v980 = vld [vmem:[%s976 + $0x18] sm:$0xff]
  %v981 = vunpack.c.l.bf16 %v977
  %v982 = vunpack.c.h.bf16 %v977
  %v983 = vunpack.c.l.bf16 %v978
  %v984 = vunpack.c.h.bf16 %v978
  %v985 = vunpack.c.l.bf16 %v979
  %v986 = vunpack.c.h.bf16 %v979
  %v987 = vunpack.c.l.bf16 %v980
  %v988 = vunpack.c.h.bf16 %v980
  %v989 = vld [vmem:[#allocation3] sm:$0xff]
  %v990 = vld [vmem:[#allocation3 + $0x8] sm:$0xff]
  %v991 = vpack.c.bf16 %v990, %v989
  %v992 = vld [vmem:[%s4] sm:$0xff]
  %v993 = vld [vmem:[%s4 + $0x8] sm:$0xff]
  %v994 = vld [vmem:[%s4 + $0x10] sm:$0xff]
  %v995 = vld [vmem:[%s4 + $0x18] sm:$0xff]
  %v996 = vld [vmem:[%s4 + $0x20] sm:$0xff]
  %v997 = vld [vmem:[%s4 + $0x28] sm:$0xff]
  %v998 = vld [vmem:[%s4 + $0x30] sm:$0xff]
  %v999 = vld [vmem:[%s4 + $0x38] sm:$0xff]
  %v1000 = vld [vmem:[%s4 + $0x40] sm:$0xff]
  %v1001 = vld [vmem:[%s4 + $0x48] sm:$0xff]
  %v1002 = vld [vmem:[%s4 + $0x50] sm:$0xff]
  %v1003 = vld [vmem:[%s4 + $0x58] sm:$0xff]
  %v1004 = vld [vmem:[%s4 + $0x60] sm:$0xff]
  %v1005 = vld [vmem:[%s4 + $0x68] sm:$0xff]
  %v1006 = vld [vmem:[%s4 + $0x70] sm:$0xff]
  %v1007 = vld [vmem:[%s4 + $0x78] sm:$0xff]
  %v1008 = vld [vmem:[%s4 + $0x80] sm:$0xff]
  %v1009 = vld [vmem:[%s4 + $0x88] sm:$0xff]
  %v1010 = vld [vmem:[%s4 + $0x90] sm:$0xff]
  %v1011 = vld [vmem:[%s4 + $0x98] sm:$0xff]
  %v1012 = vld [vmem:[%s4 + $0xa0] sm:$0xff]
  %v1013 = vld [vmem:[%s4 + $0xa8] sm:$0xff]
  %v1014 = vld [vmem:[%s4 + $0xb0] sm:$0xff]
  %v1015 = vld [vmem:[%s4 + $0xb8] sm:$0xff]
  %v1016 = vld [vmem:[%s4 + $0xc0] sm:$0xff]
  %v1017 = vld [vmem:[%s4 + $0xc8] sm:$0xff]
  %v1018 = vld [vmem:[%s4 + $0xd0] sm:$0xff]
  %v1019 = vld [vmem:[%s4 + $0xd8] sm:$0xff]
  %v1020 = vld [vmem:[%s4 + $0xe0] sm:$0xff]
  %v1021 = vld [vmem:[%s4 + $0xe8] sm:$0xff]
  %v1022 = vld [vmem:[%s4 + $0xf0] sm:$0xff]
  %v1023 = vld [vmem:[%s4 + $0xf8] sm:$0xff]
  %v1056 = vunpack.c.l.b16 %v992
  %v1057 = vunpack.c.h.b16 %v992
  %v1058 = vunpack.c.l.b16 %v993
  %v1059 = vunpack.c.h.b16 %v993
  %v1060 = vunpack.c.l.b16 %v994
  %v1061 = vunpack.c.h.b16 %v994
  %v1062 = vunpack.c.l.b16 %v995
  %v1063 = vunpack.c.h.b16 %v995
  %v1064 = vunpack.c.l.b16 %v996
  %v1065 = vunpack.c.h.b16 %v996
  %v1066 = vunpack.c.l.b16 %v997
  %v1067 = vunpack.c.h.b16 %v997
  %v1068 = vunpack.c.l.b16 %v998
  %v1069 = vunpack.c.h.b16 %v998
  %v1070 = vunpack.c.l.b16 %v999
  %v1071 = vunpack.c.h.b16 %v999
  %v1072 = vunpack.c.l.b16 %v1000
  %v1073 = vunpack.c.h.b16 %v1000
  %v1074 = vunpack.c.l.b16 %v1001
  %v1075 = vunpack.c.h.b16 %v1001
  %v1076 = vunpack.c.l.b16 %v1002
  %v1077 = vunpack.c.h.b16 %v1002
  %v1078 = vunpack.c.l.b16 %v1003
  %v1079 = vunpack.c.h.b16 %v1003
  %v1080 = vunpack.c.l.b16 %v1004
  %v1081 = vunpack.c.h.b16 %v1004
  %v1082 = vunpack.c.l.b16 %v1005
  %v1083 = vunpack.c.h.b16 %v1005
  %v1084 = vunpack.c.l.b16 %v1006
  %v1085 = vunpack.c.h.b16 %v1006
  %v1086 = vunpack.c.l.b16 %v1007
  %v1087 = vunpack.c.h.b16 %v1007
  %v1088 = vunpack.c.l.b16 %v1008
  %v1089 = vunpack.c.h.b16 %v1008
  %v1090 = vunpack.c.l.b16 %v1009
  %v1091 = vunpack.c.h.b16 %v1009
  %v1092 = vunpack.c.l.b16 %v1010
  %v1093 = vunpack.c.h.b16 %v1010
  %v1094 = vunpack.c.l.b16 %v1011
  %v1095 = vunpack.c.h.b16 %v1011
  %v1096 = vunpack.c.l.b16 %v1012
  %v1097 = vunpack.c.h.b16 %v1012
  %v1098 = vunpack.c.l.b16 %v1013
  %v1099 = vunpack.c.h.b16 %v1013
  %v1100 = vunpack.c.l.b16 %v1014
  %v1101 = vunpack.c.h.b16 %v1014
  %v1102 = vunpack.c.l.b16 %v1015
  %v1103 = vunpack.c.h.b16 %v1015
  %v1104 = vunpack.c.l.b16 %v1016
  %v1105 = vunpack.c.h.b16 %v1016
  %v1106 = vunpack.c.l.b16 %v1017
  %v1107 = vunpack.c.h.b16 %v1017
  %v1108 = vunpack.c.l.b16 %v1018
  %v1109 = vunpack.c.h.b16 %v1018
  %v1110 = vunpack.c.l.b16 %v1019
  %v1111 = vunpack.c.h.b16 %v1019
  %v1112 = vunpack.c.l.b16 %v1020
  %v1113 = vunpack.c.h.b16 %v1020
  %v1114 = vunpack.c.l.b16 %v1021
  %v1115 = vunpack.c.h.b16 %v1021
  %v1116 = vunpack.c.l.b16 %v1022
  %v1117 = vunpack.c.h.b16 %v1022
  %v1118 = vunpack.c.l.b16 %v1023
  %v1119 = vunpack.c.h.b16 %v1023
  %v1120 = vpack.c.b16 %v1060, %v1056
  %v1121 = vpack.c.b16 %v1061, %v1057
  %v1122 = vpack.c.b16 %v1062, %v1058
  %v1123 = vpack.c.b16 %v1063, %v1059
  %v1124 = vpack.c.b16 %v1068, %v1064
  %v1125 = vpack.c.b16 %v1069, %v1065
  %v1126 = vpack.c.b16 %v1070, %v1066
  %v1127 = vpack.c.b16 %v1071, %v1067
  %v1128 = vpack.c.b16 %v1076, %v1072
  %v1129 = vpack.c.b16 %v1077, %v1073
  %v1130 = vpack.c.b16 %v1078, %v1074
  %v1131 = vpack.c.b16 %v1079, %v1075
  %v1132 = vpack.c.b16 %v1084, %v1080
  %v1133 = vpack.c.b16 %v1085, %v1081
  %v1134 = vpack.c.b16 %v1086, %v1082
  %v1135 = vpack.c.b16 %v1087, %v1083
  %v1136 = vpack.c.b16 %v1092, %v1088
  %v1137 = vpack.c.b16 %v1093, %v1089
  %v1138 = vpack.c.b16 %v1094, %v1090
  %v1139 = vpack.c.b16 %v1095, %v1091
  %v1140 = vpack.c.b16 %v1100, %v1096
  %v1141 = vpack.c.b16 %v1101, %v1097
  %v1142 = vpack.c.b16 %v1102, %v1098
  %v1143 = vpack.c.b16 %v1103, %v1099
  %v1144 = vpack.c.b16 %v1108, %v1104
  %v1145 = vpack.c.b16 %v1109, %v1105
  %v1146 = vpack.c.b16 %v1110, %v1106
  %v1147 = vpack.c.b16 %v1111, %v1107
  %v1148 = vpack.c.b16 %v1116, %v1112
  %v1149 = vpack.c.b16 %v1117, %v1113
  %v1150 = vpack.c.b16 %v1118, %v1114
  %v1151 = vpack.c.b16 %v1119, %v1115
  %1184 = vmatpush.bf16.msra.mxu0 %v1148
  %1185 = vmatpush.bf16.msra.mxu0 %v1144
  %1186 = vmatpush.bf16.msra.mxu0 %v1140
  %1187 = vmatpush.bf16.msra.mxu0 %v1136
  %1188 = vmatpush.bf16.msra.mxu0 %v1132
  %1189 = vmatpush.bf16.msra.mxu0 %v1128
  %1190 = vmatpush.bf16.msra.mxu0 %v1124
  %1191 = vmatpush.bf16.msra.mxu0 %v1120
  %1192 = vmatmul.bf16.gmra.mxu0 %v991
  %v1193 = vpop.f32.mrf.mxu0
  %v1194 = vadd.f32 0.0, %v1193
  %v1195 = vpop.f32.mrf.mxu0
  %v1196 = vadd.f32 0.0, %v1195
  %1197 = vdwg.mxu0
  %1198 = vmatpush.bf16.msra.mxu0 %v1149
  %1199 = vmatpush.bf16.msra.mxu0 %v1145
  %1200 = vmatpush.bf16.msra.mxu0 %v1141
  %1201 = vmatpush.bf16.msra.mxu0 %v1137
  %1202 = vmatpush.bf16.msra.mxu0 %v1133
  %1203 = vmatpush.bf16.msra.mxu0 %v1129
  %1204 = vmatpush.bf16.msra.mxu0 %v1125
  %1205 = vmatpush.bf16.msra.mxu0 %v1121
  %1206 = vmatmul.bf16.gmra.mxu0 %v991
  %v1207 = vpop.f32.mrf.mxu0
  %v1208 = vadd.f32 0.0, %v1207
  %v1209 = vpop.f32.mrf.mxu0
  %v1210 = vadd.f32 0.0, %v1209
  %1211 = vdwg.mxu0
  %1212 = vmatpush.bf16.msra.mxu0 %v1150
  %1213 = vmatpush.bf16.msra.mxu0 %v1146
  %1214 = vmatpush.bf16.msra.mxu0 %v1142
  %1215 = vmatpush.bf16.msra.mxu0 %v1138
  %1216 = vmatpush.bf16.msra.mxu0 %v1134
  %1217 = vmatpush.bf16.msra.mxu0 %v1130
  %1218 = vmatpush.bf16.msra.mxu0 %v1126
  %1219 = vmatpush.bf16.msra.mxu0 %v1122
  %1220 = vmatmul.bf16.gmra.mxu0 %v991
  %v1221 = vpop.f32.mrf.mxu0
  %v1222 = vadd.f32 0.0, %v1221
  %v1223 = vpop.f32.mrf.mxu0
  %v1224 = vadd.f32 0.0, %v1223
  %1225 = vdwg.mxu0
  %1226 = vmatpush.bf16.msra.mxu0 %v1151
  %1227 = vmatpush.bf16.msra.mxu0 %v1147
  %1228 = vmatpush.bf16.msra.mxu0 %v1143
  %1229 = vmatpush.bf16.msra.mxu0 %v1139
  %1230 = vmatpush.bf16.msra.mxu0 %v1135
  %1231 = vmatpush.bf16.msra.mxu0 %v1131
  %1232 = vmatpush.bf16.msra.mxu0 %v1127
  %1233 = vmatpush.bf16.msra.mxu0 %v1123
  %1234 = vmatmul.bf16.gmra.mxu0 %v991
  %v1235 = vpop.f32.mrf.mxu0
  %v1236 = vadd.f32 0.0, %v1235
  %v1237 = vpop.f32.mrf.mxu0
  %v1238 = vadd.f32 0.0, %v1237
  %1239 = vdwg.mxu0
  %v1240 = vadd.f32 %v981, %v1194
  %v1241 = vadd.f32 %v982, %v1208
  %v1242 = vadd.f32 %v983, %v1222
  %v1243 = vadd.f32 %v984, %v1236
  %v1244 = vadd.f32 %v985, %v1196
  %v1245 = vadd.f32 %v986, %v1210
  %v1246 = vadd.f32 %v987, %v1224
  %v1247 = vadd.f32 %v988, %v1238
  %v1248 = vxor.u32 %v1240, 2147483648
  %v1249 = vxor.u32 %v1244, 2147483648
  %v1250 = vmul.f32 %v1248, 1.442695
  %v1251 = vpow.pop %v1250
  %v1252 = vmul.f32 %v1249, 1.442695
  %v1253 = vpow.pop %v1252
  %v1254 = vadd.f32 %v1251, 1.0
  %v1255 = vadd.f32 %v1253, 1.0
  %v1256 = vrcp.pop %v1254
  %v1257 = vmul.f32 %v1254, %v1256
  %v1258 = vsub.f32 1.0, %v1257
  %v1259 = vmul.f32 %v1256, %v1258
  %v1260 = vadd.f32 %v1256, %v1259
  %vm1261 = vweird.f32 %v1254
  %vm1262 = vweird.f32 %v1256
  %vm1263 = vmor %vm1261, %vm1262
  %v1264 = vsel %vm1263, %v1256, %v1260
  %v1265 = vand.u32 2147483647, %v1254
  %vm1266 = vcmp.eq.f32.partialorder %v1265, 8.507059e+37
  %v1267 = vand.u32 %v1254, 2147483648
  %v1268 = vor.u32 1.1754944e-38, %v1267
  %v1269 = vsel %vm1266, %v1268, %v1264
  %v1270 = vmul.f32 1.0, %v1269
  %v1271 = vrcp.pop %v1255
  %v1272 = vmul.f32 %v1255, %v1271
  %v1273 = vsub.f32 1.0, %v1272
  %v1274 = vmul.f32 %v1271, %v1273
  %v1275 = vadd.f32 %v1271, %v1274
  %vm1276 = vweird.f32 %v1255
  %vm1277 = vweird.f32 %v1271
  %vm1278 = vmor %vm1276, %vm1277
  %v1279 = vsel %vm1278, %v1271, %v1275
  %v1280 = vand.u32 2147483647, %v1255
  %vm1281 = vcmp.eq.f32.partialorder %v1280, 8.507059e+37
  %v1282 = vand.u32 %v1255, 2147483648
  %v1283 = vor.u32 1.1754944e-38, %v1282
  %v1284 = vsel %vm1281, %v1283, %v1279
  %v1285 = vmul.f32 1.0, %v1284
  %v1286 = vxor.u32 %v1241, 2147483648
  %v1287 = vxor.u32 %v1245, 2147483648
  %v1288 = vmul.f32 %v1286, 1.442695
  %v1289 = vpow.pop %v1288
  %v1290 = vmul.f32 %v1287, 1.442695
  %v1291 = vpow.pop %v1290
  %v1292 = vadd.f32 %v1289, 1.0
  %v1293 = vadd.f32 %v1291, 1.0
  %v1294 = vrcp.pop %v1292
  %v1295 = vmul.f32 %v1292, %v1294
  %v1296 = vsub.f32 1.0, %v1295
  %v1297 = vmul.f32 %v1294, %v1296
  %v1298 = vadd.f32 %v1294, %v1297
  %vm1299 = vweird.f32 %v1292
  %vm1300 = vweird.f32 %v1294
  %vm1301 = vmor %vm1299, %vm1300
  %v1302 = vsel %vm1301, %v1294, %v1298
  %v1303 = vand.u32 2147483647, %v1292
  %vm1304 = vcmp.eq.f32.partialorder %v1303, 8.507059e+37
  %v1305 = vand.u32 %v1292, 2147483648
  %v1306 = vor.u32 1.1754944e-38, %v1305
  %v1307 = vsel %vm1304, %v1306, %v1302
  %v1308 = vmul.f32 1.0, %v1307
  %v1309 = vrcp.pop %v1293
  %v1310 = vmul.f32 %v1293, %v1309
  %v1311 = vsub.f32 1.0, %v1310
  %v1312 = vmul.f32 %v1309, %v1311
  %v1313 = vadd.f32 %v1309, %v1312
  %vm1314 = vweird.f32 %v1293
  %vm1315 = vweird.f32 %v1309
  %vm1316 = vmor %vm1314, %vm1315
  %v1317 = vsel %vm1316, %v1309, %v1313
  %v1318 = vand.u32 2147483647, %v1293
  %vm1319 = vcmp.eq.f32.partialorder %v1318, 8.507059e+37
  %v1320 = vand.u32 %v1293, 2147483648
  %v1321 = vor.u32 1.1754944e-38, %v1320
  %v1322 = vsel %vm1319, %v1321, %v1317
  %v1323 = vmul.f32 1.0, %v1322
  %v1324 = vtanh.pop %v1242
  %v1325 = vtanh.pop %v1246
  %v1326 = vxor.u32 %v1243, 2147483648
  %v1327 = vxor.u32 %v1247, 2147483648
  %v1328 = vmul.f32 %v1326, 1.442695
  %v1329 = vpow.pop %v1328
  %v1330 = vmul.f32 %v1327, 1.442695
  %v1331 = vpow.pop %v1330
  %v1332 = vadd.f32 %v1329, 1.0
  %v1333 = vadd.f32 %v1331, 1.0
  %v1334 = vrcp.pop %v1332
  %v1335 = vmul.f32 %v1332, %v1334
  %v1336 = vsub.f32 1.0, %v1335
  %v1337 = vmul.f32 %v1334, %v1336
  %v1338 = vadd.f32 %v1334, %v1337
  %vm1339 = vweird.f32 %v1332
  %vm1340 = vweird.f32 %v1334
  %vm1341 = vmor %vm1339, %vm1340
  %v1342 = vsel %vm1341, %v1334, %v1338
  %v1343 = vand.u32 2147483647, %v1332
  %vm1344 = vcmp.eq.f32.partialorder %v1343, 8.507059e+37
  %v1345 = vand.u32 %v1332, 2147483648
  %v1346 = vor.u32 1.1754944e-38, %v1345
  %v1347 = vsel %vm1344, %v1346, %v1342
  %v1348 = vmul.f32 1.0, %v1347
  %v1349 = vrcp.pop %v1333
  %v1350 = vmul.f32 %v1333, %v1349
  %v1351 = vsub.f32 1.0, %v1350
  %v1352 = vmul.f32 %v1349, %v1351
  %v1353 = vadd.f32 %v1349, %v1352
  %vm1354 = vweird.f32 %v1333
  %vm1355 = vweird.f32 %v1349
  %vm1356 = vmor %vm1354, %vm1355
  %v1357 = vsel %vm1356, %v1349, %v1353
  %v1358 = vand.u32 2147483647, %v1333
  %vm1359 = vcmp.eq.f32.partialorder %v1358, 8.507059e+37
  %v1360 = vand.u32 %v1333, 2147483648
  %v1361 = vor.u32 1.1754944e-38, %v1360
  %v1362 = vsel %vm1359, %v1361, %v1357
  %v1363 = vmul.f32 1.0, %v1362
  %v1364 = vld [vmem:[#allocation4] sm:$0xff]
  %v1365 = vld [vmem:[#allocation4 + $0x8] sm:$0xff]
  %v1366 = vmul.f32 %v1308, %v1364
  %v1367 = vmul.f32 %v1323, %v1365
  %v1368 = vmul.f32 %v1270, %v1324
  %v1369 = vmul.f32 %v1285, %v1325
  %v1370 = vadd.f32 %v1366, %v1368
  %v1371 = vadd.f32 %v1367, %v1369
  %v1372 = vtanh.pop %v1370
  %v1373 = vtanh.pop %v1371
  %v1374 = vmul.f32 %v1348, %v1372
  %v1375 = vmul.f32 %v1363, %v1373
  %1376 = vst [vmem:[#allocation4] sm:$0xff] %v1370
  %1377 = vst [vmem:[#allocation4 + $0x8] sm:$0xff] %v1371
  %1378 = vst [vmem:[#allocation3] sm:$0xff] %v1374
  %1379 = vst [vmem:[#allocation3 + $0x8] sm:$0xff] %v1375
  %v1380 = vpack.c.bf16 %v1374, %v1374
  %v1381 = vpack.c.bf16 %v1375, %v1375
  %s1382 = scalar_lea.vmem %s6, 8
  %1383 = vst [vmem:[%s1382] sm:$0xf] %v1380
  %1384 = vst [vmem:[%s1382 + $0x4] sm:$0xf] %v1381
  %s1385 = smul.u32 4, 4
  %s1386 = smul.addr %s1385, 4
  %s1387 = scalar_lea.vmem [#allocation2], %s1386
  %v1388 = vld [vmem:[%s1387] sm:$0xff]
  %v1389 = vld [vmem:[%s1387 + $0x8] sm:$0xff]
  %v1390 = vld [vmem:[%s1387 + $0x10] sm:$0xff]
  %v1391 = vld [vmem:[%s1387 + $0x18] sm:$0xff]
  %v1392 = vunpack.c.l.bf16 %v1388
  %v1393 = vunpack.c.h.bf16 %v1388
  %v1394 = vunpack.c.l.bf16 %v1389
  %v1395 = vunpack.c.h.bf16 %v1389
  %v1396 = vunpack.c.l.bf16 %v1390
  %v1397 = vunpack.c.h.bf16 %v1390
  %v1398 = vunpack.c.l.bf16 %v1391
  %v1399 = vunpack.c.h.bf16 %v1391
  %v1400 = vld [vmem:[#allocation3] sm:$0xff]
  %v1401 = vld [vmem:[#allocation3 + $0x8] sm:$0xff]
  %v1402 = vpack.c.bf16 %v1401, %v1400
  %v1403 = vld [vmem:[%s4] sm:$0xff]
  %v1404 = vld [vmem:[%s4 + $0x8] sm:$0xff]
  %v1405 = vld [vmem:[%s4 + $0x10] sm:$0xff]
  %v1406 = vld [vmem:[%s4 + $0x18] sm:$0xff]
  %v1407 = vld [vmem:[%s4 + $0x20] sm:$0xff]
  %v1408 = vld [vmem:[%s4 + $0x28] sm:$0xff]
  %v1409 = vld [vmem:[%s4 + $0x30] sm:$0xff]
  %v1410 = vld [vmem:[%s4 + $0x38] sm:$0xff]
  %v1411 = vld [vmem:[%s4 + $0x40] sm:$0xff]
  %v1412 = vld [vmem:[%s4 + $0x48] sm:$0xff]
  %v1413 = vld [vmem:[%s4 + $0x50] sm:$0xff]
  %v1414 = vld [vmem:[%s4 + $0x58] sm:$0xff]
  %v1415 = vld [vmem:[%s4 + $0x60] sm:$0xff]
  %v1416 = vld [vmem:[%s4 + $0x68] sm:$0xff]
  %v1417 = vld [vmem:[%s4 + $0x70] sm:$0xff]
  %v1418 = vld [vmem:[%s4 + $0x78] sm:$0xff]
  %v1419 = vld [vmem:[%s4 + $0x80] sm:$0xff]
  %v1420 = vld [vmem:[%s4 + $0x88] sm:$0xff]
  %v1421 = vld [vmem:[%s4 + $0x90] sm:$0xff]
  %v1422 = vld [vmem:[%s4 + $0x98] sm:$0xff]
  %v1423 = vld [vmem:[%s4 + $0xa0] sm:$0xff]
  %v1424 = vld [vmem:[%s4 + $0xa8] sm:$0xff]
  %v1425 = vld [vmem:[%s4 + $0xb0] sm:$0xff]
  %v1426 = vld [vmem:[%s4 + $0xb8] sm:$0xff]
  %v1427 = vld [vmem:[%s4 + $0xc0] sm:$0xff]
  %v1428 = vld [vmem:[%s4 + $0xc8] sm:$0xff]
  %v1429 = vld [vmem:[%s4 + $0xd0] sm:$0xff]
  %v1430 = vld [vmem:[%s4 + $0xd8] sm:$0xff]
  %v1431 = vld [vmem:[%s4 + $0xe0] sm:$0xff]
  %v1432 = vld [vmem:[%s4 + $0xe8] sm:$0xff]
  %v1433 = vld [vmem:[%s4 + $0xf0] sm:$0xff]
  %v1434 = vld [vmem:[%s4 + $0xf8] sm:$0xff]
  %v1467 = vunpack.c.l.b16 %v1403
  %v1468 = vunpack.c.h.b16 %v1403
  %v1469 = vunpack.c.l.b16 %v1404
  %v1470 = vunpack.c.h.b16 %v1404
  %v1471 = vunpack.c.l.b16 %v1405
  %v1472 = vunpack.c.h.b16 %v1405
  %v1473 = vunpack.c.l.b16 %v1406
  %v1474 = vunpack.c.h.b16 %v1406
  %v1475 = vunpack.c.l.b16 %v1407
  %v1476 = vunpack.c.h.b16 %v1407
  %v1477 = vunpack.c.l.b16 %v1408
  %v1478 = vunpack.c.h.b16 %v1408
  %v1479 = vunpack.c.l.b16 %v1409
  %v1480 = vunpack.c.h.b16 %v1409
  %v1481 = vunpack.c.l.b16 %v1410
  %v1482 = vunpack.c.h.b16 %v1410
  %v1483 = vunpack.c.l.b16 %v1411
  %v1484 = vunpack.c.h.b16 %v1411
  %v1485 = vunpack.c.l.b16 %v1412
  %v1486 = vunpack.c.h.b16 %v1412
  %v1487 = vunpack.c.l.b16 %v1413
  %v1488 = vunpack.c.h.b16 %v1413
  %v1489 = vunpack.c.l.b16 %v1414
  %v1490 = vunpack.c.h.b16 %v1414
  %v1491 = vunpack.c.l.b16 %v1415
  %v1492 = vunpack.c.h.b16 %v1415
  %v1493 = vunpack.c.l.b16 %v1416
  %v1494 = vunpack.c.h.b16 %v1416
  %v1495 = vunpack.c.l.b16 %v1417
  %v1496 = vunpack.c.h.b16 %v1417
  %v1497 = vunpack.c.l.b16 %v1418
  %v1498 = vunpack.c.h.b16 %v1418
  %v1499 = vunpack.c.l.b16 %v1419
  %v1500 = vunpack.c.h.b16 %v1419
  %v1501 = vunpack.c.l.b16 %v1420
  %v1502 = vunpack.c.h.b16 %v1420
  %v1503 = vunpack.c.l.b16 %v1421
  %v1504 = vunpack.c.h.b16 %v1421
  %v1505 = vunpack.c.l.b16 %v1422
  %v1506 = vunpack.c.h.b16 %v1422
  %v1507 = vunpack.c.l.b16 %v1423
  %v1508 = vunpack.c.h.b16 %v1423
  %v1509 = vunpack.c.l.b16 %v1424
  %v1510 = vunpack.c.h.b16 %v1424
  %v1511 = vunpack.c.l.b16 %v1425
  %v1512 = vunpack.c.h.b16 %v1425
  %v1513 = vunpack.c.l.b16 %v1426
  %v1514 = vunpack.c.h.b16 %v1426
  %v1515 = vunpack.c.l.b16 %v1427
  %v1516 = vunpack.c.h.b16 %v1427
  %v1517 = vunpack.c.l.b16 %v1428
  %v1518 = vunpack.c.h.b16 %v1428
  %v1519 = vunpack.c.l.b16 %v1429
  %v1520 = vunpack.c.h.b16 %v1429
  %v1521 = vunpack.c.l.b16 %v1430
  %v1522 = vunpack.c.h.b16 %v1430
  %v1523 = vunpack.c.l.b16 %v1431
  %v1524 = vunpack.c.h.b16 %v1431
  %v1525 = vunpack.c.l.b16 %v1432
  %v1526 = vunpack.c.h.b16 %v1432
  %v1527 = vunpack.c.l.b16 %v1433
  %v1528 = vunpack.c.h.b16 %v1433
  %v1529 = vunpack.c.l.b16 %v1434
  %v1530 = vunpack.c.h.b16 %v1434
  %v1531 = vpack.c.b16 %v1471, %v1467
  %v1532 = vpack.c.b16 %v1472, %v1468
  %v1533 = vpack.c.b16 %v1473, %v1469
  %v1534 = vpack.c.b16 %v1474, %v1470
  %v1535 = vpack.c.b16 %v1479, %v1475
  %v1536 = vpack.c.b16 %v1480, %v1476
  %v1537 = vpack.c.b16 %v1481, %v1477
  %v1538 = vpack.c.b16 %v1482, %v1478
  %v1539 = vpack.c.b16 %v1487, %v1483
  %v1540 = vpack.c.b16 %v1488, %v1484
  %v1541 = vpack.c.b16 %v1489, %v1485
  %v1542 = vpack.c.b16 %v1490, %v1486
  %v1543 = vpack.c.b16 %v1495, %v1491
  %v1544 = vpack.c.b16 %v1496, %v1492
  %v1545 = vpack.c.b16 %v1497, %v1493
  %v1546 = vpack.c.b16 %v1498, %v1494
  %v1547 = vpack.c.b16 %v1503, %v1499
  %v1548 = vpack.c.b16 %v1504, %v1500
  %v1549 = vpack.c.b16 %v1505, %v1501
  %v1550 = vpack.c.b16 %v1506, %v1502
  %v1551 = vpack.c.b16 %v1511, %v1507
  %v1552 = vpack.c.b16 %v1512, %v1508
  %v1553 = vpack.c.b16 %v1513, %v1509
  %v1554 = vpack.c.b16 %v1514, %v1510
  %v1555 = vpack.c.b16 %v1519, %v1515
  %v1556 = vpack.c.b16 %v1520, %v1516
  %v1557 = vpack.c.b16 %v1521, %v1517
  %v1558 = vpack.c.b16 %v1522, %v1518
  %v1559 = vpack.c.b16 %v1527, %v1523
  %v1560 = vpack.c.b16 %v1528, %v1524
  %v1561 = vpack.c.b16 %v1529, %v1525
  %v1562 = vpack.c.b16 %v1530, %v1526
  %1595 = vmatpush.bf16.msra.mxu0 %v1559
  %1596 = vmatpush.bf16.msra.mxu0 %v1555
  %1597 = vmatpush.bf16.msra.mxu0 %v1551
  %1598 = vmatpush.bf16.msra.mxu0 %v1547
  %1599 = vmatpush.bf16.msra.mxu0 %v1543
  %1600 = vmatpush.bf16.msra.mxu0 %v1539
  %1601 = vmatpush.bf16.msra.mxu0 %v1535
  %1602 = vmatpush.bf16.msra.mxu0 %v1531
  %1603 = vmatmul.bf16.gmra.mxu0 %v1402
  %v1604 = vpop.f32.mrf.mxu0
  %v1605 = vadd.f32 0.0, %v1604
  %v1606 = vpop.f32.mrf.mxu0
  %v1607 = vadd.f32 0.0, %v1606
  %1608 = vdwg.mxu0
  %1609 = vmatpush.bf16.msra.mxu0 %v1560
  %1610 = vmatpush.bf16.msra.mxu0 %v1556
  %1611 = vmatpush.bf16.msra.mxu0 %v1552
  %1612 = vmatpush.bf16.msra.mxu0 %v1548
  %1613 = vmatpush.bf16.msra.mxu0 %v1544
  %1614 = vmatpush.bf16.msra.mxu0 %v1540
  %1615 = vmatpush.bf16.msra.mxu0 %v1536
  %1616 = vmatpush.bf16.msra.mxu0 %v1532
  %1617 = vmatmul.bf16.gmra.mxu0 %v1402
  %v1618 = vpop.f32.mrf.mxu0
  %v1619 = vadd.f32 0.0, %v1618
  %v1620 = vpop.f32.mrf.mxu0
  %v1621 = vadd.f32 0.0, %v1620
  %1622 = vdwg.mxu0
  %1623 = vmatpush.bf16.msra.mxu0 %v1561
  %1624 = vmatpush.bf16.msra.mxu0 %v1557
  %1625 = vmatpush.bf16.msra.mxu0 %v1553
  %1626 = vmatpush.bf16.msra.mxu0 %v1549
  %1627 = vmatpush.bf16.msra.mxu0 %v1545
  %1628 = vmatpush.bf16.msra.mxu0 %v1541
  %1629 = vmatpush.bf16.msra.mxu0 %v1537
  %1630 = vmatpush.bf16.msra.mxu0 %v1533
  %1631 = vmatmul.bf16.gmra.mxu0 %v1402
  %v1632 = vpop.f32.mrf.mxu0
  %v1633 = vadd.f32 0.0, %v1632
  %v1634 = vpop.f32.mrf.mxu0
  %v1635 = vadd.f32 0.0, %v1634
  %1636 = vdwg.mxu0
  %1637 = vmatpush.bf16.msra.mxu0 %v1562
  %1638 = vmatpush.bf16.msra.mxu0 %v1558
  %1639 = vmatpush.bf16.msra.mxu0 %v1554
  %1640 = vmatpush.bf16.msra.mxu0 %v1550
  %1641 = vmatpush.bf16.msra.mxu0 %v1546
  %1642 = vmatpush.bf16.msra.mxu0 %v1542
  %1643 = vmatpush.bf16.msra.mxu0 %v1538
  %1644 = vmatpush.bf16.msra.mxu0 %v1534
  %1645 = vmatmul.bf16.gmra.mxu0 %v1402
  %v1646 = vpop.f32.mrf.mxu0
  %v1647 = vadd.f32 0.0, %v1646
  %v1648 = vpop.f32.mrf.mxu0
  %v1649 = vadd.f32 0.0, %v1648
  %1650 = vdwg.mxu0
  %v1651 = vadd.f32 %v1392, %v1605
  %v1652 = vadd.f32 %v1393, %v1619
  %v1653 = vadd.f32 %v1394, %v1633
  %v1654 = vadd.f32 %v1395, %v1647
  %v1655 = vadd.f32 %v1396, %v1607
  %v1656 = vadd.f32 %v1397, %v1621
  %v1657 = vadd.f32 %v1398, %v1635
  %v1658 = vadd.f32 %v1399, %v1649
  %v1659 = vxor.u32 %v1651, 2147483648
  %v1660 = vxor.u32 %v1655, 2147483648
  %v1661 = vmul.f32 %v1659, 1.442695
  %v1662 = vpow.pop %v1661
  %v1663 = vmul.f32 %v1660, 1.442695
  %v1664 = vpow.pop %v1663
  %v1665 = vadd.f32 %v1662, 1.0
  %v1666 = vadd.f32 %v1664, 1.0
  %v1667 = vrcp.pop %v1665
  %v1668 = vmul.f32 %v1665, %v1667
  %v1669 = vsub.f32 1.0, %v1668
  %v1670 = vmul.f32 %v1667, %v1669
  %v1671 = vadd.f32 %v1667, %v1670
  %vm1672 = vweird.f32 %v1665
  %vm1673 = vweird.f32 %v1667
  %vm1674 = vmor %vm1672, %vm1673
  %v1675 = vsel %vm1674, %v1667, %v1671
  %v1676 = vand.u32 2147483647, %v1665
  %vm1677 = vcmp.eq.f32.partialorder %v1676, 8.507059e+37
  %v1678 = vand.u32 %v1665, 2147483648
  %v1679 = vor.u32 1.1754944e-38, %v1678
  %v1680 = vsel %vm1677, %v1679, %v1675
  %v1681 = vmul.f32 1.0, %v1680
  %v1682 = vrcp.pop %v1666
  %v1683 = vmul.f32 %v1666, %v1682
  %v1684 = vsub.f32 1.0, %v1683
  %v1685 = vmul.f32 %v1682, %v1684
  %v1686 = vadd.f32 %v1682, %v1685
  %vm1687 = vweird.f32 %v1666
  %vm1688 = vweird.f32 %v1682
  %vm1689 = vmor %vm1687, %vm1688
  %v1690 = vsel %vm1689, %v1682, %v1686
  %v1691 = vand.u32 2147483647, %v1666
  %vm1692 = vcmp.eq.f32.partialorder %v1691, 8.507059e+37
  %v1693 = vand.u32 %v1666, 2147483648
  %v1694 = vor.u32 1.1754944e-38, %v1693
  %v1695 = vsel %vm1692, %v1694, %v1690
  %v1696 = vmul.f32 1.0, %v1695
  %v1697 = vxor.u32 %v1652, 2147483648
  %v1698 = vxor.u32 %v1656, 2147483648
  %v1699 = vmul.f32 %v1697, 1.442695
  %v1700 = vpow.pop %v1699
  %v1701 = vmul.f32 %v1698, 1.442695
  %v1702 = vpow.pop %v1701
  %v1703 = vadd.f32 %v1700, 1.0
  %v1704 = vadd.f32 %v1702, 1.0
  %v1705 = vrcp.pop %v1703
  %v1706 = vmul.f32 %v1703, %v1705
  %v1707 = vsub.f32 1.0, %v1706
  %v1708 = vmul.f32 %v1705, %v1707
  %v1709 = vadd.f32 %v1705, %v1708
  %vm1710 = vweird.f32 %v1703
  %vm1711 = vweird.f32 %v1705
  %vm1712 = vmor %vm1710, %vm1711
  %v1713 = vsel %vm1712, %v1705, %v1709
  %v1714 = vand.u32 2147483647, %v1703
  %vm1715 = vcmp.eq.f32.partialorder %v1714, 8.507059e+37
  %v1716 = vand.u32 %v1703, 2147483648
  %v1717 = vor.u32 1.1754944e-38, %v1716
  %v1718 = vsel %vm1715, %v1717, %v1713
  %v1719 = vmul.f32 1.0, %v1718
  %v1720 = vrcp.pop %v1704
  %v1721 = vmul.f32 %v1704, %v1720
  %v1722 = vsub.f32 1.0, %v1721
  %v1723 = vmul.f32 %v1720, %v1722
  %v1724 = vadd.f32 %v1720, %v1723
  %vm1725 = vweird.f32 %v1704
  %vm1726 = vweird.f32 %v1720
  %vm1727 = vmor %vm1725, %vm1726
  %v1728 = vsel %vm1727, %v1720, %v1724
  %v1729 = vand.u32 2147483647, %v1704
  %vm1730 = vcmp.eq.f32.partialorder %v1729, 8.507059e+37
  %v1731 = vand.u32 %v1704, 2147483648
  %v1732 = vor.u32 1.1754944e-38, %v1731
  %v1733 = vsel %vm1730, %v1732, %v1728
  %v1734 = vmul.f32 1.0, %v1733
  %v1735 = vtanh.pop %v1653
  %v1736 = vtanh.pop %v1657
  %v1737 = vxor.u32 %v1654, 2147483648
  %v1738 = vxor.u32 %v1658, 2147483648
  %v1739 = vmul.f32 %v1737, 1.442695
  %v1740 = vpow.pop %v1739
  %v1741 = vmul.f32 %v1738, 1.442695
  %v1742 = vpow.pop %v1741
  %v1743 = vadd.f32 %v1740, 1.0
  %v1744 = vadd.f32 %v1742, 1.0
  %v1745 = vrcp.pop %v1743
  %v1746 = vmul.f32 %v1743, %v1745
  %v1747 = vsub.f32 1.0, %v1746
  %v1748 = vmul.f32 %v1745, %v1747
  %v1749 = vadd.f32 %v1745, %v1748
  %vm1750 = vweird.f32 %v1743
  %vm1751 = vweird.f32 %v1745
  %vm1752 = vmor %vm1750, %vm1751
  %v1753 = vsel %vm1752, %v1745, %v1749
  %v1754 = vand.u32 2147483647, %v1743
  %vm1755 = vcmp.eq.f32.partialorder %v1754, 8.507059e+37
  %v1756 = vand.u32 %v1743, 2147483648
  %v1757 = vor.u32 1.1754944e-38, %v1756
  %v1758 = vsel %vm1755, %v1757, %v1753
  %v1759 = vmul.f32 1.0, %v1758
  %v1760 = vrcp.pop %v1744
  %v1761 = vmul.f32 %v1744, %v1760
  %v1762 = vsub.f32 1.0, %v1761
  %v1763 = vmul.f32 %v1760, %v1762
  %v1764 = vadd.f32 %v1760, %v1763
  %vm1765 = vweird.f32 %v1744
  %vm1766 = vweird.f32 %v1760
  %vm1767 = vmor %vm1765, %vm1766
  %v1768 = vsel %vm1767, %v1760, %v1764
  %v1769 = vand.u32 2147483647, %v1744
  %vm1770 = vcmp.eq.f32.partialorder %v1769, 8.507059e+37
  %v1771 = vand.u32 %v1744, 2147483648
  %v1772 = vor.u32 1.1754944e-38, %v1771
  %v1773 = vsel %vm1770, %v1772, %v1768
  %v1774 = vmul.f32 1.0, %v1773
  %v1775 = vld [vmem:[#allocation4] sm:$0xff]
  %v1776 = vld [vmem:[#allocation4 + $0x8] sm:$0xff]
  %v1777 = vmul.f32 %v1719, %v1775
  %v1778 = vmul.f32 %v1734, %v1776
  %v1779 = vmul.f32 %v1681, %v1735
  %v1780 = vmul.f32 %v1696, %v1736
  %v1781 = vadd.f32 %v1777, %v1779
  %v1782 = vadd.f32 %v1778, %v1780
  %v1783 = vtanh.pop %v1781
  %v1784 = vtanh.pop %v1782
  %v1785 = vmul.f32 %v1759, %v1783
  %v1786 = vmul.f32 %v1774, %v1784
  %1787 = vst [vmem:[#allocation4] sm:$0xff] %v1781
  %1788 = vst [vmem:[#allocation4 + $0x8] sm:$0xff] %v1782
  %1789 = vst [vmem:[#allocation3] sm:$0xff] %v1785
  %1790 = vst [vmem:[#allocation3 + $0x8] sm:$0xff] %v1786
  %v1791 = vpack.c.bf16 %v1785, %v1785
  %v1792 = vpack.c.bf16 %v1786, %v1786
  %s1793 = scalar_lea.vmem %s6, 16
  %1794 = vst [vmem:[%s1793] sm:$0xf] %v1791
  %1795 = vst [vmem:[%s1793 + $0x4] sm:$0xf] %v1792
  %s1796 = smul.u32 6, 4
  %s1797 = smul.addr %s1796, 4
  %s1798 = scalar_lea.vmem [#allocation2], %s1797
  %v1799 = vld [vmem:[%s1798] sm:$0xff]
  %v1800 = vld [vmem:[%s1798 + $0x8] sm:$0xff]
  %v1801 = vld [vmem:[%s1798 + $0x10] sm:$0xff]
  %v1802 = vld [vmem:[%s1798 + $0x18] sm:$0xff]
  %v1803 = vunpack.c.l.bf16 %v1799
  %v1804 = vunpack.c.h.bf16 %v1799
  %v1805 = vunpack.c.l.bf16 %v1800
  %v1806 = vunpack.c.h.bf16 %v1800
  %v1807 = vunpack.c.l.bf16 %v1801
  %v1808 = vunpack.c.h.bf16 %v1801
  %v1809 = vunpack.c.l.bf16 %v1802
  %v1810 = vunpack.c.h.bf16 %v1802
  %v1811 = vld [vmem:[#allocation3] sm:$0xff]
  %v1812 = vld [vmem:[#allocation3 + $0x8] sm:$0xff]
  %v1813 = vpack.c.bf16 %v1812, %v1811
  %v1814 = vld [vmem:[%s4] sm:$0xff]
  %v1815 = vld [vmem:[%s4 + $0x8] sm:$0xff]
  %v1816 = vld [vmem:[%s4 + $0x10] sm:$0xff]
  %v1817 = vld [vmem:[%s4 + $0x18] sm:$0xff]
  %v1818 = vld [vmem:[%s4 + $0x20] sm:$0xff]
  %v1819 = vld [vmem:[%s4 + $0x28] sm:$0xff]
  %v1820 = vld [vmem:[%s4 + $0x30] sm:$0xff]
  %v1821 = vld [vmem:[%s4 + $0x38] sm:$0xff]
  %v1822 = vld [vmem:[%s4 + $0x40] sm:$0xff]
  %v1823 = vld [vmem:[%s4 + $0x48] sm:$0xff]
  %v1824 = vld [vmem:[%s4 + $0x50] sm:$0xff]
  %v1825 = vld [vmem:[%s4 + $0x58] sm:$0xff]
  %v1826 = vld [vmem:[%s4 + $0x60] sm:$0xff]
  %v1827 = vld [vmem:[%s4 + $0x68] sm:$0xff]
  %v1828 = vld [vmem:[%s4 + $0x70] sm:$0xff]
  %v1829 = vld [vmem:[%s4 + $0x78] sm:$0xff]
  %v1830 = vld [vmem:[%s4 + $0x80] sm:$0xff]
  %v1831 = vld [vmem:[%s4 + $0x88] sm:$0xff]
  %v1832 = vld [vmem:[%s4 + $0x90] sm:$0xff]
  %v1833 = vld [vmem:[%s4 + $0x98] sm:$0xff]
  %v1834 = vld [vmem:[%s4 + $0xa0] sm:$0xff]
  %v1835 = vld [vmem:[%s4 + $0xa8] sm:$0xff]
  %v1836 = vld [vmem:[%s4 + $0xb0] sm:$0xff]
  %v1837 = vld [vmem:[%s4 + $0xb8] sm:$0xff]
  %v1838 = vld [vmem:[%s4 + $0xc0] sm:$0xff]
  %v1839 = vld [vmem:[%s4 + $0xc8] sm:$0xff]
  %v1840 = vld [vmem:[%s4 + $0xd0] sm:$0xff]
  %v1841 = vld [vmem:[%s4 + $0xd8] sm:$0xff]
  %v1842 = vld [vmem:[%s4 + $0xe0] sm:$0xff]
  %v1843 = vld [vmem:[%s4 + $0xe8] sm:$0xff]
  %v1844 = vld [vmem:[%s4 + $0xf0] sm:$0xff]
  %v1845 = vld [vmem:[%s4 + $0xf8] sm:$0xff]
  %v1878 = vunpack.c.l.b16 %v1814
  %v1879 = vunpack.c.h.b16 %v1814
  %v1880 = vunpack.c.l.b16 %v1815
  %v1881 = vunpack.c.h.b16 %v1815
  %v1882 = vunpack.c.l.b16 %v1816
  %v1883 = vunpack.c.h.b16 %v1816
  %v1884 = vunpack.c.l.b16 %v1817
  %v1885 = vunpack.c.h.b16 %v1817
  %v1886 = vunpack.c.l.b16 %v1818
  %v1887 = vunpack.c.h.b16 %v1818
  %v1888 = vunpack.c.l.b16 %v1819
  %v1889 = vunpack.c.h.b16 %v1819
  %v1890 = vunpack.c.l.b16 %v1820
  %v1891 = vunpack.c.h.b16 %v1820
  %v1892 = vunpack.c.l.b16 %v1821
  %v1893 = vunpack.c.h.b16 %v1821
  %v1894 = vunpack.c.l.b16 %v1822
  %v1895 = vunpack.c.h.b16 %v1822
  %v1896 = vunpack.c.l.b16 %v1823
  %v1897 = vunpack.c.h.b16 %v1823
  %v1898 = vunpack.c.l.b16 %v1824
  %v1899 = vunpack.c.h.b16 %v1824
  %v1900 = vunpack.c.l.b16 %v1825
  %v1901 = vunpack.c.h.b16 %v1825
  %v1902 = vunpack.c.l.b16 %v1826
  %v1903 = vunpack.c.h.b16 %v1826
  %v1904 = vunpack.c.l.b16 %v1827
  %v1905 = vunpack.c.h.b16 %v1827
  %v1906 = vunpack.c.l.b16 %v1828
  %v1907 = vunpack.c.h.b16 %v1828
  %v1908 = vunpack.c.l.b16 %v1829
  %v1909 = vunpack.c.h.b16 %v1829
  %v1910 = vunpack.c.l.b16 %v1830
  %v1911 = vunpack.c.h.b16 %v1830
  %v1912 = vunpack.c.l.b16 %v1831
  %v1913 = vunpack.c.h.b16 %v1831
  %v1914 = vunpack.c.l.b16 %v1832
  %v1915 = vunpack.c.h.b16 %v1832
  %v1916 = vunpack.c.l.b16 %v1833
  %v1917 = vunpack.c.h.b16 %v1833
  %v1918 = vunpack.c.l.b16 %v1834
  %v1919 = vunpack.c.h.b16 %v1834
  %v1920 = vunpack.c.l.b16 %v1835
  %v1921 = vunpack.c.h.b16 %v1835
  %v1922 = vunpack.c.l.b16 %v1836
  %v1923 = vunpack.c.h.b16 %v1836
  %v1924 = vunpack.c.l.b16 %v1837
  %v1925 = vunpack.c.h.b16 %v1837
  %v1926 = vunpack.c.l.b16 %v1838
  %v1927 = vunpack.c.h.b16 %v1838
  %v1928 = vunpack.c.l.b16 %v1839
  %v1929 = vunpack.c.h.b16 %v1839
  %v1930 = vunpack.c.l.b16 %v1840
  %v1931 = vunpack.c.h.b16 %v1840
  %v1932 = vunpack.c.l.b16 %v1841
  %v1933 = vunpack.c.h.b16 %v1841
  %v1934 = vunpack.c.l.b16 %v1842
  %v1935 = vunpack.c.h.b16 %v1842
  %v1936 = vunpack.c.l.b16 %v1843
  %v1937 = vunpack.c.h.b16 %v1843
  %v1938 = vunpack.c.l.b16 %v1844
  %v1939 = vunpack.c.h.b16 %v1844
  %v1940 = vunpack.c.l.b16 %v1845
  %v1941 = vunpack.c.h.b16 %v1845
  %v1942 = vpack.c.b16 %v1882, %v1878
  %v1943 = vpack.c.b16 %v1883, %v1879
  %v1944 = vpack.c.b16 %v1884, %v1880
  %v1945 = vpack.c.b16 %v1885, %v1881
  %v1946 = vpack.c.b16 %v1890, %v1886
  %v1947 = vpack.c.b16 %v1891, %v1887
  %v1948 = vpack.c.b16 %v1892, %v1888
  %v1949 = vpack.c.b16 %v1893, %v1889
  %v1950 = vpack.c.b16 %v1898, %v1894
  %v1951 = vpack.c.b16 %v1899, %v1895
  %v1952 = vpack.c.b16 %v1900, %v1896
  %v1953 = vpack.c.b16 %v1901, %v1897
  %v1954 = vpack.c.b16 %v1906, %v1902
  %v1955 = vpack.c.b16 %v1907, %v1903
  %v1956 = vpack.c.b16 %v1908, %v1904
  %v1957 = vpack.c.b16 %v1909, %v1905
  %v1958 = vpack.c.b16 %v1914, %v1910
  %v1959 = vpack.c.b16 %v1915, %v1911
  %v1960 = vpack.c.b16 %v1916, %v1912
  %v1961 = vpack.c.b16 %v1917, %v1913
  %v1962 = vpack.c.b16 %v1922, %v1918
  %v1963 = vpack.c.b16 %v1923, %v1919
  %v1964 = vpack.c.b16 %v1924, %v1920
  %v1965 = vpack.c.b16 %v1925, %v1921
  %v1966 = vpack.c.b16 %v1930, %v1926
  %v1967 = vpack.c.b16 %v1931, %v1927
  %v1968 = vpack.c.b16 %v1932, %v1928
  %v1969 = vpack.c.b16 %v1933, %v1929
  %v1970 = vpack.c.b16 %v1938, %v1934
  %v1971 = vpack.c.b16 %v1939, %v1935
  %v1972 = vpack.c.b16 %v1940, %v1936
  %v1973 = vpack.c.b16 %v1941, %v1937
  %2006 = vmatpush.bf16.msra.mxu0 %v1970
  %2007 = vmatpush.bf16.msra.mxu0 %v1966
  %2008 = vmatpush.bf16.msra.mxu0 %v1962
  %2009 = vmatpush.bf16.msra.mxu0 %v1958
  %2010 = vmatpush.bf16.msra.mxu0 %v1954
  %2011 = vmatpush.bf16.msra.mxu0 %v1950
  %2012 = vmatpush.bf16.msra.mxu0 %v1946
  %2013 = vmatpush.bf16.msra.mxu0 %v1942
  %2014 = vmatmul.bf16.gmra.mxu0 %v1813
  %v2015 = vpop.f32.mrf.mxu0
  %v2016 = vadd.f32 0.0, %v2015
  %v2017 = vpop.f32.mrf.mxu0
  %v2018 = vadd.f32 0.0, %v2017
  %2019 = vdwg.mxu0
  %2020 = vmatpush.bf16.msra.mxu0 %v1971
  %2021 = vmatpush.bf16.msra.mxu0 %v1967
  %2022 = vmatpush.bf16.msra.mxu0 %v1963
  %2023 = vmatpush.bf16.msra.mxu0 %v1959
  %2024 = vmatpush.bf16.msra.mxu0 %v1955
  %2025 = vmatpush.bf16.msra.mxu0 %v1951
  %2026 = vmatpush.bf16.msra.mxu0 %v1947
  %2027 = vmatpush.bf16.msra.mxu0 %v1943
  %2028 = vmatmul.bf16.gmra.mxu0 %v1813
  %v2029 = vpop.f32.mrf.mxu0
  %v2030 = vadd.f32 0.0, %v2029
  %v2031 = vpop.f32.mrf.mxu0
  %v2032 = vadd.f32 0.0, %v2031
  %2033 = vdwg.mxu0
  %2034 = vmatpush.bf16.msra.mxu0 %v1972
  %2035 = vmatpush.bf16.msra.mxu0 %v1968
  %2036 = vmatpush.bf16.msra.mxu0 %v1964
  %2037 = vmatpush.bf16.msra.mxu0 %v1960
  %2038 = vmatpush.bf16.msra.mxu0 %v1956
  %2039 = vmatpush.bf16.msra.mxu0 %v1952
  %2040 = vmatpush.bf16.msra.mxu0 %v1948
  %2041 = vmatpush.bf16.msra.mxu0 %v1944
  %2042 = vmatmul.bf16.gmra.mxu0 %v1813
  %v2043 = vpop.f32.mrf.mxu0
  %v2044 = vadd.f32 0.0, %v2043
  %v2045 = vpop.f32.mrf.mxu0
  %v2046 = vadd.f32 0.0, %v2045
  %2047 = vdwg.mxu0
  %2048 = vmatpush.bf16.msra.mxu0 %v1973
  %2049 = vmatpush.bf16.msra.mxu0 %v1969
  %2050 = vmatpush.bf16.msra.mxu0 %v1965
  %2051 = vmatpush.bf16.msra.mxu0 %v1961
  %2052 = vmatpush.bf16.msra.mxu0 %v1957
  %2053 = vmatpush.bf16.msra.mxu0 %v1953
  %2054 = vmatpush.bf16.msra.mxu0 %v1949
  %2055 = vmatpush.bf16.msra.mxu0 %v1945
  %2056 = vmatmul.bf16.gmra.mxu0 %v1813
  %v2057 = vpop.f32.mrf.mxu0
  %v2058 = vadd.f32 0.0, %v2057
  %v2059 = vpop.f32.mrf.mxu0
  %v2060 = vadd.f32 0.0, %v2059
  %2061 = vdwg.mxu0
  %v2062 = vadd.f32 %v1803, %v2016
  %v2063 = vadd.f32 %v1804, %v2030
  %v2064 = vadd.f32 %v1805, %v2044
  %v2065 = vadd.f32 %v1806, %v2058
  %v2066 = vadd.f32 %v1807, %v2018
  %v2067 = vadd.f32 %v1808, %v2032
  %v2068 = vadd.f32 %v1809, %v2046
  %v2069 = vadd.f32 %v1810, %v2060
  %v2070 = vxor.u32 %v2062, 2147483648
  %v2071 = vxor.u32 %v2066, 2147483648
  %v2072 = vmul.f32 %v2070, 1.442695
  %v2073 = vpow.pop %v2072
  %v2074 = vmul.f32 %v2071, 1.442695
  %v2075 = vpow.pop %v2074
  %v2076 = vadd.f32 %v2073, 1.0
  %v2077 = vadd.f32 %v2075, 1.0
  %v2078 = vrcp.pop %v2076
  %v2079 = vmul.f32 %v2076, %v2078
  %v2080 = vsub.f32 1.0, %v2079
  %v2081 = vmul.f32 %v2078, %v2080
  %v2082 = vadd.f32 %v2078, %v2081
  %vm2083 = vweird.f32 %v2076
  %vm2084 = vweird.f32 %v2078
  %vm2085 = vmor %vm2083, %vm2084
  %v2086 = vsel %vm2085, %v2078, %v2082
  %v2087 = vand.u32 2147483647, %v2076
  %vm2088 = vcmp.eq.f32.partialorder %v2087, 8.507059e+37
  %v2089 = vand.u32 %v2076, 2147483648
  %v2090 = vor.u32 1.1754944e-38, %v2089
  %v2091 = vsel %vm2088, %v2090, %v2086
  %v2092 = vmul.f32 1.0, %v2091
  %v2093 = vrcp.pop %v2077
  %v2094 = vmul.f32 %v2077, %v2093
  %v2095 = vsub.f32 1.0, %v2094
  %v2096 = vmul.f32 %v2093, %v2095
  %v2097 = vadd.f32 %v2093, %v2096
  %vm2098 = vweird.f32 %v2077
  %vm2099 = vweird.f32 %v2093
  %vm2100 = vmor %vm2098, %vm2099
  %v2101 = vsel %vm2100, %v2093, %v2097
  %v2102 = vand.u32 2147483647, %v2077
  %vm2103 = vcmp.eq.f32.partialorder %v2102, 8.507059e+37
  %v2104 = vand.u32 %v2077, 2147483648
  %v2105 = vor.u32 1.1754944e-38, %v2104
  %v2106 = vsel %vm2103, %v2105, %v2101
  %v2107 = vmul.f32 1.0, %v2106
  %v2108 = vxor.u32 %v2063, 2147483648
  %v2109 = vxor.u32 %v2067, 2147483648
  %v2110 = vmul.f32 %v2108, 1.442695
  %v2111 = vpow.pop %v2110
  %v2112 = vmul.f32 %v2109, 1.442695
  %v2113 = vpow.pop %v2112
  %v2114 = vadd.f32 %v2111, 1.0
  %v2115 = vadd.f32 %v2113, 1.0
  %v2116 = vrcp.pop %v2114
  %v2117 = vmul.f32 %v2114, %v2116
  %v2118 = vsub.f32 1.0, %v2117
  %v2119 = vmul.f32 %v2116, %v2118
  %v2120 = vadd.f32 %v2116, %v2119
  %vm2121 = vweird.f32 %v2114
  %vm2122 = vweird.f32 %v2116
  %vm2123 = vmor %vm2121, %vm2122
  %v2124 = vsel %vm2123, %v2116, %v2120
  %v2125 = vand.u32 2147483647, %v2114
  %vm2126 = vcmp.eq.f32.partialorder %v2125, 8.507059e+37
  %v2127 = vand.u32 %v2114, 2147483648
  %v2128 = vor.u32 1.1754944e-38, %v2127
  %v2129 = vsel %vm2126, %v2128, %v2124
  %v2130 = vmul.f32 1.0, %v2129
  %v2131 = vrcp.pop %v2115
  %v2132 = vmul.f32 %v2115, %v2131
  %v2133 = vsub.f32 1.0, %v2132
  %v2134 = vmul.f32 %v2131, %v2133
  %v2135 = vadd.f32 %v2131, %v2134
  %vm2136 = vweird.f32 %v2115
  %vm2137 = vweird.f32 %v2131
  %vm2138 = vmor %vm2136, %vm2137
  %v2139 = vsel %vm2138, %v2131, %v2135
  %v2140 = vand.u32 2147483647, %v2115
  %vm2141 = vcmp.eq.f32.partialorder %v2140, 8.507059e+37
  %v2142 = vand.u32 %v2115, 2147483648
  %v2143 = vor.u32 1.1754944e-38, %v2142
  %v2144 = vsel %vm2141, %v2143, %v2139
  %v2145 = vmul.f32 1.0, %v2144
  %v2146 = vtanh.pop %v2064
  %v2147 = vtanh.pop %v2068
  %v2148 = vxor.u32 %v2065, 2147483648
  %v2149 = vxor.u32 %v2069, 2147483648
  %v2150 = vmul.f32 %v2148, 1.442695
  %v2151 = vpow.pop %v2150
  %v2152 = vmul.f32 %v2149, 1.442695
  %v2153 = vpow.pop %v2152
  %v2154 = vadd.f32 %v2151, 1.0
  %v2155 = vadd.f32 %v2153, 1.0
  %v2156 = vrcp.pop %v2154
  %v2157 = vmul.f32 %v2154, %v2156
  %v2158 = vsub.f32 1.0, %v2157
  %v2159 = vmul.f32 %v2156, %v2158
  %v2160 = vadd.f32 %v2156, %v2159
  %vm2161 = vweird.f32 %v2154
  %vm2162 = vweird.f32 %v2156
  %vm2163 = vmor %vm2161, %vm2162
  %v2164 = vsel %vm2163, %v2156, %v2160
  %v2165 = vand.u32 2147483647, %v2154
  %vm2166 = vcmp.eq.f32.partialorder %v2165, 8.507059e+37
  %v2167 = vand.u32 %v2154, 2147483648
  %v2168 = vor.u32 1.1754944e-38, %v2167
  %v2169 = vsel %vm2166, %v2168, %v2164
  %v2170 = vmul.f32 1.0, %v2169
  %v2171 = vrcp.pop %v2155
  %v2172 = vmul.f32 %v2155, %v2171
  %v2173 = vsub.f32 1.0, %v2172
  %v2174 = vmul.f32 %v2171, %v2173
  %v2175 = vadd.f32 %v2171, %v2174
  %vm2176 = vweird.f32 %v2155
  %vm2177 = vweird.f32 %v2171
  %vm2178 = vmor %vm2176, %vm2177
  %v2179 = vsel %vm2178, %v2171, %v2175
  %v2180 = vand.u32 2147483647, %v2155
  %vm2181 = vcmp.eq.f32.partialorder %v2180, 8.507059e+37
  %v2182 = vand.u32 %v2155, 2147483648
  %v2183 = vor.u32 1.1754944e-38, %v2182
  %v2184 = vsel %vm2181, %v2183, %v2179
  %v2185 = vmul.f32 1.0, %v2184
  %v2186 = vld [vmem:[#allocation4] sm:$0xff]
  %v2187 = vld [vmem:[#allocation4 + $0x8] sm:$0xff]
  %v2188 = vmul.f32 %v2130, %v2186
  %v2189 = vmul.f32 %v2145, %v2187
  %v2190 = vmul.f32 %v2092, %v2146
  %v2191 = vmul.f32 %v2107, %v2147
  %v2192 = vadd.f32 %v2188, %v2190
  %v2193 = vadd.f32 %v2189, %v2191
  %v2194 = vtanh.pop %v2192
  %v2195 = vtanh.pop %v2193
  %v2196 = vmul.f32 %v2170, %v2194
  %v2197 = vmul.f32 %v2185, %v2195
  %2198 = vst [vmem:[#allocation4] sm:$0xff] %v2192
  %2199 = vst [vmem:[#allocation4 + $0x8] sm:$0xff] %v2193
  %2200 = vst [vmem:[#allocation3] sm:$0xff] %v2196
  %2201 = vst [vmem:[#allocation3 + $0x8] sm:$0xff] %v2197
  %v2202 = vpack.c.bf16 %v2196, %v2196
  %v2203 = vpack.c.bf16 %v2197, %v2197
  %s2204 = scalar_lea.vmem %s6, 24
  %2205 = vst [vmem:[%s2204] sm:$0xf] %v2202
  %2206 = vst [vmem:[%s2204 + $0x4] sm:$0xf] %v2203
  %s2207 = smul.u32 8, 4
  %s2208 = smul.addr %s2207, 4
  %s2209 = scalar_lea.vmem [#allocation2], %s2208
  %v2210 = vld [vmem:[%s2209] sm:$0xff]
  %v2211 = vld [vmem:[%s2209 + $0x8] sm:$0xff]
  %v2212 = vld [vmem:[%s2209 + $0x10] sm:$0xff]
  %v2213 = vld [vmem:[%s2209 + $0x18] sm:$0xff]
  %v2214 = vunpack.c.l.bf16 %v2210
  %v2215 = vunpack.c.h.bf16 %v2210
  %v2216 = vunpack.c.l.bf16 %v2211
  %v2217 = vunpack.c.h.bf16 %v2211
  %v2218 = vunpack.c.l.bf16 %v2212
  %v2219 = vunpack.c.h.bf16 %v2212
  %v2220 = vunpack.c.l.bf16 %v2213
  %v2221 = vunpack.c.h.bf16 %v2213
  %v2222 = vld [vmem:[#allocation3] sm:$0xff]
  %v2223 = vld [vmem:[#allocation3 + $0x8] sm:$0xff]
  %v2224 = vpack.c.bf16 %v2223, %v2222
  %v2225 = vld [vmem:[%s4] sm:$0xff]
  %v2226 = vld [vmem:[%s4 + $0x8] sm:$0xff]
  %v2227 = vld [vmem:[%s4 + $0x10] sm:$0xff]
  %v2228 = vld [vmem:[%s4 + $0x18] sm:$0xff]
  %v2229 = vld [vmem:[%s4 + $0x20] sm:$0xff]
  %v2230 = vld [vmem:[%s4 + $0x28] sm:$0xff]
  %v2231 = vld [vmem:[%s4 + $0x30] sm:$0xff]
  %v2232 = vld [vmem:[%s4 + $0x38] sm:$0xff]
  %v2233 = vld [vmem:[%s4 + $0x40] sm:$0xff]
  %v2234 = vld [vmem:[%s4 + $0x48] sm:$0xff]
  %v2235 = vld [vmem:[%s4 + $0x50] sm:$0xff]
  %v2236 = vld [vmem:[%s4 + $0x58] sm:$0xff]
  %v2237 = vld [vmem:[%s4 + $0x60] sm:$0xff]
  %v2238 = vld [vmem:[%s4 + $0x68] sm:$0xff]
  %v2239 = vld [vmem:[%s4 + $0x70] sm:$0xff]
  %v2240 = vld [vmem:[%s4 + $0x78] sm:$0xff]
  %v2241 = vld [vmem:[%s4 + $0x80] sm:$0xff]
  %v2242 = vld [vmem:[%s4 + $0x88] sm:$0xff]
  %v2243 = vld [vmem:[%s4 + $0x90] sm:$0xff]
  %v2244 = vld [vmem:[%s4 + $0x98] sm:$0xff]
  %v2245 = vld [vmem:[%s4 + $0xa0] sm:$0xff]
  %v2246 = vld [vmem:[%s4 + $0xa8] sm:$0xff]
  %v2247 = vld [vmem:[%s4 + $0xb0] sm:$0xff]
  %v2248 = vld [vmem:[%s4 + $0xb8] sm:$0xff]
  %v2249 = vld [vmem:[%s4 + $0xc0] sm:$0xff]
  %v2250 = vld [vmem:[%s4 + $0xc8] sm:$0xff]
  %v2251 = vld [vmem:[%s4 + $0xd0] sm:$0xff]
  %v2252 = vld [vmem:[%s4 + $0xd8] sm:$0xff]
  %v2253 = vld [vmem:[%s4 + $0xe0] sm:$0xff]
  %v2254 = vld [vmem:[%s4 + $0xe8] sm:$0xff]
  %v2255 = vld [vmem:[%s4 + $0xf0] sm:$0xff]
  %v2256 = vld [vmem:[%s4 + $0xf8] sm:$0xff]
  %v2289 = vunpack.c.l.b16 %v2225
  %v2290 = vunpack.c.h.b16 %v2225
  %v2291 = vunpack.c.l.b16 %v2226
  %v2292 = vunpack.c.h.b16 %v2226
  %v2293 = vunpack.c.l.b16 %v2227
  %v2294 = vunpack.c.h.b16 %v2227
  %v2295 = vunpack.c.l.b16 %v2228
  %v2296 = vunpack.c.h.b16 %v2228
  %v2297 = vunpack.c.l.b16 %v2229
  %v2298 = vunpack.c.h.b16 %v2229
  %v2299 = vunpack.c.l.b16 %v2230
  %v2300 = vunpack.c.h.b16 %v2230
  %v2301 = vunpack.c.l.b16 %v2231
  %v2302 = vunpack.c.h.b16 %v2231
  %v2303 = vunpack.c.l.b16 %v2232
  %v2304 = vunpack.c.h.b16 %v2232
  %v2305 = vunpack.c.l.b16 %v2233
  %v2306 = vunpack.c.h.b16 %v2233
  %v2307 = vunpack.c.l.b16 %v2234
  %v2308 = vunpack.c.h.b16 %v2234
  %v2309 = vunpack.c.l.b16 %v2235
  %v2310 = vunpack.c.h.b16 %v2235
  %v2311 = vunpack.c.l.b16 %v2236
  %v2312 = vunpack.c.h.b16 %v2236
  %v2313 = vunpack.c.l.b16 %v2237
  %v2314 = vunpack.c.h.b16 %v2237
  %v2315 = vunpack.c.l.b16 %v2238
  %v2316 = vunpack.c.h.b16 %v2238
  %v2317 = vunpack.c.l.b16 %v2239
  %v2318 = vunpack.c.h.b16 %v2239
  %v2319 = vunpack.c.l.b16 %v2240
  %v2320 = vunpack.c.h.b16 %v2240
  %v2321 = vunpack.c.l.b16 %v2241
  %v2322 = vunpack.c.h.b16 %v2241
  %v2323 = vunpack.c.l.b16 %v2242
  %v2324 = vunpack.c.h.b16 %v2242
  %v2325 = vunpack.c.l.b16 %v2243
  %v2326 = vunpack.c.h.b16 %v2243
  %v2327 = vunpack.c.l.b16 %v2244
  %v2328 = vunpack.c.h.b16 %v2244
  %v2329 = vunpack.c.l.b16 %v2245
  %v2330 = vunpack.c.h.b16 %v2245
  %v2331 = vunpack.c.l.b16 %v2246
  %v2332 = vunpack.c.h.b16 %v2246
  %v2333 = vunpack.c.l.b16 %v2247
  %v2334 = vunpack.c.h.b16 %v2247
  %v2335 = vunpack.c.l.b16 %v2248
  %v2336 = vunpack.c.h.b16 %v2248
  %v2337 = vunpack.c.l.b16 %v2249
  %v2338 = vunpack.c.h.b16 %v2249
  %v2339 = vunpack.c.l.b16 %v2250
  %v2340 = vunpack.c.h.b16 %v2250
  %v2341 = vunpack.c.l.b16 %v2251
  %v2342 = vunpack.c.h.b16 %v2251
  %v2343 = vunpack.c.l.b16 %v2252
  %v2344 = vunpack.c.h.b16 %v2252
  %v2345 = vunpack.c.l.b16 %v2253
  %v2346 = vunpack.c.h.b16 %v2253
  %v2347 = vunpack.c.l.b16 %v2254
  %v2348 = vunpack.c.h.b16 %v2254
  %v2349 = vunpack.c.l.b16 %v2255
  %v2350 = vunpack.c.h.b16 %v2255
  %v2351 = vunpack.c.l.b16 %v2256
  %v2352 = vunpack.c.h.b16 %v2256
  %v2353 = vpack.c.b16 %v2293, %v2289
  %v2354 = vpack.c.b16 %v2294, %v2290
  %v2355 = vpack.c.b16 %v2295, %v2291
  %v2356 = vpack.c.b16 %v2296, %v2292
  %v2357 = vpack.c.b16 %v2301, %v2297
  %v2358 = vpack.c.b16 %v2302, %v2298
  %v2359 = vpack.c.b16 %v2303, %v2299
  %v2360 = vpack.c.b16 %v2304, %v2300
  %v2361 = vpack.c.b16 %v2309, %v2305
  %v2362 = vpack.c.b16 %v2310, %v2306
  %v2363 = vpack.c.b16 %v2311, %v2307
  %v2364 = vpack.c.b16 %v2312, %v2308
  %v2365 = vpack.c.b16 %v2317, %v2313
  %v2366 = vpack.c.b16 %v2318, %v2314
  %v2367 = vpack.c.b16 %v2319, %v2315
  %v2368 = vpack.c.b16 %v2320, %v2316
  %v2369 = vpack.c.b16 %v2325, %v2321
  %v2370 = vpack.c.b16 %v2326, %v2322
  %v2371 = vpack.c.b16 %v2327, %v2323
  %v2372 = vpack.c.b16 %v2328, %v2324
  %v2373 = vpack.c.b16 %v2333, %v2329
  %v2374 = vpack.c.b16 %v2334, %v2330
  %v2375 = vpack.c.b16 %v2335, %v2331
  %v2376 = vpack.c.b16 %v2336, %v2332
  %v2377 = vpack.c.b16 %v2341, %v2337
  %v2378 = vpack.c.b16 %v2342, %v2338
  %v2379 = vpack.c.b16 %v2343, %v2339
  %v2380 = vpack.c.b16 %v2344, %v2340
  %v2381 = vpack.c.b16 %v2349, %v2345
  %v2382 = vpack.c.b16 %v2350, %v2346
  %v2383 = vpack.c.b16 %v2351, %v2347
  %v2384 = vpack.c.b16 %v2352, %v2348
  %2417 = vmatpush.bf16.msra.mxu0 %v2381
  %2418 = vmatpush.bf16.msra.mxu0 %v2377
  %2419 = vmatpush.bf16.msra.mxu0 %v2373
  %2420 = vmatpush.bf16.msra.mxu0 %v2369
  %2421 = vmatpush.bf16.msra.mxu0 %v2365
  %2422 = vmatpush.bf16.msra.mxu0 %v2361
  %2423 = vmatpush.bf16.msra.mxu0 %v2357
  %2424 = vmatpush.bf16.msra.mxu0 %v2353
  %2425 = vmatmul.bf16.gmra.mxu0 %v2224
  %v2426 = vpop.f32.mrf.mxu0
  %v2427 = vadd.f32 0.0, %v2426
  %v2428 = vpop.f32.mrf.mxu0
  %v2429 = vadd.f32 0.0, %v2428
  %2430 = vdwg.mxu0
  %2431 = vmatpush.bf16.msra.mxu0 %v2382
  %2432 = vmatpush.bf16.msra.mxu0 %v2378
  %2433 = vmatpush.bf16.msra.mxu0 %v2374
  %2434 = vmatpush.bf16.msra.mxu0 %v2370
  %2435 = vmatpush.bf16.msra.mxu0 %v2366
  %2436 = vmatpush.bf16.msra.mxu0 %v2362
  %2437 = vmatpush.bf16.msra.mxu0 %v2358
  %2438 = vmatpush.bf16.msra.mxu0 %v2354
  %2439 = vmatmul.bf16.gmra.mxu0 %v2224
  %v2440 = vpop.f32.mrf.mxu0
  %v2441 = vadd.f32 0.0, %v2440
  %v2442 = vpop.f32.mrf.mxu0
  %v2443 = vadd.f32 0.0, %v2442
  %2444 = vdwg.mxu0
  %2445 = vmatpush.bf16.msra.mxu0 %v2383
  %2446 = vmatpush.bf16.msra.mxu0 %v2379
  %2447 = vmatpush.bf16.msra.mxu0 %v2375
  %2448 = vmatpush.bf16.msra.mxu0 %v2371
  %2449 = vmatpush.bf16.msra.mxu0 %v2367
  %2450 = vmatpush.bf16.msra.mxu0 %v2363
  %2451 = vmatpush.bf16.msra.mxu0 %v2359
  %2452 = vmatpush.bf16.msra.mxu0 %v2355
  %2453 = vmatmul.bf16.gmra.mxu0 %v2224
  %v2454 = vpop.f32.mrf.mxu0
  %v2455 = vadd.f32 0.0, %v2454
  %v2456 = vpop.f32.mrf.mxu0
  %v2457 = vadd.f32 0.0, %v2456
  %2458 = vdwg.mxu0
  %2459 = vmatpush.bf16.msra.mxu0 %v2384
  %2460 = vmatpush.bf16.msra.mxu0 %v2380
  %2461 = vmatpush.bf16.msra.mxu0 %v2376
  %2462 = vmatpush.bf16.msra.mxu0 %v2372
  %2463 = vmatpush.bf16.msra.mxu0 %v2368
  %2464 = vmatpush.bf16.msra.mxu0 %v2364
  %2465 = vmatpush.bf16.msra.mxu0 %v2360
  %2466 = vmatpush.bf16.msra.mxu0 %v2356
  %2467 = vmatmul.bf16.gmra.mxu0 %v2224
  %v2468 = vpop.f32.mrf.mxu0
  %v2469 = vadd.f32 0.0, %v2468
  %v2470 = vpop.f32.mrf.mxu0
  %v2471 = vadd.f32 0.0, %v2470
  %2472 = vdwg.mxu0
  %v2473 = vadd.f32 %v2214, %v2427
  %v2474 = vadd.f32 %v2215, %v2441
  %v2475 = vadd.f32 %v2216, %v2455
  %v2476 = vadd.f32 %v2217, %v2469
  %v2477 = vadd.f32 %v2218, %v2429
  %v2478 = vadd.f32 %v2219, %v2443
  %v2479 = vadd.f32 %v2220, %v2457
  %v2480 = vadd.f32 %v2221, %v2471
  %v2481 = vxor.u32 %v2473, 2147483648
  %v2482 = vxor.u32 %v2477, 2147483648
  %v2483 = vmul.f32 %v2481, 1.442695
  %v2484 = vpow.pop %v2483
  %v2485 = vmul.f32 %v2482, 1.442695
  %v2486 = vpow.pop %v2485
  %v2487 = vadd.f32 %v2484, 1.0
  %v2488 = vadd.f32 %v2486, 1.0
  %v2489 = vrcp.pop %v2487
  %v2490 = vmul.f32 %v2487, %v2489
  %v2491 = vsub.f32 1.0, %v2490
  %v2492 = vmul.f32 %v2489, %v2491
  %v2493 = vadd.f32 %v2489, %v2492
  %vm2494 = vweird.f32 %v2487
  %vm2495 = vweird.f32 %v2489
  %vm2496 = vmor %vm2494, %vm2495
  %v2497 = vsel %vm2496, %v2489, %v2493
  %v2498 = vand.u32 2147483647, %v2487
  %vm2499 = vcmp.eq.f32.partialorder %v2498, 8.507059e+37
  %v2500 = vand.u32 %v2487, 2147483648
  %v2501 = vor.u32 1.1754944e-38, %v2500
  %v2502 = vsel %vm2499, %v2501, %v2497
  %v2503 = vmul.f32 1.0, %v2502
  %v2504 = vrcp.pop %v2488
  %v2505 = vmul.f32 %v2488, %v2504
  %v2506 = vsub.f32 1.0, %v2505
  %v2507 = vmul.f32 %v2504, %v2506
  %v2508 = vadd.f32 %v2504, %v2507
  %vm2509 = vweird.f32 %v2488
  %vm2510 = vweird.f32 %v2504
  %vm2511 = vmor %vm2509, %vm2510
  %v2512 = vsel %vm2511, %v2504, %v2508
  %v2513 = vand.u32 2147483647, %v2488
  %vm2514 = vcmp.eq.f32.partialorder %v2513, 8.507059e+37
  %v2515 = vand.u32 %v2488, 2147483648
  %v2516 = vor.u32 1.1754944e-38, %v2515
  %v2517 = vsel %vm2514, %v2516, %v2512
  %v2518 = vmul.f32 1.0, %v2517
  %v2519 = vxor.u32 %v2474, 2147483648
  %v2520 = vxor.u32 %v2478, 2147483648
  %v2521 = vmul.f32 %v2519, 1.442695
  %v2522 = vpow.pop %v2521
  %v2523 = vmul.f32 %v2520, 1.442695
  %v2524 = vpow.pop %v2523
  %v2525 = vadd.f32 %v2522, 1.0
  %v2526 = vadd.f32 %v2524, 1.0
  %v2527 = vrcp.pop %v2525
  %v2528 = vmul.f32 %v2525, %v2527
  %v2529 = vsub.f32 1.0, %v2528
  %v2530 = vmul.f32 %v2527, %v2529
  %v2531 = vadd.f32 %v2527, %v2530
  %vm2532 = vweird.f32 %v2525
  %vm2533 = vweird.f32 %v2527
  %vm2534 = vmor %vm2532, %vm2533
  %v2535 = vsel %vm2534, %v2527, %v2531
  %v2536 = vand.u32 2147483647, %v2525
  %vm2537 = vcmp.eq.f32.partialorder %v2536, 8.507059e+37
  %v2538 = vand.u32 %v2525, 2147483648
  %v2539 = vor.u32 1.1754944e-38, %v2538
  %v2540 = vsel %vm2537, %v2539, %v2535
  %v2541 = vmul.f32 1.0, %v2540
  %v2542 = vrcp.pop %v2526
  %v2543 = vmul.f32 %v2526, %v2542
  %v2544 = vsub.f32 1.0, %v2543
  %v2545 = vmul.f32 %v2542, %v2544
  %v2546 = vadd.f32 %v2542, %v2545
  %vm2547 = vweird.f32 %v2526
  %vm2548 = vweird.f32 %v2542
  %vm2549 = vmor %vm2547, %vm2548
  %v2550 = vsel %vm2549, %v2542, %v2546
  %v2551 = vand.u32 2147483647, %v2526
  %vm2552 = vcmp.eq.f32.partialorder %v2551, 8.507059e+37
  %v2553 = vand.u32 %v2526, 2147483648
  %v2554 = vor.u32 1.1754944e-38, %v2553
  %v2555 = vsel %vm2552, %v2554, %v2550
  %v2556 = vmul.f32 1.0, %v2555
  %v2557 = vtanh.pop %v2475
  %v2558 = vtanh.pop %v2479
  %v2559 = vxor.u32 %v2476, 2147483648
  %v2560 = vxor.u32 %v2480, 2147483648
  %v2561 = vmul.f32 %v2559, 1.442695
  %v2562 = vpow.pop %v2561
  %v2563 = vmul.f32 %v2560, 1.442695
  %v2564 = vpow.pop %v2563
  %v2565 = vadd.f32 %v2562, 1.0
  %v2566 = vadd.f32 %v2564, 1.0
  %v2567 = vrcp.pop %v2565
  %v2568 = vmul.f32 %v2565, %v2567
  %v2569 = vsub.f32 1.0, %v2568
  %v2570 = vmul.f32 %v2567, %v2569
  %v2571 = vadd.f32 %v2567, %v2570
  %vm2572 = vweird.f32 %v2565
  %vm2573 = vweird.f32 %v2567
  %vm2574 = vmor %vm2572, %vm2573
  %v2575 = vsel %vm2574, %v2567, %v2571
  %v2576 = vand.u32 2147483647, %v2565
  %vm2577 = vcmp.eq.f32.partialorder %v2576, 8.507059e+37
  %v2578 = vand.u32 %v2565, 2147483648
  %v2579 = vor.u32 1.1754944e-38, %v2578
  %v2580 = vsel %vm2577, %v2579, %v2575
  %v2581 = vmul.f32 1.0, %v2580
  %v2582 = vrcp.pop %v2566
  %v2583 = vmul.f32 %v2566, %v2582
  %v2584 = vsub.f32 1.0, %v2583
  %v2585 = vmul.f32 %v2582, %v2584
  %v2586 = vadd.f32 %v2582, %v2585
  %vm2587 = vweird.f32 %v2566
  %vm2588 = vweird.f32 %v2582
  %vm2589 = vmor %vm2587, %vm2588
  %v2590 = vsel %vm2589, %v2582, %v2586
  %v2591 = vand.u32 2147483647, %v2566
  %vm2592 = vcmp.eq.f32.partialorder %v2591, 8.507059e+37
  %v2593 = vand.u32 %v2566, 2147483648
  %v2594 = vor.u32 1.1754944e-38, %v2593
  %v2595 = vsel %vm2592, %v2594, %v2590
  %v2596 = vmul.f32 1.0, %v2595
  %v2597 = vld [vmem:[#allocation4] sm:$0xff]
  %v2598 = vld [vmem:[#allocation4 + $0x8] sm:$0xff]
  %v2599 = vmul.f32 %v2541, %v2597
  %v2600 = vmul.f32 %v2556, %v2598
  %v2601 = vmul.f32 %v2503, %v2557
  %v2602 = vmul.f32 %v2518, %v2558
  %v2603 = vadd.f32 %v2599, %v2601
  %v2604 = vadd.f32 %v2600, %v2602
  %v2605 = vtanh.pop %v2603
  %v2606 = vtanh.pop %v2604
  %v2607 = vmul.f32 %v2581, %v2605
  %v2608 = vmul.f32 %v2596, %v2606
  %2609 = vst [vmem:[#allocation4] sm:$0xff] %v2603
  %2610 = vst [vmem:[#allocation4 + $0x8] sm:$0xff] %v2604
  %2611 = vst [vmem:[#allocation3] sm:$0xff] %v2607
  %2612 = vst [vmem:[#allocation3 + $0x8] sm:$0xff] %v2608
  %v2613 = vpack.c.bf16 %v2607, %v2607
  %v2614 = vpack.c.bf16 %v2608, %v2608
  %s2615 = scalar_lea.vmem %s6, 32
  %2616 = vst [vmem:[%s2615] sm:$0xf] %v2613
  %2617 = vst [vmem:[%s2615 + $0x4] sm:$0xf] %v2614
  %s2618 = smul.u32 10, 4
  %s2619 = smul.addr %s2618, 4
  %s2620 = scalar_lea.vmem [#allocation2], %s2619
  %v2621 = vld [vmem:[%s2620] sm:$0xff]
  %v2622 = vld [vmem:[%s2620 + $0x8] sm:$0xff]
  %v2623 = vld [vmem:[%s2620 + $0x10] sm:$0xff]
  %v2624 = vld [vmem:[%s2620 + $0x18] sm:$0xff]
  %v2625 = vunpack.c.l.bf16 %v2621
  %v2626 = vunpack.c.h.bf16 %v2621
  %v2627 = vunpack.c.l.bf16 %v2622
  %v2628 = vunpack.c.h.bf16 %v2622
  %v2629 = vunpack.c.l.bf16 %v2623
  %v2630 = vunpack.c.h.bf16 %v2623
  %v2631 = vunpack.c.l.bf16 %v2624
  %v2632 = vunpack.c.h.bf16 %v2624
  %v2633 = vld [vmem:[#allocation3] sm:$0xff]
  %v2634 = vld [vmem:[#allocation3 + $0x8] sm:$0xff]
  %v2635 = vpack.c.bf16 %v2634, %v2633
  %v2636 = vld [vmem:[%s4] sm:$0xff]
  %v2637 = vld [vmem:[%s4 + $0x8] sm:$0xff]
  %v2638 = vld [vmem:[%s4 + $0x10] sm:$0xff]
  %v2639 = vld [vmem:[%s4 + $0x18] sm:$0xff]
  %v2640 = vld [vmem:[%s4 + $0x20] sm:$0xff]
  %v2641 = vld [vmem:[%s4 + $0x28] sm:$0xff]
  %v2642 = vld [vmem:[%s4 + $0x30] sm:$0xff]
  %v2643 = vld [vmem:[%s4 + $0x38] sm:$0xff]
  %v2644 = vld [vmem:[%s4 + $0x40] sm:$0xff]
  %v2645 = vld [vmem:[%s4 + $0x48] sm:$0xff]
  %v2646 = vld [vmem:[%s4 + $0x50] sm:$0xff]
  %v2647 = vld [vmem:[%s4 + $0x58] sm:$0xff]
  %v2648 = vld [vmem:[%s4 + $0x60] sm:$0xff]
  %v2649 = vld [vmem:[%s4 + $0x68] sm:$0xff]
  %v2650 = vld [vmem:[%s4 + $0x70] sm:$0xff]
  %v2651 = vld [vmem:[%s4 + $0x78] sm:$0xff]
  %v2652 = vld [vmem:[%s4 + $0x80] sm:$0xff]
  %v2653 = vld [vmem:[%s4 + $0x88] sm:$0xff]
  %v2654 = vld [vmem:[%s4 + $0x90] sm:$0xff]
  %v2655 = vld [vmem:[%s4 + $0x98] sm:$0xff]
  %v2656 = vld [vmem:[%s4 + $0xa0] sm:$0xff]
  %v2657 = vld [vmem:[%s4 + $0xa8] sm:$0xff]
  %v2658 = vld [vmem:[%s4 + $0xb0] sm:$0xff]
  %v2659 = vld [vmem:[%s4 + $0xb8] sm:$0xff]
  %v2660 = vld [vmem:[%s4 + $0xc0] sm:$0xff]
  %v2661 = vld [vmem:[%s4 + $0xc8] sm:$0xff]
  %v2662 = vld [vmem:[%s4 + $0xd0] sm:$0xff]
  %v2663 = vld [vmem:[%s4 + $0xd8] sm:$0xff]
  %v2664 = vld [vmem:[%s4 + $0xe0] sm:$0xff]
  %v2665 = vld [vmem:[%s4 + $0xe8] sm:$0xff]
  %v2666 = vld [vmem:[%s4 + $0xf0] sm:$0xff]
  %v2667 = vld [vmem:[%s4 + $0xf8] sm:$0xff]
  %v2700 = vunpack.c.l.b16 %v2636
  %v2701 = vunpack.c.h.b16 %v2636
  %v2702 = vunpack.c.l.b16 %v2637
  %v2703 = vunpack.c.h.b16 %v2637
  %v2704 = vunpack.c.l.b16 %v2638
  %v2705 = vunpack.c.h.b16 %v2638
  %v2706 = vunpack.c.l.b16 %v2639
  %v2707 = vunpack.c.h.b16 %v2639
  %v2708 = vunpack.c.l.b16 %v2640
  %v2709 = vunpack.c.h.b16 %v2640
  %v2710 = vunpack.c.l.b16 %v2641
  %v2711 = vunpack.c.h.b16 %v2641
  %v2712 = vunpack.c.l.b16 %v2642
  %v2713 = vunpack.c.h.b16 %v2642
  %v2714 = vunpack.c.l.b16 %v2643
  %v2715 = vunpack.c.h.b16 %v2643
  %v2716 = vunpack.c.l.b16 %v2644
  %v2717 = vunpack.c.h.b16 %v2644
  %v2718 = vunpack.c.l.b16 %v2645
  %v2719 = vunpack.c.h.b16 %v2645
  %v2720 = vunpack.c.l.b16 %v2646
  %v2721 = vunpack.c.h.b16 %v2646
  %v2722 = vunpack.c.l.b16 %v2647
  %v2723 = vunpack.c.h.b16 %v2647
  %v2724 = vunpack.c.l.b16 %v2648
  %v2725 = vunpack.c.h.b16 %v2648
  %v2726 = vunpack.c.l.b16 %v2649
  %v2727 = vunpack.c.h.b16 %v2649
  %v2728 = vunpack.c.l.b16 %v2650
  %v2729 = vunpack.c.h.b16 %v2650
  %v2730 = vunpack.c.l.b16 %v2651
  %v2731 = vunpack.c.h.b16 %v2651
  %v2732 = vunpack.c.l.b16 %v2652
  %v2733 = vunpack.c.h.b16 %v2652
  %v2734 = vunpack.c.l.b16 %v2653
  %v2735 = vunpack.c.h.b16 %v2653
  %v2736 = vunpack.c.l.b16 %v2654
  %v2737 = vunpack.c.h.b16 %v2654
  %v2738 = vunpack.c.l.b16 %v2655
  %v2739 = vunpack.c.h.b16 %v2655
  %v2740 = vunpack.c.l.b16 %v2656
  %v2741 = vunpack.c.h.b16 %v2656
  %v2742 = vunpack.c.l.b16 %v2657
  %v2743 = vunpack.c.h.b16 %v2657
  %v2744 = vunpack.c.l.b16 %v2658
  %v2745 = vunpack.c.h.b16 %v2658
  %v2746 = vunpack.c.l.b16 %v2659
  %v2747 = vunpack.c.h.b16 %v2659
  %v2748 = vunpack.c.l.b16 %v2660
  %v2749 = vunpack.c.h.b16 %v2660
  %v2750 = vunpack.c.l.b16 %v2661
  %v2751 = vunpack.c.h.b16 %v2661
  %v2752 = vunpack.c.l.b16 %v2662
  %v2753 = vunpack.c.h.b16 %v2662
  %v2754 = vunpack.c.l.b16 %v2663
  %v2755 = vunpack.c.h.b16 %v2663
  %v2756 = vunpack.c.l.b16 %v2664
  %v2757 = vunpack.c.h.b16 %v2664
  %v2758 = vunpack.c.l.b16 %v2665
  %v2759 = vunpack.c.h.b16 %v2665
  %v2760 = vunpack.c.l.b16 %v2666
  %v2761 = vunpack.c.h.b16 %v2666
  %v2762 = vunpack.c.l.b16 %v2667
  %v2763 = vunpack.c.h.b16 %v2667
  %v2764 = vpack.c.b16 %v2704, %v2700
  %v2765 = vpack.c.b16 %v2705, %v2701
  %v2766 = vpack.c.b16 %v2706, %v2702
  %v2767 = vpack.c.b16 %v2707, %v2703
  %v2768 = vpack.c.b16 %v2712, %v2708
  %v2769 = vpack.c.b16 %v2713, %v2709
  %v2770 = vpack.c.b16 %v2714, %v2710
  %v2771 = vpack.c.b16 %v2715, %v2711
  %v2772 = vpack.c.b16 %v2720, %v2716
  %v2773 = vpack.c.b16 %v2721, %v2717
  %v2774 = vpack.c.b16 %v2722, %v2718
  %v2775 = vpack.c.b16 %v2723, %v2719
  %v2776 = vpack.c.b16 %v2728, %v2724
  %v2777 = vpack.c.b16 %v2729, %v2725
  %v2778 = vpack.c.b16 %v2730, %v2726
  %v2779 = vpack.c.b16 %v2731, %v2727
  %v2780 = vpack.c.b16 %v2736, %v2732
  %v2781 = vpack.c.b16 %v2737, %v2733
  %v2782 = vpack.c.b16 %v2738, %v2734
  %v2783 = vpack.c.b16 %v2739, %v2735
  %v2784 = vpack.c.b16 %v2744, %v2740
  %v2785 = vpack.c.b16 %v2745, %v2741
  %v2786 = vpack.c.b16 %v2746, %v2742
  %v2787 = vpack.c.b16 %v2747, %v2743
  %v2788 = vpack.c.b16 %v2752, %v2748
  %v2789 = vpack.c.b16 %v2753, %v2749
  %v2790 = vpack.c.b16 %v2754, %v2750
  %v2791 = vpack.c.b16 %v2755, %v2751
  %v2792 = vpack.c.b16 %v2760, %v2756
  %v2793 = vpack.c.b16 %v2761, %v2757
  %v2794 = vpack.c.b16 %v2762, %v2758
  %v2795 = vpack.c.b16 %v2763, %v2759
  %2828 = vmatpush.bf16.msra.mxu0 %v2792
  %2829 = vmatpush.bf16.msra.mxu0 %v2788
  %2830 = vmatpush.bf16.msra.mxu0 %v2784
  %2831 = vmatpush.bf16.msra.mxu0 %v2780
  %2832 = vmatpush.bf16.msra.mxu0 %v2776
  %2833 = vmatpush.bf16.msra.mxu0 %v2772
  %2834 = vmatpush.bf16.msra.mxu0 %v2768
  %2835 = vmatpush.bf16.msra.mxu0 %v2764
  %2836 = vmatmul.bf16.gmra.mxu0 %v2635
  %v2837 = vpop.f32.mrf.mxu0
  %v2838 = vadd.f32 0.0, %v2837
  %v2839 = vpop.f32.mrf.mxu0
  %v2840 = vadd.f32 0.0, %v2839
  %2841 = vdwg.mxu0
  %2842 = vmatpush.bf16.msra.mxu0 %v2793
  %2843 = vmatpush.bf16.msra.mxu0 %v2789
  %2844 = vmatpush.bf16.msra.mxu0 %v2785
  %2845 = vmatpush.bf16.msra.mxu0 %v2781
  %2846 = vmatpush.bf16.msra.mxu0 %v2777
  %2847 = vmatpush.bf16.msra.mxu0 %v2773
  %2848 = vmatpush.bf16.msra.mxu0 %v2769
  %2849 = vmatpush.bf16.msra.mxu0 %v2765
  %2850 = vmatmul.bf16.gmra.mxu0 %v2635
  %v2851 = vpop.f32.mrf.mxu0
  %v2852 = vadd.f32 0.0, %v2851
  %v2853 = vpop.f32.mrf.mxu0
  %v2854 = vadd.f32 0.0, %v2853
  %2855 = vdwg.mxu0
  %2856 = vmatpush.bf16.msra.mxu0 %v2794
  %2857 = vmatpush.bf16.msra.mxu0 %v2790
  %2858 = vmatpush.bf16.msra.mxu0 %v2786
  %2859 = vmatpush.bf16.msra.mxu0 %v2782
  %2860 = vmatpush.bf16.msra.mxu0 %v2778
  %2861 = vmatpush.bf16.msra.mxu0 %v2774
  %2862 = vmatpush.bf16.msra.mxu0 %v2770
  %2863 = vmatpush.bf16.msra.mxu0 %v2766
  %2864 = vmatmul.bf16.gmra.mxu0 %v2635
  %v2865 = vpop.f32.mrf.mxu0
  %v2866 = vadd.f32 0.0, %v2865
  %v2867 = vpop.f32.mrf.mxu0
  %v2868 = vadd.f32 0.0, %v2867
  %2869 = vdwg.mxu0
  %2870 = vmatpush.bf16.msra.mxu0 %v2795
  %2871 = vmatpush.bf16.msra.mxu0 %v2791
  %2872 = vmatpush.bf16.msra.mxu0 %v2787
  %2873 = vmatpush.bf16.msra.mxu0 %v2783
  %2874 = vmatpush.bf16.msra.mxu0 %v2779
  %2875 = vmatpush.bf16.msra.mxu0 %v2775
  %2876 = vmatpush.bf16.msra.mxu0 %v2771
  %2877 = vmatpush.bf16.msra.mxu0 %v2767
  %2878 = vmatmul.bf16.gmra.mxu0 %v2635
  %v2879 = vpop.f32.mrf.mxu0
  %v2880 = vadd.f32 0.0, %v2879
  %v2881 = vpop.f32.mrf.mxu0
  %v2882 = vadd.f32 0.0, %v2881
  %2883 = vdwg.mxu0
  %v2884 = vadd.f32 %v2625, %v2838
  %v2885 = vadd.f32 %v2626, %v2852
  %v2886 = vadd.f32 %v2627, %v2866
  %v2887 = vadd.f32 %v2628, %v2880
  %v2888 = vadd.f32 %v2629, %v2840
  %v2889 = vadd.f32 %v2630, %v2854
  %v2890 = vadd.f32 %v2631, %v2868
  %v2891 = vadd.f32 %v2632, %v2882
  %v2892 = vxor.u32 %v2884, 2147483648
  %v2893 = vxor.u32 %v2888, 2147483648
  %v2894 = vmul.f32 %v2892, 1.442695
  %v2895 = vpow.pop %v2894
  %v2896 = vmul.f32 %v2893, 1.442695
  %v2897 = vpow.pop %v2896
  %v2898 = vadd.f32 %v2895, 1.0
  %v2899 = vadd.f32 %v2897, 1.0
  %v2900 = vrcp.pop %v2898
  %v2901 = vmul.f32 %v2898, %v2900
  %v2902 = vsub.f32 1.0, %v2901
  %v2903 = vmul.f32 %v2900, %v2902
  %v2904 = vadd.f32 %v2900, %v2903
  %vm2905 = vweird.f32 %v2898
  %vm2906 = vweird.f32 %v2900
  %vm2907 = vmor %vm2905, %vm2906
  %v2908 = vsel %vm2907, %v2900, %v2904
  %v2909 = vand.u32 2147483647, %v2898
  %vm2910 = vcmp.eq.f32.partialorder %v2909, 8.507059e+37
  %v2911 = vand.u32 %v2898, 2147483648
  %v2912 = vor.u32 1.1754944e-38, %v2911
  %v2913 = vsel %vm2910, %v2912, %v2908
  %v2914 = vmul.f32 1.0, %v2913
  %v2915 = vrcp.pop %v2899
  %v2916 = vmul.f32 %v2899, %v2915
  %v2917 = vsub.f32 1.0, %v2916
  %v2918 = vmul.f32 %v2915, %v2917
  %v2919 = vadd.f32 %v2915, %v2918
  %vm2920 = vweird.f32 %v2899
  %vm2921 = vweird.f32 %v2915
  %vm2922 = vmor %vm2920, %vm2921
  %v2923 = vsel %vm2922, %v2915, %v2919
  %v2924 = vand.u32 2147483647, %v2899
  %vm2925 = vcmp.eq.f32.partialorder %v2924, 8.507059e+37
  %v2926 = vand.u32 %v2899, 2147483648
  %v2927 = vor.u32 1.1754944e-38, %v2926
  %v2928 = vsel %vm2925, %v2927, %v2923
  %v2929 = vmul.f32 1.0, %v2928
  %v2930 = vxor.u32 %v2885, 2147483648
  %v2931 = vxor.u32 %v2889, 2147483648
  %v2932 = vmul.f32 %v2930, 1.442695
  %v2933 = vpow.pop %v2932
  %v2934 = vmul.f32 %v2931, 1.442695
  %v2935 = vpow.pop %v2934
  %v2936 = vadd.f32 %v2933, 1.0
  %v2937 = vadd.f32 %v2935, 1.0
  %v2938 = vrcp.pop %v2936
  %v2939 = vmul.f32 %v2936, %v2938
  %v2940 = vsub.f32 1.0, %v2939
  %v2941 = vmul.f32 %v2938, %v2940
  %v2942 = vadd.f32 %v2938, %v2941
  %vm2943 = vweird.f32 %v2936
  %vm2944 = vweird.f32 %v2938
  %vm2945 = vmor %vm2943, %vm2944
  %v2946 = vsel %vm2945, %v2938, %v2942
  %v2947 = vand.u32 2147483647, %v2936
  %vm2948 = vcmp.eq.f32.partialorder %v2947, 8.507059e+37
  %v2949 = vand.u32 %v2936, 2147483648
  %v2950 = vor.u32 1.1754944e-38, %v2949
  %v2951 = vsel %vm2948, %v2950, %v2946
  %v2952 = vmul.f32 1.0, %v2951
  %v2953 = vrcp.pop %v2937
  %v2954 = vmul.f32 %v2937, %v2953
  %v2955 = vsub.f32 1.0, %v2954
  %v2956 = vmul.f32 %v2953, %v2955
  %v2957 = vadd.f32 %v2953, %v2956
  %vm2958 = vweird.f32 %v2937
  %vm2959 = vweird.f32 %v2953
  %vm2960 = vmor %vm2958, %vm2959
  %v2961 = vsel %vm2960, %v2953, %v2957
  %v2962 = vand.u32 2147483647, %v2937
  %vm2963 = vcmp.eq.f32.partialorder %v2962, 8.507059e+37
  %v2964 = vand.u32 %v2937, 2147483648
  %v2965 = vor.u32 1.1754944e-38, %v2964
  %v2966 = vsel %vm2963, %v2965, %v2961
  %v2967 = vmul.f32 1.0, %v2966
  %v2968 = vtanh.pop %v2886
  %v2969 = vtanh.pop %v2890
  %v2970 = vxor.u32 %v2887, 2147483648
  %v2971 = vxor.u32 %v2891, 2147483648
  %v2972 = vmul.f32 %v2970, 1.442695
  %v2973 = vpow.pop %v2972
  %v2974 = vmul.f32 %v2971, 1.442695
  %v2975 = vpow.pop %v2974
  %v2976 = vadd.f32 %v2973, 1.0
  %v2977 = vadd.f32 %v2975, 1.0
  %v2978 = vrcp.pop %v2976
  %v2979 = vmul.f32 %v2976, %v2978
  %v2980 = vsub.f32 1.0, %v2979
  %v2981 = vmul.f32 %v2978, %v2980
  %v2982 = vadd.f32 %v2978, %v2981
  %vm2983 = vweird.f32 %v2976
  %vm2984 = vweird.f32 %v2978
  %vm2985 = vmor %vm2983, %vm2984
  %v2986 = vsel %vm2985, %v2978, %v2982
  %v2987 = vand.u32 2147483647, %v2976
  %vm2988 = vcmp.eq.f32.partialorder %v2987, 8.507059e+37
  %v2989 = vand.u32 %v2976, 2147483648
  %v2990 = vor.u32 1.1754944e-38, %v2989
  %v2991 = vsel %vm2988, %v2990, %v2986
  %v2992 = vmul.f32 1.0, %v2991
  %v2993 = vrcp.pop %v2977
  %v2994 = vmul.f32 %v2977, %v2993
  %v2995 = vsub.f32 1.0, %v2994
  %v2996 = vmul.f32 %v2993, %v2995
  %v2997 = vadd.f32 %v2993, %v2996
  %vm2998 = vweird.f32 %v2977
  %vm2999 = vweird.f32 %v2993
  %vm3000 = vmor %vm2998, %vm2999
  %v3001 = vsel %vm3000, %v2993, %v2997
  %v3002 = vand.u32 2147483647, %v2977
  %vm3003 = vcmp.eq.f32.partialorder %v3002, 8.507059e+37
  %v3004 = vand.u32 %v2977, 2147483648
  %v3005 = vor.u32 1.1754944e-38, %v3004
  %v3006 = vsel %vm3003, %v3005, %v3001
  %v3007 = vmul.f32 1.0, %v3006
  %v3008 = vld [vmem:[#allocation4] sm:$0xff]
  %v3009 = vld [vmem:[#allocation4 + $0x8] sm:$0xff]
  %v3010 = vmul.f32 %v2952, %v3008
  %v3011 = vmul.f32 %v2967, %v3009
  %v3012 = vmul.f32 %v2914, %v2968
  %v3013 = vmul.f32 %v2929, %v2969
  %v3014 = vadd.f32 %v3010, %v3012
  %v3015 = vadd.f32 %v3011, %v3013
  %v3016 = vtanh.pop %v3014
  %v3017 = vtanh.pop %v3015
  %v3018 = vmul.f32 %v2992, %v3016
  %v3019 = vmul.f32 %v3007, %v3017
  %3020 = vst [vmem:[#allocation4] sm:$0xff] %v3014
  %3021 = vst [vmem:[#allocation4 + $0x8] sm:$0xff] %v3015
  %3022 = vst [vmem:[#allocation3] sm:$0xff] %v3018
  %3023 = vst [vmem:[#allocation3 + $0x8] sm:$0xff] %v3019
  %v3024 = vpack.c.bf16 %v3018, %v3018
  %v3025 = vpack.c.bf16 %v3019, %v3019
  %s3026 = scalar_lea.vmem %s6, 40
  %3027 = vst [vmem:[%s3026] sm:$0xf] %v3024
  %3028 = vst [vmem:[%s3026 + $0x4] sm:$0xf] %v3025
  %s3029 = smul.u32 12, 4
  %s3030 = smul.addr %s3029, 4
  %s3031 = scalar_lea.vmem [#allocation2], %s3030
  %v3032 = vld [vmem:[%s3031] sm:$0xff]
  %v3033 = vld [vmem:[%s3031 + $0x8] sm:$0xff]
  %v3034 = vld [vmem:[%s3031 + $0x10] sm:$0xff]
  %v3035 = vld [vmem:[%s3031 + $0x18] sm:$0xff]
  %v3036 = vunpack.c.l.bf16 %v3032
  %v3037 = vunpack.c.h.bf16 %v3032
  %v3038 = vunpack.c.l.bf16 %v3033
  %v3039 = vunpack.c.h.bf16 %v3033
  %v3040 = vunpack.c.l.bf16 %v3034
  %v3041 = vunpack.c.h.bf16 %v3034
  %v3042 = vunpack.c.l.bf16 %v3035
  %v3043 = vunpack.c.h.bf16 %v3035
  %v3044 = vld [vmem:[#allocation3] sm:$0xff]
  %v3045 = vld [vmem:[#allocation3 + $0x8] sm:$0xff]
  %v3046 = vpack.c.bf16 %v3045, %v3044
  %v3047 = vld [vmem:[%s4] sm:$0xff]
  %v3048 = vld [vmem:[%s4 + $0x8] sm:$0xff]
  %v3049 = vld [vmem:[%s4 + $0x10] sm:$0xff]
  %v3050 = vld [vmem:[%s4 + $0x18] sm:$0xff]
  %v3051 = vld [vmem:[%s4 + $0x20] sm:$0xff]
  %v3052 = vld [vmem:[%s4 + $0x28] sm:$0xff]
  %v3053 = vld [vmem:[%s4 + $0x30] sm:$0xff]
  %v3054 = vld [vmem:[%s4 + $0x38] sm:$0xff]
  %v3055 = vld [vmem:[%s4 + $0x40] sm:$0xff]
  %v3056 = vld [vmem:[%s4 + $0x48] sm:$0xff]
  %v3057 = vld [vmem:[%s4 + $0x50] sm:$0xff]
  %v3058 = vld [vmem:[%s4 + $0x58] sm:$0xff]
  %v3059 = vld [vmem:[%s4 + $0x60] sm:$0xff]
  %v3060 = vld [vmem:[%s4 + $0x68] sm:$0xff]
  %v3061 = vld [vmem:[%s4 + $0x70] sm:$0xff]
  %v3062 = vld [vmem:[%s4 + $0x78] sm:$0xff]
  %v3063 = vld [vmem:[%s4 + $0x80] sm:$0xff]
  %v3064 = vld [vmem:[%s4 + $0x88] sm:$0xff]
  %v3065 = vld [vmem:[%s4 + $0x90] sm:$0xff]
  %v3066 = vld [vmem:[%s4 + $0x98] sm:$0xff]
  %v3067 = vld [vmem:[%s4 + $0xa0] sm:$0xff]
  %v3068 = vld [vmem:[%s4 + $0xa8] sm:$0xff]
  %v3069 = vld [vmem:[%s4 + $0xb0] sm:$0xff]
  %v3070 = vld [vmem:[%s4 + $0xb8] sm:$0xff]
  %v3071 = vld [vmem:[%s4 + $0xc0] sm:$0xff]
  %v3072 = vld [vmem:[%s4 + $0xc8] sm:$0xff]
  %v3073 = vld [vmem:[%s4 + $0xd0] sm:$0xff]
  %v3074 = vld [vmem:[%s4 + $0xd8] sm:$0xff]
  %v3075 = vld [vmem:[%s4 + $0xe0] sm:$0xff]
  %v3076 = vld [vmem:[%s4 + $0xe8] sm:$0xff]
  %v3077 = vld [vmem:[%s4 + $0xf0] sm:$0xff]
  %v3078 = vld [vmem:[%s4 + $0xf8] sm:$0xff]
  %v3111 = vunpack.c.l.b16 %v3047
  %v3112 = vunpack.c.h.b16 %v3047
  %v3113 = vunpack.c.l.b16 %v3048
  %v3114 = vunpack.c.h.b16 %v3048
  %v3115 = vunpack.c.l.b16 %v3049
  %v3116 = vunpack.c.h.b16 %v3049
  %v3117 = vunpack.c.l.b16 %v3050
  %v3118 = vunpack.c.h.b16 %v3050
  %v3119 = vunpack.c.l.b16 %v3051
  %v3120 = vunpack.c.h.b16 %v3051
  %v3121 = vunpack.c.l.b16 %v3052
  %v3122 = vunpack.c.h.b16 %v3052
  %v3123 = vunpack.c.l.b16 %v3053
  %v3124 = vunpack.c.h.b16 %v3053
  %v3125 = vunpack.c.l.b16 %v3054
  %v3126 = vunpack.c.h.b16 %v3054
  %v3127 = vunpack.c.l.b16 %v3055
  %v3128 = vunpack.c.h.b16 %v3055
  %v3129 = vunpack.c.l.b16 %v3056
  %v3130 = vunpack.c.h.b16 %v3056
  %v3131 = vunpack.c.l.b16 %v3057
  %v3132 = vunpack.c.h.b16 %v3057
  %v3133 = vunpack.c.l.b16 %v3058
  %v3134 = vunpack.c.h.b16 %v3058
  %v3135 = vunpack.c.l.b16 %v3059
  %v3136 = vunpack.c.h.b16 %v3059
  %v3137 = vunpack.c.l.b16 %v3060
  %v3138 = vunpack.c.h.b16 %v3060
  %v3139 = vunpack.c.l.b16 %v3061
  %v3140 = vunpack.c.h.b16 %v3061
  %v3141 = vunpack.c.l.b16 %v3062
  %v3142 = vunpack.c.h.b16 %v3062
  %v3143 = vunpack.c.l.b16 %v3063
  %v3144 = vunpack.c.h.b16 %v3063
  %v3145 = vunpack.c.l.b16 %v3064
  %v3146 = vunpack.c.h.b16 %v3064
  %v3147 = vunpack.c.l.b16 %v3065
  %v3148 = vunpack.c.h.b16 %v3065
  %v3149 = vunpack.c.l.b16 %v3066
  %v3150 = vunpack.c.h.b16 %v3066
  %v3151 = vunpack.c.l.b16 %v3067
  %v3152 = vunpack.c.h.b16 %v3067
  %v3153 = vunpack.c.l.b16 %v3068
  %v3154 = vunpack.c.h.b16 %v3068
  %v3155 = vunpack.c.l.b16 %v3069
  %v3156 = vunpack.c.h.b16 %v3069
  %v3157 = vunpack.c.l.b16 %v3070
  %v3158 = vunpack.c.h.b16 %v3070
  %v3159 = vunpack.c.l.b16 %v3071
  %v3160 = vunpack.c.h.b16 %v3071
  %v3161 = vunpack.c.l.b16 %v3072
  %v3162 = vunpack.c.h.b16 %v3072
  %v3163 = vunpack.c.l.b16 %v3073
  %v3164 = vunpack.c.h.b16 %v3073
  %v3165 = vunpack.c.l.b16 %v3074
  %v3166 = vunpack.c.h.b16 %v3074
  %v3167 = vunpack.c.l.b16 %v3075
  %v3168 = vunpack.c.h.b16 %v3075
  %v3169 = vunpack.c.l.b16 %v3076
  %v3170 = vunpack.c.h.b16 %v3076
  %v3171 = vunpack.c.l.b16 %v3077
  %v3172 = vunpack.c.h.b16 %v3077
  %v3173 = vunpack.c.l.b16 %v3078
  %v3174 = vunpack.c.h.b16 %v3078
  %v3175 = vpack.c.b16 %v3115, %v3111
  %v3176 = vpack.c.b16 %v3116, %v3112
  %v3177 = vpack.c.b16 %v3117, %v3113
  %v3178 = vpack.c.b16 %v3118, %v3114
  %v3179 = vpack.c.b16 %v3123, %v3119
  %v3180 = vpack.c.b16 %v3124, %v3120
  %v3181 = vpack.c.b16 %v3125, %v3121
  %v3182 = vpack.c.b16 %v3126, %v3122
  %v3183 = vpack.c.b16 %v3131, %v3127
  %v3184 = vpack.c.b16 %v3132, %v3128
  %v3185 = vpack.c.b16 %v3133, %v3129
  %v3186 = vpack.c.b16 %v3134, %v3130
  %v3187 = vpack.c.b16 %v3139, %v3135
  %v3188 = vpack.c.b16 %v3140, %v3136
  %v3189 = vpack.c.b16 %v3141, %v3137
  %v3190 = vpack.c.b16 %v3142, %v3138
  %v3191 = vpack.c.b16 %v3147, %v3143
  %v3192 = vpack.c.b16 %v3148, %v3144
  %v3193 = vpack.c.b16 %v3149, %v3145
  %v3194 = vpack.c.b16 %v3150, %v3146
  %v3195 = vpack.c.b16 %v3155, %v3151
  %v3196 = vpack.c.b16 %v3156, %v3152
  %v3197 = vpack.c.b16 %v3157, %v3153
  %v3198 = vpack.c.b16 %v3158, %v3154
  %v3199 = vpack.c.b16 %v3163, %v3159
  %v3200 = vpack.c.b16 %v3164, %v3160
  %v3201 = vpack.c.b16 %v3165, %v3161
  %v3202 = vpack.c.b16 %v3166, %v3162
  %v3203 = vpack.c.b16 %v3171, %v3167
  %v3204 = vpack.c.b16 %v3172, %v3168
  %v3205 = vpack.c.b16 %v3173, %v3169
  %v3206 = vpack.c.b16 %v3174, %v3170
  %3239 = vmatpush.bf16.msra.mxu0 %v3203
  %3240 = vmatpush.bf16.msra.mxu0 %v3199
  %3241 = vmatpush.bf16.msra.mxu0 %v3195
  %3242 = vmatpush.bf16.msra.mxu0 %v3191
  %3243 = vmatpush.bf16.msra.mxu0 %v3187
  %3244 = vmatpush.bf16.msra.mxu0 %v3183
  %3245 = vmatpush.bf16.msra.mxu0 %v3179
  %3246 = vmatpush.bf16.msra.mxu0 %v3175
  %3247 = vmatmul.bf16.gmra.mxu0 %v3046
  %v3248 = vpop.f32.mrf.mxu0
  %v3249 = vadd.f32 0.0, %v3248
  %v3250 = vpop.f32.mrf.mxu0
  %v3251 = vadd.f32 0.0, %v3250
  %3252 = vdwg.mxu0
  %3253 = vmatpush.bf16.msra.mxu0 %v3204
  %3254 = vmatpush.bf16.msra.mxu0 %v3200
  %3255 = vmatpush.bf16.msra.mxu0 %v3196
  %3256 = vmatpush.bf16.msra.mxu0 %v3192
  %3257 = vmatpush.bf16.msra.mxu0 %v3188
  %3258 = vmatpush.bf16.msra.mxu0 %v3184
  %3259 = vmatpush.bf16.msra.mxu0 %v3180
  %3260 = vmatpush.bf16.msra.mxu0 %v3176
  %3261 = vmatmul.bf16.gmra.mxu0 %v3046
  %v3262 = vpop.f32.mrf.mxu0
  %v3263 = vadd.f32 0.0, %v3262
  %v3264 = vpop.f32.mrf.mxu0
  %v3265 = vadd.f32 0.0, %v3264
  %3266 = vdwg.mxu0
  %3267 = vmatpush.bf16.msra.mxu0 %v3205
  %3268 = vmatpush.bf16.msra.mxu0 %v3201
  %3269 = vmatpush.bf16.msra.mxu0 %v3197
  %3270 = vmatpush.bf16.msra.mxu0 %v3193
  %3271 = vmatpush.bf16.msra.mxu0 %v3189
  %3272 = vmatpush.bf16.msra.mxu0 %v3185
  %3273 = vmatpush.bf16.msra.mxu0 %v3181
  %3274 = vmatpush.bf16.msra.mxu0 %v3177
  %3275 = vmatmul.bf16.gmra.mxu0 %v3046
  %v3276 = vpop.f32.mrf.mxu0
  %v3277 = vadd.f32 0.0, %v3276
  %v3278 = vpop.f32.mrf.mxu0
  %v3279 = vadd.f32 0.0, %v3278
  %3280 = vdwg.mxu0
  %3281 = vmatpush.bf16.msra.mxu0 %v3206
  %3282 = vmatpush.bf16.msra.mxu0 %v3202
  %3283 = vmatpush.bf16.msra.mxu0 %v3198
  %3284 = vmatpush.bf16.msra.mxu0 %v3194
  %3285 = vmatpush.bf16.msra.mxu0 %v3190
  %3286 = vmatpush.bf16.msra.mxu0 %v3186
  %3287 = vmatpush.bf16.msra.mxu0 %v3182
  %3288 = vmatpush.bf16.msra.mxu0 %v3178
  %3289 = vmatmul.bf16.gmra.mxu0 %v3046
  %v3290 = vpop.f32.mrf.mxu0
  %v3291 = vadd.f32 0.0, %v3290
  %v3292 = vpop.f32.mrf.mxu0
  %v3293 = vadd.f32 0.0, %v3292
  %3294 = vdwg.mxu0
  %v3295 = vadd.f32 %v3036, %v3249
  %v3296 = vadd.f32 %v3037, %v3263
  %v3297 = vadd.f32 %v3038, %v3277
  %v3298 = vadd.f32 %v3039, %v3291
  %v3299 = vadd.f32 %v3040, %v3251
  %v3300 = vadd.f32 %v3041, %v3265
  %v3301 = vadd.f32 %v3042, %v3279
  %v3302 = vadd.f32 %v3043, %v3293
  %v3303 = vxor.u32 %v3295, 2147483648
  %v3304 = vxor.u32 %v3299, 2147483648
  %v3305 = vmul.f32 %v3303, 1.442695
  %v3306 = vpow.pop %v3305
  %v3307 = vmul.f32 %v3304, 1.442695
  %v3308 = vpow.pop %v3307
  %v3309 = vadd.f32 %v3306, 1.0
  %v3310 = vadd.f32 %v3308, 1.0
  %v3311 = vrcp.pop %v3309
  %v3312 = vmul.f32 %v3309, %v3311
  %v3313 = vsub.f32 1.0, %v3312
  %v3314 = vmul.f32 %v3311, %v3313
  %v3315 = vadd.f32 %v3311, %v3314
  %vm3316 = vweird.f32 %v3309
  %vm3317 = vweird.f32 %v3311
  %vm3318 = vmor %vm3316, %vm3317
  %v3319 = vsel %vm3318, %v3311, %v3315
  %v3320 = vand.u32 2147483647, %v3309
  %vm3321 = vcmp.eq.f32.partialorder %v3320, 8.507059e+37
  %v3322 = vand.u32 %v3309, 2147483648
  %v3323 = vor.u32 1.1754944e-38, %v3322
  %v3324 = vsel %vm3321, %v3323, %v3319
  %v3325 = vmul.f32 1.0, %v3324
  %v3326 = vrcp.pop %v3310
  %v3327 = vmul.f32 %v3310, %v3326
  %v3328 = vsub.f32 1.0, %v3327
  %v3329 = vmul.f32 %v3326, %v3328
  %v3330 = vadd.f32 %v3326, %v3329
  %vm3331 = vweird.f32 %v3310
  %vm3332 = vweird.f32 %v3326
  %vm3333 = vmor %vm3331, %vm3332
  %v3334 = vsel %vm3333, %v3326, %v3330
  %v3335 = vand.u32 2147483647, %v3310
  %vm3336 = vcmp.eq.f32.partialorder %v3335, 8.507059e+37
  %v3337 = vand.u32 %v3310, 2147483648
  %v3338 = vor.u32 1.1754944e-38, %v3337
  %v3339 = vsel %vm3336, %v3338, %v3334
  %v3340 = vmul.f32 1.0, %v3339
  %v3341 = vxor.u32 %v3296, 2147483648
  %v3342 = vxor.u32 %v3300, 2147483648
  %v3343 = vmul.f32 %v3341, 1.442695
  %v3344 = vpow.pop %v3343
  %v3345 = vmul.f32 %v3342, 1.442695
  %v3346 = vpow.pop %v3345
  %v3347 = vadd.f32 %v3344, 1.0
  %v3348 = vadd.f32 %v3346, 1.0
  %v3349 = vrcp.pop %v3347
  %v3350 = vmul.f32 %v3347, %v3349
  %v3351 = vsub.f32 1.0, %v3350
  %v3352 = vmul.f32 %v3349, %v3351
  %v3353 = vadd.f32 %v3349, %v3352
  %vm3354 = vweird.f32 %v3347
  %vm3355 = vweird.f32 %v3349
  %vm3356 = vmor %vm3354, %vm3355
  %v3357 = vsel %vm3356, %v3349, %v3353
  %v3358 = vand.u32 2147483647, %v3347
  %vm3359 = vcmp.eq.f32.partialorder %v3358, 8.507059e+37
  %v3360 = vand.u32 %v3347, 2147483648
  %v3361 = vor.u32 1.1754944e-38, %v3360
  %v3362 = vsel %vm3359, %v3361, %v3357
  %v3363 = vmul.f32 1.0, %v3362
  %v3364 = vrcp.pop %v3348
  %v3365 = vmul.f32 %v3348, %v3364
  %v3366 = vsub.f32 1.0, %v3365
  %v3367 = vmul.f32 %v3364, %v3366
  %v3368 = vadd.f32 %v3364, %v3367
  %vm3369 = vweird.f32 %v3348
  %vm3370 = vweird.f32 %v3364
  %vm3371 = vmor %vm3369, %vm3370
  %v3372 = vsel %vm3371, %v3364, %v3368
  %v3373 = vand.u32 2147483647, %v3348
  %vm3374 = vcmp.eq.f32.partialorder %v3373, 8.507059e+37
  %v3375 = vand.u32 %v3348, 2147483648
  %v3376 = vor.u32 1.1754944e-38, %v3375
  %v3377 = vsel %vm3374, %v3376, %v3372
  %v3378 = vmul.f32 1.0, %v3377
  %v3379 = vtanh.pop %v3297
  %v3380 = vtanh.pop %v3301
  %v3381 = vxor.u32 %v3298, 2147483648
  %v3382 = vxor.u32 %v3302, 2147483648
  %v3383 = vmul.f32 %v3381, 1.442695
  %v3384 = vpow.pop %v3383
  %v3385 = vmul.f32 %v3382, 1.442695
  %v3386 = vpow.pop %v3385
  %v3387 = vadd.f32 %v3384, 1.0
  %v3388 = vadd.f32 %v3386, 1.0
  %v3389 = vrcp.pop %v3387
  %v3390 = vmul.f32 %v3387, %v3389
  %v3391 = vsub.f32 1.0, %v3390
  %v3392 = vmul.f32 %v3389, %v3391
  %v3393 = vadd.f32 %v3389, %v3392
  %vm3394 = vweird.f32 %v3387
  %vm3395 = vweird.f32 %v3389
  %vm3396 = vmor %vm3394, %vm3395
  %v3397 = vsel %vm3396, %v3389, %v3393
  %v3398 = vand.u32 2147483647, %v3387
  %vm3399 = vcmp.eq.f32.partialorder %v3398, 8.507059e+37
  %v3400 = vand.u32 %v3387, 2147483648
  %v3401 = vor.u32 1.1754944e-38, %v3400
  %v3402 = vsel %vm3399, %v3401, %v3397
  %v3403 = vmul.f32 1.0, %v3402
  %v3404 = vrcp.pop %v3388
  %v3405 = vmul.f32 %v3388, %v3404
  %v3406 = vsub.f32 1.0, %v3405
  %v3407 = vmul.f32 %v3404, %v3406
  %v3408 = vadd.f32 %v3404, %v3407
  %vm3409 = vweird.f32 %v3388
  %vm3410 = vweird.f32 %v3404
  %vm3411 = vmor %vm3409, %vm3410
  %v3412 = vsel %vm3411, %v3404, %v3408
  %v3413 = vand.u32 2147483647, %v3388
  %vm3414 = vcmp.eq.f32.partialorder %v3413, 8.507059e+37
  %v3415 = vand.u32 %v3388, 2147483648
  %v3416 = vor.u32 1.1754944e-38, %v3415
  %v3417 = vsel %vm3414, %v3416, %v3412
  %v3418 = vmul.f32 1.0, %v3417
  %v3419 = vld [vmem:[#allocation4] sm:$0xff]
  %v3420 = vld [vmem:[#allocation4 + $0x8] sm:$0xff]
  %v3421 = vmul.f32 %v3363, %v3419
  %v3422 = vmul.f32 %v3378, %v3420
  %v3423 = vmul.f32 %v3325, %v3379
  %v3424 = vmul.f32 %v3340, %v3380
  %v3425 = vadd.f32 %v3421, %v3423
  %v3426 = vadd.f32 %v3422, %v3424
  %v3427 = vtanh.pop %v3425
  %v3428 = vtanh.pop %v3426
  %v3429 = vmul.f32 %v3403, %v3427
  %v3430 = vmul.f32 %v3418, %v3428
  %3431 = vst [vmem:[#allocation4] sm:$0xff] %v3425
  %3432 = vst [vmem:[#allocation4 + $0x8] sm:$0xff] %v3426
  %3433 = vst [vmem:[#allocation3] sm:$0xff] %v3429
  %3434 = vst [vmem:[#allocation3 + $0x8] sm:$0xff] %v3430
  %v3435 = vpack.c.bf16 %v3429, %v3429
  %v3436 = vpack.c.bf16 %v3430, %v3430
  %s3437 = scalar_lea.vmem %s6, 48
  %3438 = vst [vmem:[%s3437] sm:$0xf] %v3435
  %3439 = vst [vmem:[%s3437 + $0x4] sm:$0xf] %v3436
  %s3440 = smul.u32 14, 4
  %s3441 = smul.addr %s3440, 4
  %s3442 = scalar_lea.vmem [#allocation2], %s3441
  %v3443 = vld [vmem:[%s3442] sm:$0xff]
  %v3444 = vld [vmem:[%s3442 + $0x8] sm:$0xff]
  %v3445 = vld [vmem:[%s3442 + $0x10] sm:$0xff]
  %v3446 = vld [vmem:[%s3442 + $0x18] sm:$0xff]
  %v3447 = vunpack.c.l.bf16 %v3443
  %v3448 = vunpack.c.h.bf16 %v3443
  %v3449 = vunpack.c.l.bf16 %v3444
  %v3450 = vunpack.c.h.bf16 %v3444
  %v3451 = vunpack.c.l.bf16 %v3445
  %v3452 = vunpack.c.h.bf16 %v3445
  %v3453 = vunpack.c.l.bf16 %v3446
  %v3454 = vunpack.c.h.bf16 %v3446
  %v3455 = vld [vmem:[#allocation3] sm:$0xff]
  %v3456 = vld [vmem:[#allocation3 + $0x8] sm:$0xff]
  %v3457 = vpack.c.bf16 %v3456, %v3455
  %v3458 = vld [vmem:[%s4] sm:$0xff]
  %v3459 = vld [vmem:[%s4 + $0x8] sm:$0xff]
  %v3460 = vld [vmem:[%s4 + $0x10] sm:$0xff]
  %v3461 = vld [vmem:[%s4 + $0x18] sm:$0xff]
  %v3462 = vld [vmem:[%s4 + $0x20] sm:$0xff]
  %v3463 = vld [vmem:[%s4 + $0x28] sm:$0xff]
  %v3464 = vld [vmem:[%s4 + $0x30] sm:$0xff]
  %v3465 = vld [vmem:[%s4 + $0x38] sm:$0xff]
  %v3466 = vld [vmem:[%s4 + $0x40] sm:$0xff]
  %v3467 = vld [vmem:[%s4 + $0x48] sm:$0xff]
  %v3468 = vld [vmem:[%s4 + $0x50] sm:$0xff]
  %v3469 = vld [vmem:[%s4 + $0x58] sm:$0xff]
  %v3470 = vld [vmem:[%s4 + $0x60] sm:$0xff]
  %v3471 = vld [vmem:[%s4 + $0x68] sm:$0xff]
  %v3472 = vld [vmem:[%s4 + $0x70] sm:$0xff]
  %v3473 = vld [vmem:[%s4 + $0x78] sm:$0xff]
  %v3474 = vld [vmem:[%s4 + $0x80] sm:$0xff]
  %v3475 = vld [vmem:[%s4 + $0x88] sm:$0xff]
  %v3476 = vld [vmem:[%s4 + $0x90] sm:$0xff]
  %v3477 = vld [vmem:[%s4 + $0x98] sm:$0xff]
  %v3478 = vld [vmem:[%s4 + $0xa0] sm:$0xff]
  %v3479 = vld [vmem:[%s4 + $0xa8] sm:$0xff]
  %v3480 = vld [vmem:[%s4 + $0xb0] sm:$0xff]
  %v3481 = vld [vmem:[%s4 + $0xb8] sm:$0xff]
  %v3482 = vld [vmem:[%s4 + $0xc0] sm:$0xff]
  %v3483 = vld [vmem:[%s4 + $0xc8] sm:$0xff]
  %v3484 = vld [vmem:[%s4 + $0xd0] sm:$0xff]
  %v3485 = vld [vmem:[%s4 + $0xd8] sm:$0xff]
  %v3486 = vld [vmem:[%s4 + $0xe0] sm:$0xff]
  %v3487 = vld [vmem:[%s4 + $0xe8] sm:$0xff]
  %v3488 = vld [vmem:[%s4 + $0xf0] sm:$0xff]
  %v3489 = vld [vmem:[%s4 + $0xf8] sm:$0xff]
  %v3522 = vunpack.c.l.b16 %v3458
  %v3523 = vunpack.c.h.b16 %v3458
  %v3524 = vunpack.c.l.b16 %v3459
  %v3525 = vunpack.c.h.b16 %v3459
  %v3526 = vunpack.c.l.b16 %v3460
  %v3527 = vunpack.c.h.b16 %v3460
  %v3528 = vunpack.c.l.b16 %v3461
  %v3529 = vunpack.c.h.b16 %v3461
  %v3530 = vunpack.c.l.b16 %v3462
  %v3531 = vunpack.c.h.b16 %v3462
  %v3532 = vunpack.c.l.b16 %v3463
  %v3533 = vunpack.c.h.b16 %v3463
  %v3534 = vunpack.c.l.b16 %v3464
  %v3535 = vunpack.c.h.b16 %v3464
  %v3536 = vunpack.c.l.b16 %v3465
  %v3537 = vunpack.c.h.b16 %v3465
  %v3538 = vunpack.c.l.b16 %v3466
  %v3539 = vunpack.c.h.b16 %v3466
  %v3540 = vunpack.c.l.b16 %v3467
  %v3541 = vunpack.c.h.b16 %v3467
  %v3542 = vunpack.c.l.b16 %v3468
  %v3543 = vunpack.c.h.b16 %v3468
  %v3544 = vunpack.c.l.b16 %v3469
  %v3545 = vunpack.c.h.b16 %v3469
  %v3546 = vunpack.c.l.b16 %v3470
  %v3547 = vunpack.c.h.b16 %v3470
  %v3548 = vunpack.c.l.b16 %v3471
  %v3549 = vunpack.c.h.b16 %v3471
  %v3550 = vunpack.c.l.b16 %v3472
  %v3551 = vunpack.c.h.b16 %v3472
  %v3552 = vunpack.c.l.b16 %v3473
  %v3553 = vunpack.c.h.b16 %v3473
  %v3554 = vunpack.c.l.b16 %v3474
  %v3555 = vunpack.c.h.b16 %v3474
  %v3556 = vunpack.c.l.b16 %v3475
  %v3557 = vunpack.c.h.b16 %v3475
  %v3558 = vunpack.c.l.b16 %v3476
  %v3559 = vunpack.c.h.b16 %v3476
  %v3560 = vunpack.c.l.b16 %v3477
  %v3561 = vunpack.c.h.b16 %v3477
  %v3562 = vunpack.c.l.b16 %v3478
  %v3563 = vunpack.c.h.b16 %v3478
  %v3564 = vunpack.c.l.b16 %v3479
  %v3565 = vunpack.c.h.b16 %v3479
  %v3566 = vunpack.c.l.b16 %v3480
  %v3567 = vunpack.c.h.b16 %v3480
  %v3568 = vunpack.c.l.b16 %v3481
  %v3569 = vunpack.c.h.b16 %v3481
  %v3570 = vunpack.c.l.b16 %v3482
  %v3571 = vunpack.c.h.b16 %v3482
  %v3572 = vunpack.c.l.b16 %v3483
  %v3573 = vunpack.c.h.b16 %v3483
  %v3574 = vunpack.c.l.b16 %v3484
  %v3575 = vunpack.c.h.b16 %v3484
  %v3576 = vunpack.c.l.b16 %v3485
  %v3577 = vunpack.c.h.b16 %v3485
  %v3578 = vunpack.c.l.b16 %v3486
  %v3579 = vunpack.c.h.b16 %v3486
  %v3580 = vunpack.c.l.b16 %v3487
  %v3581 = vunpack.c.h.b16 %v3487
  %v3582 = vunpack.c.l.b16 %v3488
  %v3583 = vunpack.c.h.b16 %v3488
  %v3584 = vunpack.c.l.b16 %v3489
  %v3585 = vunpack.c.h.b16 %v3489
  %v3586 = vpack.c.b16 %v3526, %v3522
  %v3587 = vpack.c.b16 %v3527, %v3523
  %v3588 = vpack.c.b16 %v3528, %v3524
  %v3589 = vpack.c.b16 %v3529, %v3525
  %v3590 = vpack.c.b16 %v3534, %v3530
  %v3591 = vpack.c.b16 %v3535, %v3531
  %v3592 = vpack.c.b16 %v3536, %v3532
  %v3593 = vpack.c.b16 %v3537, %v3533
  %v3594 = vpack.c.b16 %v3542, %v3538
  %v3595 = vpack.c.b16 %v3543, %v3539
  %v3596 = vpack.c.b16 %v3544, %v3540
  %v3597 = vpack.c.b16 %v3545, %v3541
  %v3598 = vpack.c.b16 %v3550, %v3546
  %v3599 = vpack.c.b16 %v3551, %v3547
  %v3600 = vpack.c.b16 %v3552, %v3548
  %v3601 = vpack.c.b16 %v3553, %v3549
  %v3602 = vpack.c.b16 %v3558, %v3554
  %v3603 = vpack.c.b16 %v3559, %v3555
  %v3604 = vpack.c.b16 %v3560, %v3556
  %v3605 = vpack.c.b16 %v3561, %v3557
  %v3606 = vpack.c.b16 %v3566, %v3562
  %v3607 = vpack.c.b16 %v3567, %v3563
  %v3608 = vpack.c.b16 %v3568, %v3564
  %v3609 = vpack.c.b16 %v3569, %v3565
  %v3610 = vpack.c.b16 %v3574, %v3570
  %v3611 = vpack.c.b16 %v3575, %v3571
  %v3612 = vpack.c.b16 %v3576, %v3572
  %v3613 = vpack.c.b16 %v3577, %v3573
  %v3614 = vpack.c.b16 %v3582, %v3578
  %v3615 = vpack.c.b16 %v3583, %v3579
  %v3616 = vpack.c.b16 %v3584, %v3580
  %v3617 = vpack.c.b16 %v3585, %v3581
  %3650 = vmatpush.bf16.msra.mxu0 %v3614
  %3651 = vmatpush.bf16.msra.mxu0 %v3610
  %3652 = vmatpush.bf16.msra.mxu0 %v3606
  %3653 = vmatpush.bf16.msra.mxu0 %v3602
  %3654 = vmatpush.bf16.msra.mxu0 %v3598
  %3655 = vmatpush.bf16.msra.mxu0 %v3594
  %3656 = vmatpush.bf16.msra.mxu0 %v3590
  %3657 = vmatpush.bf16.msra.mxu0 %v3586
  %3658 = vmatmul.bf16.gmra.mxu0 %v3457
  %v3659 = vpop.f32.mrf.mxu0
  %v3660 = vadd.f32 0.0, %v3659
  %v3661 = vpop.f32.mrf.mxu0
  %v3662 = vadd.f32 0.0, %v3661
  %3663 = vdwg.mxu0
  %3664 = vmatpush.bf16.msra.mxu0 %v3615
  %3665 = vmatpush.bf16.msra.mxu0 %v3611
  %3666 = vmatpush.bf16.msra.mxu0 %v3607
  %3667 = vmatpush.bf16.msra.mxu0 %v3603
  %3668 = vmatpush.bf16.msra.mxu0 %v3599
  %3669 = vmatpush.bf16.msra.mxu0 %v3595
  %3670 = vmatpush.bf16.msra.mxu0 %v3591
  %3671 = vmatpush.bf16.msra.mxu0 %v3587
  %3672 = vmatmul.bf16.gmra.mxu0 %v3457
  %v3673 = vpop.f32.mrf.mxu0
  %v3674 = vadd.f32 0.0, %v3673
  %v3675 = vpop.f32.mrf.mxu0
  %v3676 = vadd.f32 0.0, %v3675
  %3677 = vdwg.mxu0
  %3678 = vmatpush.bf16.msra.mxu0 %v3616
  %3679 = vmatpush.bf16.msra.mxu0 %v3612
  %3680 = vmatpush.bf16.msra.mxu0 %v3608
  %3681 = vmatpush.bf16.msra.mxu0 %v3604
  %3682 = vmatpush.bf16.msra.mxu0 %v3600
  %3683 = vmatpush.bf16.msra.mxu0 %v3596
  %3684 = vmatpush.bf16.msra.mxu0 %v3592
  %3685 = vmatpush.bf16.msra.mxu0 %v3588
  %3686 = vmatmul.bf16.gmra.mxu0 %v3457
  %v3687 = vpop.f32.mrf.mxu0
  %v3688 = vadd.f32 0.0, %v3687
  %v3689 = vpop.f32.mrf.mxu0
  %v3690 = vadd.f32 0.0, %v3689
  %3691 = vdwg.mxu0
  %3692 = vmatpush.bf16.msra.mxu0 %v3617
  %3693 = vmatpush.bf16.msra.mxu0 %v3613
  %3694 = vmatpush.bf16.msra.mxu0 %v3609
  %3695 = vmatpush.bf16.msra.mxu0 %v3605
  %3696 = vmatpush.bf16.msra.mxu0 %v3601
  %3697 = vmatpush.bf16.msra.mxu0 %v3597
  %3698 = vmatpush.bf16.msra.mxu0 %v3593
  %3699 = vmatpush.bf16.msra.mxu0 %v3589
  %3700 = vmatmul.bf16.gmra.mxu0 %v3457
  %v3701 = vpop.f32.mrf.mxu0
  %v3702 = vadd.f32 0.0, %v3701
  %v3703 = vpop.f32.mrf.mxu0
  %v3704 = vadd.f32 0.0, %v3703
  %3705 = vdwg.mxu0
  %v3706 = vadd.f32 %v3447, %v3660
  %v3707 = vadd.f32 %v3448, %v3674
  %v3708 = vadd.f32 %v3449, %v3688
  %v3709 = vadd.f32 %v3450, %v3702
  %v3710 = vadd.f32 %v3451, %v3662
  %v3711 = vadd.f32 %v3452, %v3676
  %v3712 = vadd.f32 %v3453, %v3690
  %v3713 = vadd.f32 %v3454, %v3704
  %v3714 = vxor.u32 %v3706, 2147483648
  %v3715 = vxor.u32 %v3710, 2147483648
  %v3716 = vmul.f32 %v3714, 1.442695
  %v3717 = vpow.pop %v3716
  %v3718 = vmul.f32 %v3715, 1.442695
  %v3719 = vpow.pop %v3718
  %v3720 = vadd.f32 %v3717, 1.0
  %v3721 = vadd.f32 %v3719, 1.0
  %v3722 = vrcp.pop %v3720
  %v3723 = vmul.f32 %v3720, %v3722
  %v3724 = vsub.f32 1.0, %v3723
  %v3725 = vmul.f32 %v3722, %v3724
  %v3726 = vadd.f32 %v3722, %v3725
  %vm3727 = vweird.f32 %v3720
  %vm3728 = vweird.f32 %v3722
  %vm3729 = vmor %vm3727, %vm3728
  %v3730 = vsel %vm3729, %v3722, %v3726
  %v3731 = vand.u32 2147483647, %v3720
  %vm3732 = vcmp.eq.f32.partialorder %v3731, 8.507059e+37
  %v3733 = vand.u32 %v3720, 2147483648
  %v3734 = vor.u32 1.1754944e-38, %v3733
  %v3735 = vsel %vm3732, %v3734, %v3730
  %v3736 = vmul.f32 1.0, %v3735
  %v3737 = vrcp.pop %v3721
  %v3738 = vmul.f32 %v3721, %v3737
  %v3739 = vsub.f32 1.0, %v3738
  %v3740 = vmul.f32 %v3737, %v3739
  %v3741 = vadd.f32 %v3737, %v3740
  %vm3742 = vweird.f32 %v3721
  %vm3743 = vweird.f32 %v3737
  %vm3744 = vmor %vm3742, %vm3743
  %v3745 = vsel %vm3744, %v3737, %v3741
  %v3746 = vand.u32 2147483647, %v3721
  %vm3747 = vcmp.eq.f32.partialorder %v3746, 8.507059e+37
  %v3748 = vand.u32 %v3721, 2147483648
  %v3749 = vor.u32 1.1754944e-38, %v3748
  %v3750 = vsel %vm3747, %v3749, %v3745
  %v3751 = vmul.f32 1.0, %v3750
  %v3752 = vxor.u32 %v3707, 2147483648
  %v3753 = vxor.u32 %v3711, 2147483648
  %v3754 = vmul.f32 %v3752, 1.442695
  %v3755 = vpow.pop %v3754
  %v3756 = vmul.f32 %v3753, 1.442695
  %v3757 = vpow.pop %v3756
  %v3758 = vadd.f32 %v3755, 1.0
  %v3759 = vadd.f32 %v3757, 1.0
  %v3760 = vrcp.pop %v3758
  %v3761 = vmul.f32 %v3758, %v3760
  %v3762 = vsub.f32 1.0, %v3761
  %v3763 = vmul.f32 %v3760, %v3762
  %v3764 = vadd.f32 %v3760, %v3763
  %vm3765 = vweird.f32 %v3758
  %vm3766 = vweird.f32 %v3760
  %vm3767 = vmor %vm3765, %vm3766
  %v3768 = vsel %vm3767, %v3760, %v3764
  %v3769 = vand.u32 2147483647, %v3758
  %vm3770 = vcmp.eq.f32.partialorder %v3769, 8.507059e+37
  %v3771 = vand.u32 %v3758, 2147483648
  %v3772 = vor.u32 1.1754944e-38, %v3771
  %v3773 = vsel %vm3770, %v3772, %v3768
  %v3774 = vmul.f32 1.0, %v3773
  %v3775 = vrcp.pop %v3759
  %v3776 = vmul.f32 %v3759, %v3775
  %v3777 = vsub.f32 1.0, %v3776
  %v3778 = vmul.f32 %v3775, %v3777
  %v3779 = vadd.f32 %v3775, %v3778
  %vm3780 = vweird.f32 %v3759
  %vm3781 = vweird.f32 %v3775
  %vm3782 = vmor %vm3780, %vm3781
  %v3783 = vsel %vm3782, %v3775, %v3779
  %v3784 = vand.u32 2147483647, %v3759
  %vm3785 = vcmp.eq.f32.partialorder %v3784, 8.507059e+37
  %v3786 = vand.u32 %v3759, 2147483648
  %v3787 = vor.u32 1.1754944e-38, %v3786
  %v3788 = vsel %vm3785, %v3787, %v3783
  %v3789 = vmul.f32 1.0, %v3788
  %v3790 = vtanh.pop %v3708
  %v3791 = vtanh.pop %v3712
  %v3792 = vxor.u32 %v3709, 2147483648
  %v3793 = vxor.u32 %v3713, 2147483648
  %v3794 = vmul.f32 %v3792, 1.442695
  %v3795 = vpow.pop %v3794
  %v3796 = vmul.f32 %v3793, 1.442695
  %v3797 = vpow.pop %v3796
  %v3798 = vadd.f32 %v3795, 1.0
  %v3799 = vadd.f32 %v3797, 1.0
  %v3800 = vrcp.pop %v3798
  %v3801 = vmul.f32 %v3798, %v3800
  %v3802 = vsub.f32 1.0, %v3801
  %v3803 = vmul.f32 %v3800, %v3802
  %v3804 = vadd.f32 %v3800, %v3803
  %vm3805 = vweird.f32 %v3798
  %vm3806 = vweird.f32 %v3800
  %vm3807 = vmor %vm3805, %vm3806
  %v3808 = vsel %vm3807, %v3800, %v3804
  %v3809 = vand.u32 2147483647, %v3798
  %vm3810 = vcmp.eq.f32.partialorder %v3809, 8.507059e+37
  %v3811 = vand.u32 %v3798, 2147483648
  %v3812 = vor.u32 1.1754944e-38, %v3811
  %v3813 = vsel %vm3810, %v3812, %v3808
  %v3814 = vmul.f32 1.0, %v3813
  %v3815 = vrcp.pop %v3799
  %v3816 = vmul.f32 %v3799, %v3815
  %v3817 = vsub.f32 1.0, %v3816
  %v3818 = vmul.f32 %v3815, %v3817
  %v3819 = vadd.f32 %v3815, %v3818
  %vm3820 = vweird.f32 %v3799
  %vm3821 = vweird.f32 %v3815
  %vm3822 = vmor %vm3820, %vm3821
  %v3823 = vsel %vm3822, %v3815, %v3819
  %v3824 = vand.u32 2147483647, %v3799
  %vm3825 = vcmp.eq.f32.partialorder %v3824, 8.507059e+37
  %v3826 = vand.u32 %v3799, 2147483648
  %v3827 = vor.u32 1.1754944e-38, %v3826
  %v3828 = vsel %vm3825, %v3827, %v3823
  %v3829 = vmul.f32 1.0, %v3828
  %v3830 = vld [vmem:[#allocation4] sm:$0xff]
  %v3831 = vld [vmem:[#allocation4 + $0x8] sm:$0xff]
  %v3832 = vmul.f32 %v3774, %v3830
  %v3833 = vmul.f32 %v3789, %v3831
  %v3834 = vmul.f32 %v3736, %v3790
  %v3835 = vmul.f32 %v3751, %v3791
  %v3836 = vadd.f32 %v3832, %v3834
  %v3837 = vadd.f32 %v3833, %v3835
  %v3838 = vtanh.pop %v3836
  %v3839 = vtanh.pop %v3837
  %v3840 = vmul.f32 %v3814, %v3838
  %v3841 = vmul.f32 %v3829, %v3839
  %3842 = vst [vmem:[#allocation4] sm:$0xff] %v3836
  %3843 = vst [vmem:[#allocation4 + $0x8] sm:$0xff] %v3837
  %3844 = vst [vmem:[#allocation3] sm:$0xff] %v3840
  %3845 = vst [vmem:[#allocation3 + $0x8] sm:$0xff] %v3841
  %v3846 = vpack.c.bf16 %v3840, %v3840
  %v3847 = vpack.c.bf16 %v3841, %v3841
  %s3848 = scalar_lea.vmem %s6, 56
  %3849 = vst [vmem:[%s3848] sm:$0xf] %v3846
  %3850 = vst [vmem:[%s3848 + $0x4] sm:$0xf] %v3847
  // Predicated region
  $region30: #{decoder_forward.2} parent=0 // pred_check
    %p3851 = pneg %p26
  $region31: #{decoder_forward.2} parent=0 // pred_check_branch
    %3853 = sbr.rel (%p3851) target = $region33
  $region32: #{decoder_forward.2} parent=0 // pred_region
    %v3854 = vld [vmem:[#allocation3] sm:$0xff]
    %v3855 = vld [vmem:[#allocation3 + $0x8] sm:$0xff]
    %3856 = vst [vmem:[%s7] sm:$0xff] %v3854
    %3857 = vst [vmem:[%s7 + $0x8] sm:$0xff] %v3855
    %v3858 = vld [vmem:[#allocation4] sm:$0xff]
    %v3859 = vld [vmem:[#allocation4 + $0x8] sm:$0xff]
    %3860 = vst [vmem:[%s8] sm:$0xff] %v3858
    %3861 = vst [vmem:[%s8 + $0x8] sm:$0xff] %v3859
  $region33: #{decoder_forward.2} parent=0 // pred_fallthru
    _
  // Predicated region
  $region34: #{decoder_forward.2} parent=0 // pred_check
    _
  $region35: #{decoder_forward.2} parent=0 // pred_check_branch
    %3863 = sbr.rel (0) target = $region37
  $region36: #{decoder_forward.2} parent=0 // pred_region
    _
  $region37: #{decoder_forward.2} parent=0 // pred_fallthru
    _
  // Predicated region
  $region38: #{decoder_forward.2} parent=0 // pred_check
    _
  $region39: #{decoder_forward.2} parent=0 // pred_check_branch
    %3865 = sbr.rel (0) target = $region41
  $region40: #{decoder_forward.2} parent=0 // pred_region
    _
  $region41: #{decoder_forward.2} parent=0 // pred_fallthru
    _
  // Predicated region
  $region42: #{decoder_forward.2} parent=0 // pred_check
    _
  $region43: #{decoder_forward.2} parent=0 // pred_check_branch
    %3867 = sbr.rel (0) target = $region45
  $region44: #{decoder_forward.2} parent=0 // pred_region
    _
  $region45: #{decoder_forward.2} parent=0 // pred_fallthru
    _
  // Predicated region
  $region46: #{decoder_forward.2} parent=0 // pred_check
    _
  $region47: #{decoder_forward.2} parent=0 // pred_check_branch
    %3869 = sbr.rel (0) target = $region49
  $region48: #{decoder_forward.2} parent=0 // pred_region
    _
  $region49: #{decoder_forward.2} parent=0 // pred_fallthru
    _
  // Predicated region
  $region50: #{decoder_forward.2} parent=0 // pred_check
    _
  $region51: #{decoder_forward.2} parent=0 // pred_check_branch
    %3871 = sbr.rel (0) target = $region53
  $region52: #{decoder_forward.2} parent=0 // pred_region
    _
  $region53: #{decoder_forward.2} parent=0 // pred_fallthru
    _
  // Predicated region
  $region54: #{decoder_forward.2} parent=0 // pred_check
    _
  $region55: #{decoder_forward.2} parent=0 // pred_check_branch
    %3873 = sbr.rel (0) target = $region57
  $region56: #{decoder_forward.2} parent=0 // pred_region
    _
  $region57: #{decoder_forward.2} parent=0 // pred_fallthru
    _

</llo_original>
